<compile_context>
chip_gen: v6e
topology: v6e:2x2x1
jax: 0.10.0
libtpu: 0.0.40
codegen_flags: <defaults>
</compile_context>

<pallas_src>
import jax
import jax.numpy as jnp
from jax import lax
from jax.experimental import pallas as pl
from jax.experimental.pallas import tpu as pltpu

EFF_FEAT = 1280    # efficientnet_b0 classifier in_features
RES_FEAT = 2048    # resnet50 fc in_features
DENSE_FEAT = 1024  # densenet121 classifier in_features
F_TOTAL = EFF_FEAT + RES_FEAT + DENSE_FEAT   # 4352 = 34 * 128


def _round_up(x, m):
    return ((x + m - 1) // m) * m


def init_params(key, in_channels=3, ksize=3):
    """Deterministic synthetic parameters (shapes dictated by the module).

    stem_w: [F, C*k*k] (conv OIHW weight, flattened), stem_b: [F]
    head_w: [F] (nn.Linear(F,1).weight), head_b: [] (its bias)
    """
    k = in_channels * ksize * ksize
    keys = jax.random.split(key, 12)
    p = {}
    for i, (name, feat) in enumerate(
            [('eff', EFF_FEAT), ('res', RES_FEAT), ('dense', DENSE_FEAT)]):
        kw, kb, khw, khb = keys[4 * i: 4 * i + 4]
        p[f'{name}_stem_w'] = (jax.random.normal(kw, (feat, k), jnp.float32)
                               * (1.0 / jnp.sqrt(k)))
        p[f'{name}_stem_b'] = jax.random.normal(kb, (feat,), jnp.float32) * 0.01
        p[f'{name}_head_w'] = (jax.random.normal(khw, (feat,), jnp.float32)
                               * (1.0 / jnp.sqrt(feat)))
        p[f'{name}_head_b'] = jax.random.normal(khb, (), jnp.float32) * 0.01
    return p


def _pack_params(params, k_real, k_pad):
    """Concatenate the 3 branches along F; fold stem bias into the matmul
    (extra weight column at index k_real, matched by a ones-row in the patches)."""
    stem_rows, head_cols = [], []
    hb_sum = jnp.zeros((), jnp.float32)
    for name in ('eff', 'res', 'dense'):
        w = params[f'{name}_stem_w']                              # [F, K]
        b = params[f'{name}_stem_b']                              # [F]
        f = w.shape[0]
        row = jnp.zeros((f, k_pad), jnp.float32)
        row = row.at[:, :k_real].set(w).at[:, k_real].set(b)
        stem_rows.append(row)
        head_cols.append(params[f'{name}_head_w'].reshape(f, 1))
        hb_sum = hb_sum + params[f'{name}_head_b']
    w_t = jnp.concatenate(stem_rows, axis=0).astype(jnp.bfloat16)    # [F_tot, Kp]
    head_w = jnp.concatenate(head_cols, axis=0).astype(jnp.float32)  # [F_tot, 1]
    return w_t, head_w, hb_sum.reshape(1, 1)


def _build_patches(x_nchw, k_real, k_pad, hw_pad):
    """im2col in the kernel-friendly lane-dense layout [N, Kp, HW_pad] bf16.

    Row k_real is the constant 1.0 "bias" row.  Zero-padded spatial columns are
    all-zero (including the bias row), so they contribute exactly 0 after the
    stem matmul + ReLU — no in-kernel masking needed.
    """
    n, c, h, w = x_nchw.shape
    hw = h * w
    patches = lax.conv_general_dilated_patches(
        x_nchw.astype(jnp.float32), filter_shape=(3, 3),
        window_strides=(1, 1), padding='SAME')                 # [N, C*9, H, W]
    patches = patches.reshape(n, k_real, hw)                    # no transpose
    ones = jnp.ones((n, 1, hw), jnp.float32)
    zeros = jnp.zeros((n, k_pad - k_real - 1, hw), jnp.float32)
    patches = jnp.concatenate([patches, ones, zeros], axis=1)   # [N, Kp, HW]
    if hw_pad != hw:
        patches = jnp.pad(patches, ((0, 0), (0, 0), (0, hw_pad - hw)))
    return patches.astype(jnp.bfloat16)


def pneumonia_ensemble_forward(x_nchw, params, *, hw_tile=256, f_tile=2176):
    """x_nchw: [N, C, H, W] float32 (PyTorch layout). Returns [N, 1] float32.

    hw_tile: spatial positions per grid step (rounded to a multiple of 128).
             256 keeps the per-step working set (~8 MiB) within every
             generation's default scoped-VMEM budget; sweep up on v5e/v6e
             (together with vmem_limit_bytes) if desired.
    f_tile : concatenated-feature columns per grid step (must divide 4352).
    """
    n, c, h, w = x_nchw.shape
    hw = h * w
    k_real = c * 9
    k_pad = _round_up(k_real + 1, 8)             # +1 for the folded-bias row

    hw_tile = _round_up(hw_tile, 128)
    thw = min(hw_tile, _round_up(hw, 128))        # lane-dim tile, mult. of 128
    hw_pad = _round_up(hw, thw)

    patches = _build_patches(x_nchw, k_real, k_pad, hw_pad)   # [N, Kp, HWp] bf16
    w_t, head_w, hb_sum = _pack_params(params, k_real, k_pad)

    f_total = w_t.shape[0]
    tf = f_tile if (f_total % f_tile == 0 and f_tile % 8 == 0) else f_total
    n_f = f_total // tf
    n_t = hw_pad // thw
    inv_hw = 1.0 / float(hw)

    def kernel(p_ref, w_ref, headw_ref, hb_ref, out_ref):
        f_i = pl.program_id(1)
        t_i = pl.program_id(2)

        # Fresh accumulator per image: the output block is revisited across
        # both reduction axes, so it stays resident in VMEM for the sweep.
        @pl.when((f_i == 0) & (t_i == 0))
        def _init():
            out_ref[...] = jnp.zeros_like(out_ref)

        # Fused stem conv on the MXU (bias folded into the ones-row):
        #   [TF, Kp] @ [Kp, THW] -> [TF, THW] f32
        feat = jnp.dot(w_ref[...], p_ref[0],
                       preferred_element_type=jnp.float32)
        feat = jnp.maximum(feat, 0.0)                       # ReLU        (VPU)
        # Head Linear(F,1) + global-average-pool fused into the reduction:
        # per-feature head weight applied on the VPU, then a full reduce —
        # the [HW, F] activation never exists outside this tile.
        contrib = jnp.sum(feat * headw_ref[...])            # scalar, f32 accum
        out_ref[...] += contrib

        @pl.when((f_i == pl.num_programs(1) - 1)
                 & (t_i == pl.num_programs(2) - 1))
        def _finalize():
            # mean over HW, + summed head biases, ensemble average (/3)
            out_ref[...] = (out_ref[...] * inv_hw + hb_ref[0, 0]) / 3.0

    out = pl.pallas_call(
        kernel,
        out_shape=jax.ShapeDtypeStruct((n, 1, 128), jnp.float32),
        grid=(n, n_f, n_t),
        in_specs=[
            # patches: lane-dense [Kp, THW] tile per (image, hw-tile), bf16
            pl.BlockSpec((1, k_pad, thw), lambda b, f, t: (b, 0, t)),
            # concatenated stem weights (+ folded bias column), bf16
            pl.BlockSpec((tf, k_pad), lambda b, f, t: (f, 0)),
            # concatenated head weights, f32
            pl.BlockSpec((tf, 1), lambda b, f, t: (f, 0)),
            # summed head biases: scalar in SMEM
            pl.BlockSpec(memory_space=pltpu.MemorySpace.SMEM),
        ],
        # lane-dense (1,1,128) output block, constant over both reduction axes
        out_specs=pl.BlockSpec((1, 1, 128), lambda b, f, t: (b, 0, 0)),
        compiler_params=pltpu.CompilerParams(
            dimension_semantics=("parallel", "arbitrary", "arbitrary")),
    )(patches, w_t, head_w, hb_sum)

    return out[:, 0, :1]


def reference_forward(x_nchw, params):
    """Pure-JAX f32 reference on the same bf16-quantized packed operands."""
    n, c, h, w = x_nchw.shape
    hw = h * w
    k_real = c * 9
    k_pad = _round_up(k_real + 1, 8)
    patches = _build_patches(x_nchw, k_real, k_pad, hw).astype(jnp.float32)
    w_t, head_w, hb_sum = _pack_params(params, k_real, k_pad)
    feat = jnp.einsum('fk,nkm->nfm', w_t.astype(jnp.float32), patches,
                      precision=lax.Precision.HIGHEST)
    feat = jnp.maximum(feat, 0.0)
    s = jnp.sum(feat * head_w[None], axis=(1, 2))           # [N]
    return ((s / hw + hb_sum[0, 0]) / 3.0).reshape(n, 1)


if __name__ == "__main__":
    key = jax.random.PRNGKey(0)
    kx, kp = jax.random.split(key)

    # Small NCHW input consistent with a 3-channel image model.
    x = jax.random.normal(kx, (2, 3, 16, 16), jnp.float32)
    params = init_params(kp, in_channels=3, ksize=3)

    out = pneumonia_ensemble_forward(x, params)
    out = jax.block_until_ready(out)
    assert out.shape == (2, 1) and out.dtype == jnp.float32

    ref = reference_forward(x, params)
    assert jnp.allclose(out, ref, rtol=1e-2, atol=1e-2), (
        f"kernel/reference mismatch: {out} vs {ref}")

    print("KERNEL_OK")
</pallas_src>

<mosaic_0001>
module attributes {stable_mosaic.version = 11 : i64} {
  func.func @kernel(%arg0: i32, %arg1: i32, %arg2: i32, %arg3: memref<1x32x256xbf16, #tpu.memory_space<vmem>>, %arg4: memref<2176x32xbf16, #tpu.memory_space<vmem>>, %arg5: memref<2176x1xf32, #tpu.memory_space<vmem>>, %arg6: memref<1x1xf32, #tpu.memory_space<smem>>, %arg7: memref<1x1x128xf32, #tpu.memory_space<vmem>>) attributes {dimension_semantics = [#tpu.dimension_semantics<parallel>, #tpu.dimension_semantics<arbitrary>, #tpu.dimension_semantics<arbitrary>], iteration_bounds = array<i64: 2, 2, 1>, scalar_prefetch = 0 : i64, scratch_operands = 0 : i64, tpu.core_type = #tpu.core_type<tc>, window_params = [{transform_indices = @transform_0, window_bounds = array<i64: 1, 32, 256>}, {transform_indices = @transform_1, window_bounds = array<i64: 2176, 32>}, {transform_indices = @transform_2, window_bounds = array<i64: 2176, 1>}, {transform_indices = @transform_3, window_bounds = array<i64: 1, 1>}, {transform_indices = @transform_4, window_bounds = array<i64: 1, 1, 128>}]} {
    %c0_i32 = arith.constant 0 : i32
    %0 = arith.cmpi eq, %arg1, %c0_i32 : i32
    %c0_i32_0 = arith.constant 0 : i32
    %1 = arith.cmpi eq, %arg2, %c0_i32_0 : i32
    %2 = arith.andi %0, %1 : i1
    %3 = arith.extui %2 : i1 to i32
    %c0_i32_1 = arith.constant 0 : i32
    %4 = arith.cmpi ne, %3, %c0_i32_1 : i32
    scf.if %4 {
      %cst_18 = arith.constant 0.000000e+00 : f32
      %27 = vector.broadcast %cst_18 : f32 to vector<1x1x128xf32>
      %c0_19 = arith.constant 0 : index
      %c0_20 = arith.constant 0 : index
      %c0_21 = arith.constant 0 : index
      %28 = vector.load %arg7[%c0_19, %c0_20, %c0_21] : memref<1x1x128xf32, #tpu.memory_space<vmem>>, vector<1x1x128xf32>
      tpu.vector_store %arg7[%c0_19, %c0_20, %c0_21], %27 {strides = array<i32>} : memref<1x1x128xf32, #tpu.memory_space<vmem>>, vector<1x1x128xf32>,
    } else {
    }
    %c0 = arith.constant 0 : index
    %c0_2 = arith.constant 0 : index
    %5 = vector.load %arg4[%c0, %c0_2] : memref<2176x32xbf16, #tpu.memory_space<vmem>>, vector<2176x32xbf16>
    %c0_3 = arith.constant 0 : index
    %c0_4 = arith.constant 0 : index
    %c0_5 = arith.constant 0 : index
    %6 = vector.load %arg3[%c0_3, %c0_4, %c0_5] : memref<1x32x256xbf16, #tpu.memory_space<vmem>>, vector<1x32x256xbf16>
    %7 = vector.shape_cast %6 : vector<1x32x256xbf16> to vector<32x256xbf16>
    %cst = arith.constant dense<0.000000e+00> : vector<2176x256xf32>
    %8 = tpu.matmul %5, %7, %cst {dimension_numbers = #tpu.dot_dimension_numbers<[1], [0], [0], [1], [0, 0, 1, 1], [], []>} : vector<2176x32xbf16>, vector<32x256xbf16>, vector<2176x256xf32> -> vector<2176x256xf32>
    %cst_6 = arith.constant 0.000000e+00 : f32
    %9 = vector.broadcast %cst_6 : f32 to vector<2176x256xf32>
    %10 = arith.maximumf %8, %9 : vector<2176x256xf32>
    %c0_7 = arith.constant 0 : index
    %c0_8 = arith.constant 0 : index
    %11 = vector.load %arg5[%c0_7, %c0_8] : memref<2176x1xf32, #tpu.memory_space<vmem>>, vector<2176x1xf32>
    %12 = vector.broadcast %11 : vector<2176x1xf32> to vector<2176x256xf32>
    %13 = arith.mulf %10, %12 : vector<2176x256xf32>
    %14 = vector.shape_cast %13 : vector<2176x256xf32> to vector<1x2176x256xf32>
    %cst_9 = arith.constant dense<0.000000e+00> : vector<1xf32>
    %15 = vector.multi_reduction <add>, %14, %cst_9 [1, 2] : vector<1x2176x256xf32> to vector<1xf32>
    %16 = vector.shape_cast %15 : vector<1xf32> to vector<1x1x1xf32>
    %17 = vector.extract %16[0, 0, 0] : f32 from vector<1x1x1xf32>
    %c0_10 = arith.constant 0 : index
    %c0_11 = arith.constant 0 : index
    %c0_12 = arith.constant 0 : index
    %18 = vector.load %arg7[%c0_10, %c0_11, %c0_12] : memref<1x1x128xf32, #tpu.memory_space<vmem>>, vector<1x1x128xf32>
    %19 = vector.broadcast %17 : f32 to vector<1x1x128xf32>
    %20 = arith.addf %18, %19 : vector<1x1x128xf32>
    %c0_13 = arith.constant 0 : index
    %c0_14 = arith.constant 0 : index
    %c0_15 = arith.constant 0 : index
    %21 = vector.load %arg7[%c0_13, %c0_14, %c0_15] : memref<1x1x128xf32, #tpu.memory_space<vmem>>, vector<1x1x128xf32>
    tpu.vector_store %arg7[%c0_13, %c0_14, %c0_15], %20 {strides = array<i32>} : memref<1x1x128xf32, #tpu.memory_space<vmem>>, vector<1x1x128xf32>,
    %c1_i32 = arith.constant 1 : i32
    %22 = arith.cmpi eq, %arg1, %c1_i32 : i32
    %c0_i32_16 = arith.constant 0 : i32
    %23 = arith.cmpi eq, %arg2, %c0_i32_16 : i32
    %24 = arith.andi %22, %23 : i1
    %25 = arith.extui %24 : i1 to i32
    %c0_i32_17 = arith.constant 0 : i32
    %26 = arith.cmpi ne, %25, %c0_i32_17 : i32
    scf.if %26 {
      %c0_18 = arith.constant 0 : index
      %c0_19 = arith.constant 0 : index
      %c0_20 = arith.constant 0 : index
      %27 = vector.load %arg7[%c0_18, %c0_19, %c0_20] : memref<1x1x128xf32, #tpu.memory_space<vmem>>, vector<1x1x128xf32>
      %cst_21 = arith.constant 3.906250e-03 : f32
      %28 = vector.broadcast %cst_21 : f32 to vector<1x1x128xf32>
      %29 = arith.mulf %27, %28 : vector<1x1x128xf32>
      %c0_22 = arith.constant 0 : index
      %c0_23 = arith.constant 0 : index
      %30 = memref.load %arg6[%c0_22, %c0_23] : memref<1x1xf32, #tpu.memory_space<smem>>
      %31 = vector.broadcast %30 : f32 to vector<1x1x128xf32>
      %32 = arith.addf %29, %31 : vector<1x1x128xf32>
      %cst_24 = arith.constant 3.000000e+00 : f32
      %33 = vector.broadcast %cst_24 : f32 to vector<1x1x128xf32>
      %34 = arith.divf %32, %33 : vector<1x1x128xf32>
      %c0_25 = arith.constant 0 : index
      %c0_26 = arith.constant 0 : index
      %c0_27 = arith.constant 0 : index
      %35 = vector.load %arg7[%c0_25, %c0_26, %c0_27] : memref<1x1x128xf32, #tpu.memory_space<vmem>>, vector<1x1x128xf32>
      tpu.vector_store %arg7[%c0_25, %c0_26, %c0_27], %34 {strides = array<i32>} : memref<1x1x128xf32, #tpu.memory_space<vmem>>, vector<1x1x128xf32>,
    } else {
    }
    return
  }
  func.func @transform_0(%arg0: i32, %arg1: i32, %arg2: i32) -> (i32, i32, i32) {
    %c0_i32 = arith.constant 0 : i32
    %c0_i32_0 = arith.constant 0 : i32
    return %arg0, %c0_i32, %arg2 : i32, i32, i32
  }
  func.func @transform_1(%arg0: i32, %arg1: i32, %arg2: i32) -> (i32, i32) {
    %c0_i32 = arith.constant 0 : i32
    %c0_i32_0 = arith.constant 0 : i32
    return %arg1, %c0_i32 : i32, i32
  }
  func.func @transform_2(%arg0: i32, %arg1: i32, %arg2: i32) -> (i32, i32) {
    %c0_i32 = arith.constant 0 : i32
    %c0_i32_0 = arith.constant 0 : i32
    return %arg1, %c0_i32 : i32, i32
  }
  func.func @transform_3(%arg0: i32, %arg1: i32, %arg2: i32) -> (i32, i32) {
    %c0_i32 = arith.constant 0 : i32
    %c0_i32_0 = arith.constant 0 : i32
    %c0_i32_1 = arith.constant 0 : i32
    return %c0_i32, %c0_i32_0 : i32, i32
  }
  func.func @transform_4(%arg0: i32, %arg1: i32, %arg2: i32) -> (i32, i32, i32) {
    %c0_i32 = arith.constant 0 : i32
    %c0_i32_0 = arith.constant 0 : i32
    %c0_i32_1 = arith.constant 0 : i32
    return %arg0, %c0_i32, %c0_i32_0 : i32, i32, i32
  }
}

</mosaic_0001>

<llo_original>
// kernel: tpu_custom_call.1
$region0: #{tpu_custom_call.1}
  #allocation0 [shape = 'u32[]', space=smem, size = 0x4, offset = 0x4, fixed_abs, tag = 'smem constant byte address 0x4 - core index']
  #allocation1 [shape = 'u32[144,128]{1,0:T(1,128)}', space=vmem, size = 0x12000, scoped, tag = 'internal scratch']
  #allocation2 [shape = 'f32[1,1]{1,0:T(1,128)S(6)}', space=smem, size = 0x200, scoped, tag = 'scoped memory for tpu_custom_call.1']
  %s0 = inlined_call_operand.vmem [shape: bf16[2,32,256], index: 0, kind: input, shape index: {}]
  %s1 = inlined_call_operand.vmem [shape: bf16[4352,32], index: 1, kind: input, shape index: {}]
  %s2 = inlined_call_operand.vmem [shape: f32[4352,1], index: 2, kind: input, shape index: {}]
  %s3 = inlined_call_operand.<no memory space> [shape: f32[1,1], index: 3, kind: input, shape index: {}]
  %s4 = inlined_call_operand.hbm [shape: f32[2,1,128], index: 4, kind: output, shape index: {}]
  %s5 = sld [smem:[#allocation0]]
  $region57: #{tpu_custom_call.1} parent=0
    _
  %s7 = ssub.s32 1, %s5
  %s8 = scalar_select 0, %s7, %s5
  %9 = sst [smem:[#allocation2]] %s3
  $region1: #{tpu_custom_call.1} parent=0
    #allocation3 [shape = 'u8[1024]{0}', space=vmem, size = 0x400, scoped, tag = 'output window, operand 0']
    #allocation4 [shape = 's32[2]{0}', space=sflag, size = 0x8, scoped, tag = 'scoped memory for tpu_custom_call.1']
    %10 = vsyncpa [#allocation4], 0
    %s11 = scalar_lea.sflag [#allocation4], 1
    %12 = vsyncpa %s11, 0
    loop: start=0, step=1, limit=6
    $region2: #{tpu_custom_call.1} parent=1 // loop_pre_header
      _
    $region3: #{tpu_custom_call.1} parent=1 // loop_header
      %s14 = sphi 0, %s18
      %p15 = scmp.ge.s32.totalorder %s14, 6
      %s21 = sphi 0, %s40
      %s22 = sphi 0, %s36
      %s23 = sphi 0, %s32
      %s24 = sphi 0, %s21
      %s25 = sphi 0, %s22
      %s26 = sphi 0, %s23
      %s27 = sphi 0, %s24
      %s28 = sphi 0, %s25
      %s29 = sphi 0, %s26
      %s45 = sphi 0, %s47
      %s48 = sphi 0, %s45
      %s49 = sphi 0, %s48
      %s65 = sphi 0, %s49
      %s71 = sphi 0, %s73
      %s74 = sphi 0, %s71
      %s75 = sphi 0, %s74
      %s91 = sphi 0, %s75
      %s97 = sphi 0, %s99
      %s100 = sphi 0, %s97
      %s101 = sphi 0, %s100
      %s117 = sphi 0, %s101
      %s121 = sphi 0, %s121
      %s123 = sphi 0, %s121
      %s124 = sphi 0, %s123
      %s138 = sphi 0, %s124
      %s144 = sphi 0, %s146
      %s147 = sphi 0, %s144
      %s148 = sphi 0, %s147
      %s164 = sphi 0, %s148
    $region4: #{tpu_custom_call.1} parent=1 // loop_header_branch
      %17 = sbr.rel (%p15) target = $region8
    $region5: #{tpu_custom_call.1} parent=1 // loop_body
      %s19 = ssub.s32 %s14, 1
      %s20 = ssub.s32 %s14, 2
      %s30 = sadd.s32 1, %s23
      %p31 = scmp.ge.s32.totalorder %s30, 1
      %s32 = scalar_select %p31, 0, %s30
      %s33 = sadd.s32 1, %s22
      %s34 = scalar_select %p31, %s33, %s22
      %p35 = scmp.ge.s32.totalorder %s34, 2
      %s36 = scalar_select %p35, 0, %s34
      %s37 = sadd.s32 1, %s21
      %s38 = scalar_select %p35, %s37, %s21
      %p39 = scmp.ge.s32.totalorder %s38, 2
      %s40 = scalar_select %p39, 0, %s38
      %s41 = ssub.s32 %s21, %s40
      %s42 = ssub.s32 %s23, %s32
      %s43 = sor.u32 %s41, %s42
      %p44 = scmp.eq.s32.totalorder %s43, 0
      %s46 = sadd.s32 %s45, 1
      %s47 = scalar_select %p44, %s45, %s46
      %p50 = pneg %p44
      %p51 = scmp.eq.s32.totalorder %s14, 3
      %p52 = por %p50, %p51
      %p53 = scmp.ne.s32.totalorder %s45, %s48
      %p54 = scmp.eq.s32.totalorder %s14, 0
      %p55 = por %p53, %p54
      %p56 = scmp.ne.s32.totalorder %s45, %s48
      %p57 = scmp.eq.s32.totalorder %s19, 3
      %p58 = por %p56, %p57
      %p59 = scmp.ne.s32.totalorder %s48, %s49
      %p60 = scmp.eq.s32.totalorder %s19, 0
      %p61 = por %p59, %p60
      %p62 = scmp.ne.s32.totalorder %s48, %s49
      %p63 = scmp.eq.s32.totalorder %s20, 3
      %p64 = por %p62, %p63
      %p66 = scmp.ne.s32.totalorder %s49, %s65
      %p67 = scmp.eq.s32.totalorder %s20, 0
      %p68 = por %p66, %p67
      %s69 = ssub.s32 %s22, %s36
      %p70 = scmp.eq.s32.totalorder %s69, 0
      %s72 = sadd.s32 %s71, 1
      %s73 = scalar_select %p70, %s71, %s72
      %p76 = pneg %p70
      %p77 = scmp.eq.s32.totalorder %s14, 3
      %p78 = por %p76, %p77
      %p79 = scmp.ne.s32.totalorder %s71, %s74
      %p80 = scmp.eq.s32.totalorder %s14, 0
      %p81 = por %p79, %p80
      %p82 = scmp.ne.s32.totalorder %s71, %s74
      %p83 = scmp.eq.s32.totalorder %s19, 3
      %p84 = por %p82, %p83
      %p85 = scmp.ne.s32.totalorder %s74, %s75
      %p86 = scmp.eq.s32.totalorder %s19, 0
      %p87 = por %p85, %p86
      %p88 = scmp.ne.s32.totalorder %s74, %s75
      %p89 = scmp.eq.s32.totalorder %s20, 3
      %p90 = por %p88, %p89
      %p92 = scmp.ne.s32.totalorder %s75, %s91
      %p93 = scmp.eq.s32.totalorder %s20, 0
      %p94 = por %p92, %p93
      %s95 = ssub.s32 %s22, %s36
      %p96 = scmp.eq.s32.totalorder %s95, 0
      %s98 = sadd.s32 %s97, 1
      %s99 = scalar_select %p96, %s97, %s98
      %p102 = pneg %p96
      %p103 = scmp.eq.s32.totalorder %s14, 3
      %p104 = por %p102, %p103
      %p105 = scmp.ne.s32.totalorder %s97, %s100
      %p106 = scmp.eq.s32.totalorder %s14, 0
      %p107 = por %p105, %p106
      %p108 = scmp.ne.s32.totalorder %s97, %s100
      %p109 = scmp.eq.s32.totalorder %s19, 3
      %p110 = por %p108, %p109
      %p111 = scmp.ne.s32.totalorder %s100, %s101
      %p112 = scmp.eq.s32.totalorder %s19, 0
      %p113 = por %p111, %p112
      %p114 = scmp.ne.s32.totalorder %s100, %s101
      %p115 = scmp.eq.s32.totalorder %s20, 3
      %p116 = por %p114, %p115
      %p118 = scmp.ne.s32.totalorder %s101, %s117
      %p119 = scmp.eq.s32.totalorder %s20, 0
      %p120 = por %p118, %p119
      %s122 = sadd.s32 %s121, 1
      %p125 = scmp.eq.s32.totalorder %s14, 3
      %p126 = scmp.ne.s32.totalorder %s121, %s123
      %p127 = scmp.eq.s32.totalorder %s14, 0
      %p128 = por %p126, %p127
      %p129 = scmp.ne.s32.totalorder %s121, %s123
      %p130 = scmp.eq.s32.totalorder %s19, 3
      %p131 = por %p129, %p130
      %p132 = scmp.ne.s32.totalorder %s123, %s124
      %p133 = scmp.eq.s32.totalorder %s19, 0
      %p134 = por %p132, %p133
      %p135 = scmp.ne.s32.totalorder %s123, %s124
      %p136 = scmp.eq.s32.totalorder %s20, 3
      %p137 = por %p135, %p136
      %p139 = scmp.ne.s32.totalorder %s124, %s138
      %p140 = scmp.eq.s32.totalorder %s20, 0
      %p141 = por %p139, %p140
      %s142 = ssub.s32 %s21, %s40
      %p143 = scmp.eq.s32.totalorder %s142, 0
      %s145 = sadd.s32 %s144, 1
      %s146 = scalar_select %p143, %s144, %s145
      %p149 = pneg %p143
      %p150 = scmp.eq.s32.totalorder %s14, 3
      %p151 = por %p149, %p150
      %p152 = scmp.ne.s32.totalorder %s144, %s147
      %p153 = scmp.eq.s32.totalorder %s14, 0
      %p154 = por %p152, %p153
      %p155 = scmp.ne.s32.totalorder %s144, %s147
      %p156 = scmp.eq.s32.totalorder %s19, 3
      %p157 = por %p155, %p156
      %p158 = scmp.ne.s32.totalorder %s147, %s148
      %p159 = scmp.eq.s32.totalorder %s19, 0
      %p160 = por %p158, %p159
      %p161 = scmp.ne.s32.totalorder %s147, %s148
      %p162 = scmp.eq.s32.totalorder %s20, 3
      %p163 = por %p161, %p162
      %p165 = scmp.ne.s32.totalorder %s148, %s164
      %p166 = scmp.eq.s32.totalorder %s20, 0
      %p167 = por %p165, %p166
      %p168 = scmp.le.s32.totalorder 1, %s14
      %p169 = scmp.lt.s32.totalorder %s14, 5
      %p170 = pnand %p168, %p169
      %p171 = pneg %p170
      // Predicated region
      $region9: #{tpu_custom_call.1} parent=5 // pred_check
        _
      $region10: #{tpu_custom_call.1} parent=5 // pred_check_branch
        %173 = sbr.rel (%p170) target = $region12
      $region11: #{tpu_custom_call.1} parent=5 // pred_region
        %s174 = ssub.s32 %s14, 1
        // Predicated region
        $region13: #{tpu_custom_call.1} parent=11 // pred_check
          %p175 = pneg %p134
        $region14: #{tpu_custom_call.1} parent=11 // pred_check_branch
          %177 = sbr.rel (%p175) target = $region16
        $region15: #{tpu_custom_call.1} parent=11 // pred_region
          _
        $region16: #{tpu_custom_call.1} parent=11 // pred_fallthru
          _
      $region12: #{tpu_custom_call.1} parent=5 // pred_fallthru
        _
      %p178 = scmp.lt.s32.totalorder %s14, 4
      // Predicated region
      $region17: #{tpu_custom_call.1} parent=5 // pred_check
        %p179 = pneg %p178
      $region18: #{tpu_custom_call.1} parent=5 // pred_check_branch
        %181 = sbr.rel (%p179) target = $region20
      $region19: #{tpu_custom_call.1} parent=5 // pred_region
        // Predicated region
        $region21: #{tpu_custom_call.1} parent=19 // pred_check
          %p182 = pneg %p55
        $region22: #{tpu_custom_call.1} parent=19 // pred_check_branch
          %184 = sbr.rel (%p182) target = $region24
        $region23: #{tpu_custom_call.1} parent=19 // pred_region
          %s185 = smul.u32 2, %s23
          %p186 = scmp.lt.s32.totalorder %s21, 1
          %s187 = scalar_select %p186, %s21, 1
          %p188 = scmp.lt.s32.totalorder %s185, 1
          %s189 = scalar_select %p188, %s185, 1
          %s190 = smul.addr %s187, 8
          %s191 = sadd.s32 %s189, %s190
          %s192 = smul.addr %s191, 4
          %s193 = scalar_lea.vmem %s0, %s192
          %s194 = smul.u32 2, %s23
        $region24: #{tpu_custom_call.1} parent=19 // pred_fallthru
          _
        // Predicated region
        $region25: #{tpu_custom_call.1} parent=19 // pred_check
          %p195 = pneg %p81
        $region26: #{tpu_custom_call.1} parent=19 // pred_check_branch
          %197 = sbr.rel (%p195) target = $region28
        $region27: #{tpu_custom_call.1} parent=19 // pred_region
          %s198 = smul.u32 272, %s22
          %p199 = scmp.lt.s32.totalorder %s198, 543
          %s200 = scalar_select %p199, %s198, 543
          %s201 = smul.addr %s200, 4
          %s202 = scalar_lea.vmem %s1, %s201
          %s203 = smul.u32 272, %s22
        $region28: #{tpu_custom_call.1} parent=19 // pred_fallthru
          _
        // Predicated region
        $region29: #{tpu_custom_call.1} parent=19 // pred_check
          %p204 = pneg %p107
        $region30: #{tpu_custom_call.1} parent=19 // pred_check_branch
          %206 = sbr.rel (%p204) target = $region32
        $region31: #{tpu_custom_call.1} parent=19 // pred_region
          %s207 = smul.u32 272, %s22
          %p208 = scmp.lt.s32.totalorder %s207, 543
          %s209 = scalar_select %p208, %s207, 543
          %s210 = smul.addr %s209, 8
          %s211 = scalar_lea.vmem %s2, %s210
          %s212 = smul.u32 272, %s22
        $region32: #{tpu_custom_call.1} parent=19 // pred_fallthru
          _
      $region20: #{tpu_custom_call.1} parent=5 // pred_fallthru
        _
      %p213 = scmp.le.s32.totalorder 1, %s14
      %p214 = scmp.lt.s32.totalorder %s14, 5
      %p215 = pnand %p213, %p214
      %p216 = pneg %p215
      // Predicated region
      $region33: #{tpu_custom_call.1} parent=5 // pred_check
        _
      $region34: #{tpu_custom_call.1} parent=5 // pred_check_branch
        %218 = sbr.rel (%p215) target = $region36
      $region35: #{tpu_custom_call.1} parent=5 // pred_region
        %s219 = ssub.s32 %s14, 1
        %s220 = smul.u32 2, %s26
        %p221 = scmp.lt.s32.totalorder %s24, 1
        %s222 = scalar_select %p221, %s24, 1
        %p223 = scmp.lt.s32.totalorder %s220, 1
        %s224 = scalar_select %p223, %s220, 1
        %s225 = smul.addr %s222, 8
        %s226 = sadd.s32 %s224, %s225
        %s227 = smul.addr %s226, 4
        %s228 = scalar_lea.vmem %s0, %s227
        %p229 = pneg %p61
        %p230 = pneg %p58
        %s231 = smul.u32 272, %s25
        %p232 = scmp.lt.s32.totalorder %s231, 543
        %s233 = scalar_select %p232, %s231, 543
        %s234 = smul.addr %s233, 4
        %s235 = scalar_lea.vmem %s1, %s234
        %p236 = pneg %p87
        %p237 = pneg %p84
        %s238 = smul.u32 272, %s25
        %p239 = scmp.lt.s32.totalorder %s238, 543
        %s240 = scalar_select %p239, %s238, 543
        %s241 = smul.addr %s240, 8
        %s242 = scalar_lea.vmem %s2, %s241
        %p243 = pneg %p113
        %p244 = pneg %p110
        %p245 = pneg %p134
        %p246 = pneg %p131
        %p247 = pneg %p160
        %p248 = pneg %p157
        %s249 = sand.u32 %s147, 1
        %s250 = scalar_lea.sflag [#allocation4], %s249
        %s251 = sand.u32 %s147, 1
        %s252 = scalar_lea.vmem [#allocation3], %s251
        %s253 = smul.u32 2, %s26
        %p254 = scmp.lt.s32.totalorder %s24, 1
        %s255 = scalar_select %p254, %s24, 1
        %p256 = scmp.lt.s32.totalorder %s253, 1
        %s257 = scalar_select %p256, %s253, 1
        %s258 = smul.addr %s255, 8
        %s259 = sadd.s32 %s257, %s258
        %s260 = smul.addr %s259, 4
        %s261 = scalar_lea.vmem %s0, %s260
        %s262 = smul.u32 2, %s26
        %s263 = smul.u32 272, %s25
        %p264 = scmp.lt.s32.totalorder %s263, 543
        %s265 = scalar_select %p264, %s263, 543
        %s266 = smul.addr %s265, 4
        %s267 = scalar_lea.vmem %s1, %s266
        %s268 = smul.u32 272, %s25
        %s269 = smul.u32 272, %s25
        %p270 = scmp.lt.s32.totalorder %s269, 543
        %s271 = scalar_select %p270, %s269, 543
        %s272 = smul.addr %s271, 8
        %s273 = scalar_lea.vmem %s2, %s272
        %s274 = smul.u32 272, %s25
        %p276 = scmp.eq.s32.totalorder %s25, 0
        %p277 = scmp.eq.s32.totalorder %s26, 0
        %p278 = pnand %p276, %p277
        %p279 = pneg %p278
        // Predicated region
        $region37: #{tpu_custom_call.1} parent=35 // pred_check
          _
        $region38: #{tpu_custom_call.1} parent=35 // pred_check_branch
          %281 = sbr.rel (%p278) target = $region40
        $region39: #{tpu_custom_call.1} parent=35 // pred_region
          %282 = vst [vmem:[%s252] sm:$0x1] 0.0
        $region40: #{tpu_custom_call.1} parent=35 // pred_fallthru
          _
        %v283 = vld [vmem:[%s267] sm:$0xf]
        %v284 = vld [vmem:[%s267 + $0x4] sm:$0xf]
        %v285 = vld [vmem:[%s267 + $0x8] sm:$0xf]
        %v286 = vld [vmem:[%s267 + $0xc] sm:$0xf]
        %v287 = vld [vmem:[%s267 + $0x10] sm:$0xf]
        %v288 = vld [vmem:[%s267 + $0x14] sm:$0xf]
        %v289 = vld [vmem:[%s267 + $0x18] sm:$0xf]
        %v290 = vld [vmem:[%s267 + $0x1c] sm:$0xf]
        %v291 = vld [vmem:[%s267 + $0x20] sm:$0xf]
        %v292 = vld [vmem:[%s267 + $0x24] sm:$0xf]
        %v293 = vld [vmem:[%s267 + $0x28] sm:$0xf]
        %v294 = vld [vmem:[%s267 + $0x2c] sm:$0xf]
        %v295 = vld [vmem:[%s267 + $0x30] sm:$0xf]
        %v296 = vld [vmem:[%s267 + $0x34] sm:$0xf]
        %v297 = vld [vmem:[%s267 + $0x38] sm:$0xf]
        %v298 = vld [vmem:[%s267 + $0x3c] sm:$0xf]
        %v299 = vld [vmem:[%s267 + $0x40] sm:$0xf]
        %v300 = vld [vmem:[%s267 + $0x44] sm:$0xf]
        %v301 = vld [vmem:[%s267 + $0x48] sm:$0xf]
        %v302 = vld [vmem:[%s267 + $0x4c] sm:$0xf]
        %v303 = vld [vmem:[%s267 + $0x50] sm:$0xf]
        %v304 = vld [vmem:[%s267 + $0x54] sm:$0xf]
        %v305 = vld [vmem:[%s267 + $0x58] sm:$0xf]
        %v306 = vld [vmem:[%s267 + $0x5c] sm:$0xf]
        %v307 = vld [vmem:[%s267 + $0x60] sm:$0xf]
        %v308 = vld [vmem:[%s267 + $0x64] sm:$0xf]
        %v309 = vld [vmem:[%s267 + $0x68] sm:$0xf]
        %v310 = vld [vmem:[%s267 + $0x6c] sm:$0xf]
        %v311 = vld [vmem:[%s267 + $0x70] sm:$0xf]
        %v312 = vld [vmem:[%s267 + $0x74] sm:$0xf]
        %v313 = vld [vmem:[%s267 + $0x78] sm:$0xf]
        %v314 = vld [vmem:[%s267 + $0x7c] sm:$0xf]
        %v315 = vld [vmem:[%s267 + $0x80] sm:$0xf]
        %v316 = vld [vmem:[%s267 + $0x84] sm:$0xf]
        %v317 = vld [vmem:[%s267 + $0x88] sm:$0xf]
        %v318 = vld [vmem:[%s267 + $0x8c] sm:$0xf]
        %v319 = vld [vmem:[%s267 + $0x90] sm:$0xf]
        %v320 = vld [vmem:[%s267 + $0x94] sm:$0xf]
        %v321 = vld [vmem:[%s267 + $0x98] sm:$0xf]
        %v322 = vld [vmem:[%s267 + $0x9c] sm:$0xf]
        %v323 = vld [vmem:[%s267 + $0xa0] sm:$0xf]
        %v324 = vld [vmem:[%s267 + $0xa4] sm:$0xf]
        %v325 = vld [vmem:[%s267 + $0xa8] sm:$0xf]
        %v326 = vld [vmem:[%s267 + $0xac] sm:$0xf]
        %v327 = vld [vmem:[%s267 + $0xb0] sm:$0xf]
        %v328 = vld [vmem:[%s267 + $0xb4] sm:$0xf]
        %v329 = vld [vmem:[%s267 + $0xb8] sm:$0xf]
        %v330 = vld [vmem:[%s267 + $0xbc] sm:$0xf]
        %v331 = vld [vmem:[%s267 + $0xc0] sm:$0xf]
        %v332 = vld [vmem:[%s267 + $0xc4] sm:$0xf]
        %v333 = vld [vmem:[%s267 + $0xc8] sm:$0xf]
        %v334 = vld [vmem:[%s267 + $0xcc] sm:$0xf]
        %v335 = vld [vmem:[%s267 + $0xd0] sm:$0xf]
        %v336 = vld [vmem:[%s267 + $0xd4] sm:$0xf]
        %v337 = vld [vmem:[%s267 + $0xd8] sm:$0xf]
        %v338 = vld [vmem:[%s267 + $0xdc] sm:$0xf]
        %v339 = vld [vmem:[%s267 + $0xe0] sm:$0xf]
        %v340 = vld [vmem:[%s267 + $0xe4] sm:$0xf]
        %v341 = vld [vmem:[%s267 + $0xe8] sm:$0xf]
        %v342 = vld [vmem:[%s267 + $0xec] sm:$0xf]
        %v343 = vld [vmem:[%s267 + $0xf0] sm:$0xf]
        %v344 = vld [vmem:[%s267 + $0xf4] sm:$0xf]
        %v345 = vld [vmem:[%s267 + $0xf8] sm:$0xf]
        %v346 = vld [vmem:[%s267 + $0xfc] sm:$0xf]
        %v347 = vld [vmem:[%s267 + $0x100] sm:$0xf]
        %v348 = vld [vmem:[%s267 + $0x104] sm:$0xf]
        %v349 = vld [vmem:[%s267 + $0x108] sm:$0xf]
        %v350 = vld [vmem:[%s267 + $0x10c] sm:$0xf]
        %v351 = vld [vmem:[%s267 + $0x110] sm:$0xf]
        %v352 = vld [vmem:[%s267 + $0x114] sm:$0xf]
        %v353 = vld [vmem:[%s267 + $0x118] sm:$0xf]
        %v354 = vld [vmem:[%s267 + $0x11c] sm:$0xf]
        %v355 = vld [vmem:[%s267 + $0x120] sm:$0xf]
        %v356 = vld [vmem:[%s267 + $0x124] sm:$0xf]
        %v357 = vld [vmem:[%s267 + $0x128] sm:$0xf]
        %v358 = vld [vmem:[%s267 + $0x12c] sm:$0xf]
        %v359 = vld [vmem:[%s267 + $0x130] sm:$0xf]
        %v360 = vld [vmem:[%s267 + $0x134] sm:$0xf]
        %v361 = vld [vmem:[%s267 + $0x138] sm:$0xf]
        %v362 = vld [vmem:[%s267 + $0x13c] sm:$0xf]
        %v363 = vld [vmem:[%s267 + $0x140] sm:$0xf]
        %v364 = vld [vmem:[%s267 + $0x144] sm:$0xf]
        %v365 = vld [vmem:[%s267 + $0x148] sm:$0xf]
        %v366 = vld [vmem:[%s267 + $0x14c] sm:$0xf]
        %v367 = vld [vmem:[%s267 + $0x150] sm:$0xf]
        %v368 = vld [vmem:[%s267 + $0x154] sm:$0xf]
        %v369 = vld [vmem:[%s267 + $0x158] sm:$0xf]
        %v370 = vld [vmem:[%s267 + $0x15c] sm:$0xf]
        %v371 = vld [vmem:[%s267 + $0x160] sm:$0xf]
        %v372 = vld [vmem:[%s267 + $0x164] sm:$0xf]
        %v373 = vld [vmem:[%s267 + $0x168] sm:$0xf]
        %v374 = vld [vmem:[%s267 + $0x16c] sm:$0xf]
        %v375 = vld [vmem:[%s267 + $0x170] sm:$0xf]
        %v376 = vld [vmem:[%s267 + $0x174] sm:$0xf]
        %v377 = vld [vmem:[%s267 + $0x178] sm:$0xf]
        %v378 = vld [vmem:[%s267 + $0x17c] sm:$0xf]
        %v379 = vld [vmem:[%s267 + $0x180] sm:$0xf]
        %v380 = vld [vmem:[%s267 + $0x184] sm:$0xf]
        %v381 = vld [vmem:[%s267 + $0x188] sm:$0xf]
        %v382 = vld [vmem:[%s267 + $0x18c] sm:$0xf]
        %v383 = vld [vmem:[%s267 + $0x190] sm:$0xf]
        %v384 = vld [vmem:[%s267 + $0x194] sm:$0xf]
        %v385 = vld [vmem:[%s267 + $0x198] sm:$0xf]
        %v386 = vld [vmem:[%s267 + $0x19c] sm:$0xf]
        %v387 = vld [vmem:[%s267 + $0x1a0] sm:$0xf]
        %v388 = vld [vmem:[%s267 + $0x1a4] sm:$0xf]
        %v389 = vld [vmem:[%s267 + $0x1a8] sm:$0xf]
        %v390 = vld [vmem:[%s267 + $0x1ac] sm:$0xf]
        %v391 = vld [vmem:[%s267 + $0x1b0] sm:$0xf]
        %v392 = vld [vmem:[%s267 + $0x1b4] sm:$0xf]
        %v393 = vld [vmem:[%s267 + $0x1b8] sm:$0xf]
        %v394 = vld [vmem:[%s267 + $0x1bc] sm:$0xf]
        %v395 = vld [vmem:[%s267 + $0x1c0] sm:$0xf]
        %v396 = vld [vmem:[%s267 + $0x1c4] sm:$0xf]
        %v397 = vld [vmem:[%s267 + $0x1c8] sm:$0xf]
        %v398 = vld [vmem:[%s267 + $0x1cc] sm:$0xf]
        %v399 = vld [vmem:[%s267 + $0x1d0] sm:$0xf]
        %v400 = vld [vmem:[%s267 + $0x1d4] sm:$0xf]
        %v401 = vld [vmem:[%s267 + $0x1d8] sm:$0xf]
        %v402 = vld [vmem:[%s267 + $0x1dc] sm:$0xf]
        %v403 = vld [vmem:[%s267 + $0x1e0] sm:$0xf]
        %v404 = vld [vmem:[%s267 + $0x1e4] sm:$0xf]
        %v405 = vld [vmem:[%s267 + $0x1e8] sm:$0xf]
        %v406 = vld [vmem:[%s267 + $0x1ec] sm:$0xf]
        %v407 = vld [vmem:[%s267 + $0x1f0] sm:$0xf]
        %v408 = vld [vmem:[%s267 + $0x1f4] sm:$0xf]
        %v409 = vld [vmem:[%s267 + $0x1f8] sm:$0xf]
        %v410 = vld [vmem:[%s267 + $0x1fc] sm:$0xf]
        %v411 = vld [vmem:[%s267 + $0x200] sm:$0xf]
        %v412 = vld [vmem:[%s267 + $0x204] sm:$0xf]
        %v413 = vld [vmem:[%s267 + $0x208] sm:$0xf]
        %v414 = vld [vmem:[%s267 + $0x20c] sm:$0xf]
        %v415 = vld [vmem:[%s267 + $0x210] sm:$0xf]
        %v416 = vld [vmem:[%s267 + $0x214] sm:$0xf]
        %v417 = vld [vmem:[%s267 + $0x218] sm:$0xf]
        %v418 = vld [vmem:[%s267 + $0x21c] sm:$0xf]
        %v419 = vld [vmem:[%s267 + $0x220] sm:$0xf]
        %v420 = vld [vmem:[%s267 + $0x224] sm:$0xf]
        %v421 = vld [vmem:[%s267 + $0x228] sm:$0xf]
        %v422 = vld [vmem:[%s267 + $0x22c] sm:$0xf]
        %v423 = vld [vmem:[%s267 + $0x230] sm:$0xf]
        %v424 = vld [vmem:[%s267 + $0x234] sm:$0xf]
        %v425 = vld [vmem:[%s267 + $0x238] sm:$0xf]
        %v426 = vld [vmem:[%s267 + $0x23c] sm:$0xf]
        %v427 = vld [vmem:[%s267 + $0x240] sm:$0xf]
        %v428 = vld [vmem:[%s267 + $0x244] sm:$0xf]
        %v429 = vld [vmem:[%s267 + $0x248] sm:$0xf]
        %v430 = vld [vmem:[%s267 + $0x24c] sm:$0xf]
        %v431 = vld [vmem:[%s267 + $0x250] sm:$0xf]
        %v432 = vld [vmem:[%s267 + $0x254] sm:$0xf]
        %v433 = vld [vmem:[%s267 + $0x258] sm:$0xf]
        %v434 = vld [vmem:[%s267 + $0x25c] sm:$0xf]
        %v435 = vld [vmem:[%s267 + $0x260] sm:$0xf]
        %v436 = vld [vmem:[%s267 + $0x264] sm:$0xf]
        %v437 = vld [vmem:[%s267 + $0x268] sm:$0xf]
        %v438 = vld [vmem:[%s267 + $0x26c] sm:$0xf]
        %v439 = vld [vmem:[%s267 + $0x270] sm:$0xf]
        %v440 = vld [vmem:[%s267 + $0x274] sm:$0xf]
        %v441 = vld [vmem:[%s267 + $0x278] sm:$0xf]
        %v442 = vld [vmem:[%s267 + $0x27c] sm:$0xf]
        %v443 = vld [vmem:[%s267 + $0x280] sm:$0xf]
        %v444 = vld [vmem:[%s267 + $0x284] sm:$0xf]
        %v445 = vld [vmem:[%s267 + $0x288] sm:$0xf]
        %v446 = vld [vmem:[%s267 + $0x28c] sm:$0xf]
        %v447 = vld [vmem:[%s267 + $0x290] sm:$0xf]
        %v448 = vld [vmem:[%s267 + $0x294] sm:$0xf]
        %v449 = vld [vmem:[%s267 + $0x298] sm:$0xf]
        %v450 = vld [vmem:[%s267 + $0x29c] sm:$0xf]
        %v451 = vld [vmem:[%s267 + $0x2a0] sm:$0xf]
        %v452 = vld [vmem:[%s267 + $0x2a4] sm:$0xf]
        %v453 = vld [vmem:[%s267 + $0x2a8] sm:$0xf]
        %v454 = vld [vmem:[%s267 + $0x2ac] sm:$0xf]
        %v455 = vld [vmem:[%s267 + $0x2b0] sm:$0xf]
        %v456 = vld [vmem:[%s267 + $0x2b4] sm:$0xf]
        %v457 = vld [vmem:[%s267 + $0x2b8] sm:$0xf]
        %v458 = vld [vmem:[%s267 + $0x2bc] sm:$0xf]
        %v459 = vld [vmem:[%s267 + $0x2c0] sm:$0xf]
        %v460 = vld [vmem:[%s267 + $0x2c4] sm:$0xf]
        %v461 = vld [vmem:[%s267 + $0x2c8] sm:$0xf]
        %v462 = vld [vmem:[%s267 + $0x2cc] sm:$0xf]
        %v463 = vld [vmem:[%s267 + $0x2d0] sm:$0xf]
        %v464 = vld [vmem:[%s267 + $0x2d4] sm:$0xf]
        %v465 = vld [vmem:[%s267 + $0x2d8] sm:$0xf]
        %v466 = vld [vmem:[%s267 + $0x2dc] sm:$0xf]
        %v467 = vld [vmem:[%s267 + $0x2e0] sm:$0xf]
        %v468 = vld [vmem:[%s267 + $0x2e4] sm:$0xf]
        %v469 = vld [vmem:[%s267 + $0x2e8] sm:$0xf]
        %v470 = vld [vmem:[%s267 + $0x2ec] sm:$0xf]
        %v471 = vld [vmem:[%s267 + $0x2f0] sm:$0xf]
        %v472 = vld [vmem:[%s267 + $0x2f4] sm:$0xf]
        %v473 = vld [vmem:[%s267 + $0x2f8] sm:$0xf]
        %v474 = vld [vmem:[%s267 + $0x2fc] sm:$0xf]
        %v475 = vld [vmem:[%s267 + $0x300] sm:$0xf]
        %v476 = vld [vmem:[%s267 + $0x304] sm:$0xf]
        %v477 = vld [vmem:[%s267 + $0x308] sm:$0xf]
        %v478 = vld [vmem:[%s267 + $0x30c] sm:$0xf]
        %v479 = vld [vmem:[%s267 + $0x310] sm:$0xf]
        %v480 = vld [vmem:[%s267 + $0x314] sm:$0xf]
        %v481 = vld [vmem:[%s267 + $0x318] sm:$0xf]
        %v482 = vld [vmem:[%s267 + $0x31c] sm:$0xf]
        %v483 = vld [vmem:[%s267 + $0x320] sm:$0xf]
        %v484 = vld [vmem:[%s267 + $0x324] sm:$0xf]
        %v485 = vld [vmem:[%s267 + $0x328] sm:$0xf]
        %v486 = vld [vmem:[%s267 + $0x32c] sm:$0xf]
        %v487 = vld [vmem:[%s267 + $0x330] sm:$0xf]
        %v488 = vld [vmem:[%s267 + $0x334] sm:$0xf]
        %v489 = vld [vmem:[%s267 + $0x338] sm:$0xf]
        %v490 = vld [vmem:[%s267 + $0x33c] sm:$0xf]
        %v491 = vld [vmem:[%s267 + $0x340] sm:$0xf]
        %v492 = vld [vmem:[%s267 + $0x344] sm:$0xf]
        %v493 = vld [vmem:[%s267 + $0x348] sm:$0xf]
        %v494 = vld [vmem:[%s267 + $0x34c] sm:$0xf]
        %v495 = vld [vmem:[%s267 + $0x350] sm:$0xf]
        %v496 = vld [vmem:[%s267 + $0x354] sm:$0xf]
        %v497 = vld [vmem:[%s267 + $0x358] sm:$0xf]
        %v498 = vld [vmem:[%s267 + $0x35c] sm:$0xf]
        %v499 = vld [vmem:[%s267 + $0x360] sm:$0xf]
        %v500 = vld [vmem:[%s267 + $0x364] sm:$0xf]
        %v501 = vld [vmem:[%s267 + $0x368] sm:$0xf]
        %v502 = vld [vmem:[%s267 + $0x36c] sm:$0xf]
        %v503 = vld [vmem:[%s267 + $0x370] sm:$0xf]
        %v504 = vld [vmem:[%s267 + $0x374] sm:$0xf]
        %v505 = vld [vmem:[%s267 + $0x378] sm:$0xf]
        %v506 = vld [vmem:[%s267 + $0x37c] sm:$0xf]
        %v507 = vld [vmem:[%s267 + $0x380] sm:$0xf]
        %v508 = vld [vmem:[%s267 + $0x384] sm:$0xf]
        %v509 = vld [vmem:[%s267 + $0x388] sm:$0xf]
        %v510 = vld [vmem:[%s267 + $0x38c] sm:$0xf]
        %v511 = vld [vmem:[%s267 + $0x390] sm:$0xf]
        %v512 = vld [vmem:[%s267 + $0x394] sm:$0xf]
        %v513 = vld [vmem:[%s267 + $0x398] sm:$0xf]
        %v514 = vld [vmem:[%s267 + $0x39c] sm:$0xf]
        %v515 = vld [vmem:[%s267 + $0x3a0] sm:$0xf]
        %v516 = vld [vmem:[%s267 + $0x3a4] sm:$0xf]
        %v517 = vld [vmem:[%s267 + $0x3a8] sm:$0xf]
        %v518 = vld [vmem:[%s267 + $0x3ac] sm:$0xf]
        %v519 = vld [vmem:[%s267 + $0x3b0] sm:$0xf]
        %v520 = vld [vmem:[%s267 + $0x3b4] sm:$0xf]
        %v521 = vld [vmem:[%s267 + $0x3b8] sm:$0xf]
        %v522 = vld [vmem:[%s267 + $0x3bc] sm:$0xf]
        %v523 = vld [vmem:[%s267 + $0x3c0] sm:$0xf]
        %v524 = vld [vmem:[%s267 + $0x3c4] sm:$0xf]
        %v525 = vld [vmem:[%s267 + $0x3c8] sm:$0xf]
        %v526 = vld [vmem:[%s267 + $0x3cc] sm:$0xf]
        %v527 = vld [vmem:[%s267 + $0x3d0] sm:$0xf]
        %v528 = vld [vmem:[%s267 + $0x3d4] sm:$0xf]
        %v529 = vld [vmem:[%s267 + $0x3d8] sm:$0xf]
        %v530 = vld [vmem:[%s267 + $0x3dc] sm:$0xf]
        %v531 = vld [vmem:[%s267 + $0x3e0] sm:$0xf]
        %v532 = vld [vmem:[%s267 + $0x3e4] sm:$0xf]
        %v533 = vld [vmem:[%s267 + $0x3e8] sm:$0xf]
        %v534 = vld [vmem:[%s267 + $0x3ec] sm:$0xf]
        %v535 = vld [vmem:[%s267 + $0x3f0] sm:$0xf]
        %v536 = vld [vmem:[%s267 + $0x3f4] sm:$0xf]
        %v537 = vld [vmem:[%s267 + $0x3f8] sm:$0xf]
        %v538 = vld [vmem:[%s267 + $0x3fc] sm:$0xf]
        %v539 = vld [vmem:[%s267 + $0x400] sm:$0xf]
        %v540 = vld [vmem:[%s267 + $0x404] sm:$0xf]
        %v541 = vld [vmem:[%s267 + $0x408] sm:$0xf]
        %v542 = vld [vmem:[%s267 + $0x40c] sm:$0xf]
        %v543 = vld [vmem:[%s267 + $0x410] sm:$0xf]
        %v544 = vld [vmem:[%s267 + $0x414] sm:$0xf]
        %v545 = vld [vmem:[%s267 + $0x418] sm:$0xf]
        %v546 = vld [vmem:[%s267 + $0x41c] sm:$0xf]
        %v547 = vld [vmem:[%s267 + $0x420] sm:$0xf]
        %v548 = vld [vmem:[%s267 + $0x424] sm:$0xf]
        %v549 = vld [vmem:[%s267 + $0x428] sm:$0xf]
        %v550 = vld [vmem:[%s267 + $0x42c] sm:$0xf]
        %v551 = vld [vmem:[%s267 + $0x430] sm:$0xf]
        %v552 = vld [vmem:[%s267 + $0x434] sm:$0xf]
        %v553 = vld [vmem:[%s267 + $0x438] sm:$0xf]
        %v554 = vld [vmem:[%s267 + $0x43c] sm:$0xf]
        %v555 = vld [vmem:[%s261] sm:$0xff]
        %v556 = vld [vmem:[%s261 + $0x8] sm:$0xff]
        %v557 = vld [vmem:[%s261 + $0x10] sm:$0xff]
        %v558 = vld [vmem:[%s261 + $0x18] sm:$0xff]
        %v831 = vunpack.c.l.b16 %v283
        %v832 = vunpack.c.l.b16 %v284
        %v833 = vunpack.c.l.b16 %v285
        %v834 = vunpack.c.l.b16 %v286
        %v835 = vunpack.c.l.b16 %v287
        %v836 = vunpack.c.l.b16 %v288
        %v837 = vunpack.c.l.b16 %v289
        %v838 = vunpack.c.l.b16 %v290
        %v839 = vunpack.c.l.b16 %v291
        %v840 = vunpack.c.l.b16 %v292
        %v841 = vunpack.c.l.b16 %v293
        %v842 = vunpack.c.l.b16 %v294
        %v843 = vunpack.c.l.b16 %v295
        %v844 = vunpack.c.l.b16 %v296
        %v845 = vunpack.c.l.b16 %v297
        %v846 = vunpack.c.l.b16 %v298
        %v847 = vunpack.c.l.b16 %v299
        %v848 = vunpack.c.l.b16 %v300
        %v849 = vunpack.c.l.b16 %v301
        %v850 = vunpack.c.l.b16 %v302
        %v851 = vunpack.c.l.b16 %v303
        %v852 = vunpack.c.l.b16 %v304
        %v853 = vunpack.c.l.b16 %v305
        %v854 = vunpack.c.l.b16 %v306
        %v855 = vunpack.c.l.b16 %v307
        %v856 = vunpack.c.l.b16 %v308
        %v857 = vunpack.c.l.b16 %v309
        %v858 = vunpack.c.l.b16 %v310
        %v859 = vunpack.c.l.b16 %v311
        %v860 = vunpack.c.l.b16 %v312
        %v861 = vunpack.c.l.b16 %v313
        %v862 = vunpack.c.l.b16 %v314
        %v863 = vunpack.c.l.b16 %v315
        %v864 = vunpack.c.l.b16 %v316
        %v865 = vunpack.c.l.b16 %v317
        %v866 = vunpack.c.l.b16 %v318
        %v867 = vunpack.c.l.b16 %v319
        %v868 = vunpack.c.l.b16 %v320
        %v869 = vunpack.c.l.b16 %v321
        %v870 = vunpack.c.l.b16 %v322
        %v871 = vunpack.c.l.b16 %v323
        %v872 = vunpack.c.l.b16 %v324
        %v873 = vunpack.c.l.b16 %v325
        %v874 = vunpack.c.l.b16 %v326
        %v875 = vunpack.c.l.b16 %v327
        %v876 = vunpack.c.l.b16 %v328
        %v877 = vunpack.c.l.b16 %v329
        %v878 = vunpack.c.l.b16 %v330
        %v879 = vunpack.c.l.b16 %v331
        %v880 = vunpack.c.l.b16 %v332
        %v881 = vunpack.c.l.b16 %v333
        %v882 = vunpack.c.l.b16 %v334
        %v883 = vunpack.c.l.b16 %v335
        %v884 = vunpack.c.l.b16 %v336
        %v885 = vunpack.c.l.b16 %v337
        %v886 = vunpack.c.l.b16 %v338
        %v887 = vunpack.c.l.b16 %v339
        %v888 = vunpack.c.l.b16 %v340
        %v889 = vunpack.c.l.b16 %v341
        %v890 = vunpack.c.l.b16 %v342
        %v891 = vunpack.c.l.b16 %v343
        %v892 = vunpack.c.l.b16 %v344
        %v893 = vunpack.c.l.b16 %v345
        %v894 = vunpack.c.l.b16 %v346
        %v895 = vunpack.c.l.b16 %v347
        %v896 = vunpack.c.l.b16 %v348
        %v897 = vunpack.c.l.b16 %v349
        %v898 = vunpack.c.l.b16 %v350
        %v899 = vunpack.c.l.b16 %v351
        %v900 = vunpack.c.l.b16 %v352
        %v901 = vunpack.c.l.b16 %v353
        %v902 = vunpack.c.l.b16 %v354
        %v903 = vunpack.c.l.b16 %v355
        %v904 = vunpack.c.l.b16 %v356
        %v905 = vunpack.c.l.b16 %v357
        %v906 = vunpack.c.l.b16 %v358
        %v907 = vunpack.c.l.b16 %v359
        %v908 = vunpack.c.l.b16 %v360
        %v909 = vunpack.c.l.b16 %v361
        %v910 = vunpack.c.l.b16 %v362
        %v911 = vunpack.c.l.b16 %v363
        %v912 = vunpack.c.l.b16 %v364
        %v913 = vunpack.c.l.b16 %v365
        %v914 = vunpack.c.l.b16 %v366
        %v915 = vunpack.c.l.b16 %v367
        %v916 = vunpack.c.l.b16 %v368
        %v917 = vunpack.c.l.b16 %v369
        %v918 = vunpack.c.l.b16 %v370
        %v919 = vunpack.c.l.b16 %v371
        %v920 = vunpack.c.l.b16 %v372
        %v921 = vunpack.c.l.b16 %v373
        %v922 = vunpack.c.l.b16 %v374
        %v923 = vunpack.c.l.b16 %v375
        %v924 = vunpack.c.l.b16 %v376
        %v925 = vunpack.c.l.b16 %v377
        %v926 = vunpack.c.l.b16 %v378
        %v927 = vunpack.c.l.b16 %v379
        %v928 = vunpack.c.l.b16 %v380
        %v929 = vunpack.c.l.b16 %v381
        %v930 = vunpack.c.l.b16 %v382
        %v931 = vunpack.c.l.b16 %v383
        %v932 = vunpack.c.l.b16 %v384
        %v933 = vunpack.c.l.b16 %v385
        %v934 = vunpack.c.l.b16 %v386
        %v935 = vunpack.c.l.b16 %v387
        %v936 = vunpack.c.l.b16 %v388
        %v937 = vunpack.c.l.b16 %v389
        %v938 = vunpack.c.l.b16 %v390
        %v939 = vunpack.c.l.b16 %v391
        %v940 = vunpack.c.l.b16 %v392
        %v941 = vunpack.c.l.b16 %v393
        %v942 = vunpack.c.l.b16 %v394
        %v943 = vunpack.c.l.b16 %v395
        %v944 = vunpack.c.l.b16 %v396
        %v945 = vunpack.c.l.b16 %v397
        %v946 = vunpack.c.l.b16 %v398
        %v947 = vunpack.c.l.b16 %v399
        %v948 = vunpack.c.l.b16 %v400
        %v949 = vunpack.c.l.b16 %v401
        %v950 = vunpack.c.l.b16 %v402
        %v951 = vunpack.c.l.b16 %v403
        %v952 = vunpack.c.l.b16 %v404
        %v953 = vunpack.c.l.b16 %v405
        %v954 = vunpack.c.l.b16 %v406
        %v955 = vunpack.c.l.b16 %v407
        %v956 = vunpack.c.l.b16 %v408
        %v957 = vunpack.c.l.b16 %v409
        %v958 = vunpack.c.l.b16 %v410
        %v959 = vunpack.c.l.b16 %v411
        %v960 = vunpack.c.l.b16 %v412
        %v961 = vunpack.c.l.b16 %v413
        %v962 = vunpack.c.l.b16 %v414
        %v963 = vunpack.c.l.b16 %v415
        %v964 = vunpack.c.l.b16 %v416
        %v965 = vunpack.c.l.b16 %v417
        %v966 = vunpack.c.l.b16 %v418
        %v967 = vunpack.c.l.b16 %v419
        %v968 = vunpack.c.l.b16 %v420
        %v969 = vunpack.c.l.b16 %v421
        %v970 = vunpack.c.l.b16 %v422
        %v971 = vunpack.c.l.b16 %v423
        %v972 = vunpack.c.l.b16 %v424
        %v973 = vunpack.c.l.b16 %v425
        %v974 = vunpack.c.l.b16 %v426
        %v975 = vunpack.c.l.b16 %v427
        %v976 = vunpack.c.l.b16 %v428
        %v977 = vunpack.c.l.b16 %v429
        %v978 = vunpack.c.l.b16 %v430
        %v979 = vunpack.c.l.b16 %v431
        %v980 = vunpack.c.l.b16 %v432
        %v981 = vunpack.c.l.b16 %v433
        %v982 = vunpack.c.l.b16 %v434
        %v983 = vunpack.c.l.b16 %v435
        %v984 = vunpack.c.l.b16 %v436
        %v985 = vunpack.c.l.b16 %v437
        %v986 = vunpack.c.l.b16 %v438
        %v987 = vunpack.c.l.b16 %v439
        %v988 = vunpack.c.l.b16 %v440
        %v989 = vunpack.c.l.b16 %v441
        %v990 = vunpack.c.l.b16 %v442
        %v991 = vunpack.c.l.b16 %v443
        %v992 = vunpack.c.l.b16 %v444
        %v993 = vunpack.c.l.b16 %v445
        %v994 = vunpack.c.l.b16 %v446
        %v995 = vunpack.c.l.b16 %v447
        %v996 = vunpack.c.l.b16 %v448
        %v997 = vunpack.c.l.b16 %v449
        %v998 = vunpack.c.l.b16 %v450
        %v999 = vunpack.c.l.b16 %v451
        %v1000 = vunpack.c.l.b16 %v452
        %v1001 = vunpack.c.l.b16 %v453
        %v1002 = vunpack.c.l.b16 %v454
        %v1003 = vunpack.c.l.b16 %v455
        %v1004 = vunpack.c.l.b16 %v456
        %v1005 = vunpack.c.l.b16 %v457
        %v1006 = vunpack.c.l.b16 %v458
        %v1007 = vunpack.c.l.b16 %v459
        %v1008 = vunpack.c.l.b16 %v460
        %v1009 = vunpack.c.l.b16 %v461
        %v1010 = vunpack.c.l.b16 %v462
        %v1011 = vunpack.c.l.b16 %v463
        %v1012 = vunpack.c.l.b16 %v464
        %v1013 = vunpack.c.l.b16 %v465
        %v1014 = vunpack.c.l.b16 %v466
        %v1015 = vunpack.c.l.b16 %v467
        %v1016 = vunpack.c.l.b16 %v468
        %v1017 = vunpack.c.l.b16 %v469
        %v1018 = vunpack.c.l.b16 %v470
        %v1019 = vunpack.c.l.b16 %v471
        %v1020 = vunpack.c.l.b16 %v472
        %v1021 = vunpack.c.l.b16 %v473
        %v1022 = vunpack.c.l.b16 %v474
        %v1023 = vunpack.c.l.b16 %v475
        %v1024 = vunpack.c.l.b16 %v476
        %v1025 = vunpack.c.l.b16 %v477
        %v1026 = vunpack.c.l.b16 %v478
        %v1027 = vunpack.c.l.b16 %v479
        %v1028 = vunpack.c.l.b16 %v480
        %v1029 = vunpack.c.l.b16 %v481
        %v1030 = vunpack.c.l.b16 %v482
        %v1031 = vunpack.c.l.b16 %v483
        %v1032 = vunpack.c.l.b16 %v484
        %v1033 = vunpack.c.l.b16 %v485
        %v1034 = vunpack.c.l.b16 %v486
        %v1035 = vunpack.c.l.b16 %v487
        %v1036 = vunpack.c.l.b16 %v488
        %v1037 = vunpack.c.l.b16 %v489
        %v1038 = vunpack.c.l.b16 %v490
        %v1039 = vunpack.c.l.b16 %v491
        %v1040 = vunpack.c.l.b16 %v492
        %v1041 = vunpack.c.l.b16 %v493
        %v1042 = vunpack.c.l.b16 %v494
        %v1043 = vunpack.c.l.b16 %v495
        %v1044 = vunpack.c.l.b16 %v496
        %v1045 = vunpack.c.l.b16 %v497
        %v1046 = vunpack.c.l.b16 %v498
        %v1047 = vunpack.c.l.b16 %v499
        %v1048 = vunpack.c.l.b16 %v500
        %v1049 = vunpack.c.l.b16 %v501
        %v1050 = vunpack.c.l.b16 %v502
        %v1051 = vunpack.c.l.b16 %v503
        %v1052 = vunpack.c.l.b16 %v504
        %v1053 = vunpack.c.l.b16 %v505
        %v1054 = vunpack.c.l.b16 %v506
        %v1055 = vunpack.c.l.b16 %v507
        %v1056 = vunpack.c.l.b16 %v508
        %v1057 = vunpack.c.l.b16 %v509
        %v1058 = vunpack.c.l.b16 %v510
        %v1059 = vunpack.c.l.b16 %v511
        %v1060 = vunpack.c.l.b16 %v512
        %v1061 = vunpack.c.l.b16 %v513
        %v1062 = vunpack.c.l.b16 %v514
        %v1063 = vunpack.c.l.b16 %v515
        %v1064 = vunpack.c.l.b16 %v516
        %v1065 = vunpack.c.l.b16 %v517
        %v1066 = vunpack.c.l.b16 %v518
        %v1067 = vunpack.c.l.b16 %v519
        %v1068 = vunpack.c.l.b16 %v520
        %v1069 = vunpack.c.l.b16 %v521
        %v1070 = vunpack.c.l.b16 %v522
        %v1071 = vunpack.c.l.b16 %v523
        %v1072 = vunpack.c.l.b16 %v524
        %v1073 = vunpack.c.l.b16 %v525
        %v1074 = vunpack.c.l.b16 %v526
        %v1075 = vunpack.c.l.b16 %v527
        %v1076 = vunpack.c.l.b16 %v528
        %v1077 = vunpack.c.l.b16 %v529
        %v1078 = vunpack.c.l.b16 %v530
        %v1079 = vunpack.c.l.b16 %v531
        %v1080 = vunpack.c.l.b16 %v532
        %v1081 = vunpack.c.l.b16 %v533
        %v1082 = vunpack.c.l.b16 %v534
        %v1083 = vunpack.c.l.b16 %v535
        %v1084 = vunpack.c.l.b16 %v536
        %v1085 = vunpack.c.l.b16 %v537
        %v1086 = vunpack.c.l.b16 %v538
        %v1087 = vunpack.c.l.b16 %v539
        %v1088 = vunpack.c.l.b16 %v540
        %v1089 = vunpack.c.l.b16 %v541
        %v1090 = vunpack.c.l.b16 %v542
        %v1091 = vunpack.c.l.b16 %v543
        %v1092 = vunpack.c.l.b16 %v544
        %v1093 = vunpack.c.l.b16 %v545
        %v1094 = vunpack.c.l.b16 %v546
        %v1095 = vunpack.c.l.b16 %v547
        %v1096 = vunpack.c.l.b16 %v548
        %v1097 = vunpack.c.l.b16 %v549
        %v1098 = vunpack.c.l.b16 %v550
        %v1099 = vunpack.c.l.b16 %v551
        %v1100 = vunpack.c.l.b16 %v552
        %v1101 = vunpack.c.l.b16 %v553
        %v1102 = vunpack.c.l.b16 %v554
        %v1103 = vpack.c.b16 %v832, %v831
        %v1104 = vpack.c.b16 %v834, %v833
        %v1105 = vpack.c.b16 %v836, %v835
        %v1106 = vpack.c.b16 %v838, %v837
        %v1107 = vpack.c.b16 %v840, %v839
        %v1108 = vpack.c.b16 %v842, %v841
        %v1109 = vpack.c.b16 %v844, %v843
        %v1110 = vpack.c.b16 %v846, %v845
        %v1111 = vpack.c.b16 %v848, %v847
        %v1112 = vpack.c.b16 %v850, %v849
        %v1113 = vpack.c.b16 %v852, %v851
        %v1114 = vpack.c.b16 %v854, %v853
        %v1115 = vpack.c.b16 %v856, %v855
        %v1116 = vpack.c.b16 %v858, %v857
        %v1117 = vpack.c.b16 %v860, %v859
        %v1118 = vpack.c.b16 %v862, %v861
        %v1119 = vpack.c.b16 %v864, %v863
        %v1120 = vpack.c.b16 %v866, %v865
        %v1121 = vpack.c.b16 %v868, %v867
        %v1122 = vpack.c.b16 %v870, %v869
        %v1123 = vpack.c.b16 %v872, %v871
        %v1124 = vpack.c.b16 %v874, %v873
        %v1125 = vpack.c.b16 %v876, %v875
        %v1126 = vpack.c.b16 %v878, %v877
        %v1127 = vpack.c.b16 %v880, %v879
        %v1128 = vpack.c.b16 %v882, %v881
        %v1129 = vpack.c.b16 %v884, %v883
        %v1130 = vpack.c.b16 %v886, %v885
        %v1131 = vpack.c.b16 %v888, %v887
        %v1132 = vpack.c.b16 %v890, %v889
        %v1133 = vpack.c.b16 %v892, %v891
        %v1134 = vpack.c.b16 %v894, %v893
        %v1135 = vpack.c.b16 %v896, %v895
        %v1136 = vpack.c.b16 %v898, %v897
        %v1137 = vpack.c.b16 %v900, %v899
        %v1138 = vpack.c.b16 %v902, %v901
        %v1139 = vpack.c.b16 %v904, %v903
        %v1140 = vpack.c.b16 %v906, %v905
        %v1141 = vpack.c.b16 %v908, %v907
        %v1142 = vpack.c.b16 %v910, %v909
        %v1143 = vpack.c.b16 %v912, %v911
        %v1144 = vpack.c.b16 %v914, %v913
        %v1145 = vpack.c.b16 %v916, %v915
        %v1146 = vpack.c.b16 %v918, %v917
        %v1147 = vpack.c.b16 %v920, %v919
        %v1148 = vpack.c.b16 %v922, %v921
        %v1149 = vpack.c.b16 %v924, %v923
        %v1150 = vpack.c.b16 %v926, %v925
        %v1151 = vpack.c.b16 %v928, %v927
        %v1152 = vpack.c.b16 %v930, %v929
        %v1153 = vpack.c.b16 %v932, %v931
        %v1154 = vpack.c.b16 %v934, %v933
        %v1155 = vpack.c.b16 %v936, %v935
        %v1156 = vpack.c.b16 %v938, %v937
        %v1157 = vpack.c.b16 %v940, %v939
        %v1158 = vpack.c.b16 %v942, %v941
        %v1159 = vpack.c.b16 %v944, %v943
        %v1160 = vpack.c.b16 %v946, %v945
        %v1161 = vpack.c.b16 %v948, %v947
        %v1162 = vpack.c.b16 %v950, %v949
        %v1163 = vpack.c.b16 %v952, %v951
        %v1164 = vpack.c.b16 %v954, %v953
        %v1165 = vpack.c.b16 %v956, %v955
        %v1166 = vpack.c.b16 %v958, %v957
        %v1167 = vpack.c.b16 %v960, %v959
        %v1168 = vpack.c.b16 %v962, %v961
        %v1169 = vpack.c.b16 %v964, %v963
        %v1170 = vpack.c.b16 %v966, %v965
        %v1171 = vpack.c.b16 %v968, %v967
        %v1172 = vpack.c.b16 %v970, %v969
        %v1173 = vpack.c.b16 %v972, %v971
        %v1174 = vpack.c.b16 %v974, %v973
        %v1175 = vpack.c.b16 %v976, %v975
        %v1176 = vpack.c.b16 %v978, %v977
        %v1177 = vpack.c.b16 %v980, %v979
        %v1178 = vpack.c.b16 %v982, %v981
        %v1179 = vpack.c.b16 %v984, %v983
        %v1180 = vpack.c.b16 %v986, %v985
        %v1181 = vpack.c.b16 %v988, %v987
        %v1182 = vpack.c.b16 %v990, %v989
        %v1183 = vpack.c.b16 %v992, %v991
        %v1184 = vpack.c.b16 %v994, %v993
        %v1185 = vpack.c.b16 %v996, %v995
        %v1186 = vpack.c.b16 %v998, %v997
        %v1187 = vpack.c.b16 %v1000, %v999
        %v1188 = vpack.c.b16 %v1002, %v1001
        %v1189 = vpack.c.b16 %v1004, %v1003
        %v1190 = vpack.c.b16 %v1006, %v1005
        %v1191 = vpack.c.b16 %v1008, %v1007
        %v1192 = vpack.c.b16 %v1010, %v1009
        %v1193 = vpack.c.b16 %v1012, %v1011
        %v1194 = vpack.c.b16 %v1014, %v1013
        %v1195 = vpack.c.b16 %v1016, %v1015
        %v1196 = vpack.c.b16 %v1018, %v1017
        %v1197 = vpack.c.b16 %v1020, %v1019
        %v1198 = vpack.c.b16 %v1022, %v1021
        %v1199 = vpack.c.b16 %v1024, %v1023
        %v1200 = vpack.c.b16 %v1026, %v1025
        %v1201 = vpack.c.b16 %v1028, %v1027
        %v1202 = vpack.c.b16 %v1030, %v1029
        %v1203 = vpack.c.b16 %v1032, %v1031
        %v1204 = vpack.c.b16 %v1034, %v1033
        %v1205 = vpack.c.b16 %v1036, %v1035
        %v1206 = vpack.c.b16 %v1038, %v1037
        %v1207 = vpack.c.b16 %v1040, %v1039
        %v1208 = vpack.c.b16 %v1042, %v1041
        %v1209 = vpack.c.b16 %v1044, %v1043
        %v1210 = vpack.c.b16 %v1046, %v1045
        %v1211 = vpack.c.b16 %v1048, %v1047
        %v1212 = vpack.c.b16 %v1050, %v1049
        %v1213 = vpack.c.b16 %v1052, %v1051
        %v1214 = vpack.c.b16 %v1054, %v1053
        %v1215 = vpack.c.b16 %v1056, %v1055
        %v1216 = vpack.c.b16 %v1058, %v1057
        %v1217 = vpack.c.b16 %v1060, %v1059
        %v1218 = vpack.c.b16 %v1062, %v1061
        %v1219 = vpack.c.b16 %v1064, %v1063
        %v1220 = vpack.c.b16 %v1066, %v1065
        %v1221 = vpack.c.b16 %v1068, %v1067
        %v1222 = vpack.c.b16 %v1070, %v1069
        %v1223 = vpack.c.b16 %v1072, %v1071
        %v1224 = vpack.c.b16 %v1074, %v1073
        %v1225 = vpack.c.b16 %v1076, %v1075
        %v1226 = vpack.c.b16 %v1078, %v1077
        %v1227 = vpack.c.b16 %v1080, %v1079
        %v1228 = vpack.c.b16 %v1082, %v1081
        %v1229 = vpack.c.b16 %v1084, %v1083
        %v1230 = vpack.c.b16 %v1086, %v1085
        %v1231 = vpack.c.b16 %v1088, %v1087
        %v1232 = vpack.c.b16 %v1090, %v1089
        %v1233 = vpack.c.b16 %v1092, %v1091
        %v1234 = vpack.c.b16 %v1094, %v1093
        %v1235 = vpack.c.b16 %v1096, %v1095
        %v1236 = vpack.c.b16 %v1098, %v1097
        %v1237 = vpack.c.b16 %v1100, %v1099
        %v1238 = vpack.c.b16 %v1102, %v1101
        %v1243 = vunpack.c.l.b16 %v555
        %v1244 = vunpack.c.h.b16 %v555
        %v1245 = vunpack.c.l.b16 %v556
        %v1246 = vunpack.c.h.b16 %v556
        %v1247 = vunpack.c.l.b16 %v557
        %v1248 = vunpack.c.h.b16 %v557
        %v1249 = vunpack.c.l.b16 %v558
        %v1250 = vunpack.c.h.b16 %v558
        %v1251 = vpack.c.b16 %v1245, %v1243
        %v1252 = vpack.c.b16 %v1246, %v1244
        %v1253 = vpack.c.b16 %v1249, %v1247
        %v1254 = vpack.c.b16 %v1250, %v1248
        %vm1259 = vcmask 261120
        %v1261 = vsel %vm1259, %v1103, 0
        %v1264 = vsel %vm1259, %v1104, 0
        %v1267 = vsel %vm1259, %v1105, 0
        %v1270 = vsel %vm1259, %v1106, 0
        %v1273 = vsel %vm1259, %v1107, 0
        %v1276 = vsel %vm1259, %v1108, 0
        %v1279 = vsel %vm1259, %v1109, 0
        %v1282 = vsel %vm1259, %v1110, 0
        %v1285 = vsel %vm1259, %v1111, 0
        %v1288 = vsel %vm1259, %v1112, 0
        %v1291 = vsel %vm1259, %v1113, 0
        %v1294 = vsel %vm1259, %v1114, 0
        %v1297 = vsel %vm1259, %v1115, 0
        %v1300 = vsel %vm1259, %v1116, 0
        %v1303 = vsel %vm1259, %v1117, 0
        %v1306 = vsel %vm1259, %v1118, 0
        %v1309 = vsel %vm1259, %v1119, 0
        %v1312 = vsel %vm1259, %v1120, 0
        %v1315 = vsel %vm1259, %v1121, 0
        %v1318 = vsel %vm1259, %v1122, 0
        %v1321 = vsel %vm1259, %v1123, 0
        %v1324 = vsel %vm1259, %v1124, 0
        %v1327 = vsel %vm1259, %v1125, 0
        %v1330 = vsel %vm1259, %v1126, 0
        %v1333 = vsel %vm1259, %v1127, 0
        %v1336 = vsel %vm1259, %v1128, 0
        %v1339 = vsel %vm1259, %v1129, 0
        %v1342 = vsel %vm1259, %v1130, 0
        %v1345 = vsel %vm1259, %v1131, 0
        %v1348 = vsel %vm1259, %v1132, 0
        %v1351 = vsel %vm1259, %v1133, 0
        %v1354 = vsel %vm1259, %v1134, 0
        %v1357 = vsel %vm1259, %v1135, 0
        %v1360 = vsel %vm1259, %v1136, 0
        %v1363 = vsel %vm1259, %v1137, 0
        %v1366 = vsel %vm1259, %v1138, 0
        %v1369 = vsel %vm1259, %v1139, 0
        %v1372 = vsel %vm1259, %v1140, 0
        %v1375 = vsel %vm1259, %v1141, 0
        %v1378 = vsel %vm1259, %v1142, 0
        %v1381 = vsel %vm1259, %v1143, 0
        %v1384 = vsel %vm1259, %v1144, 0
        %v1387 = vsel %vm1259, %v1145, 0
        %v1390 = vsel %vm1259, %v1146, 0
        %v1393 = vsel %vm1259, %v1147, 0
        %v1396 = vsel %vm1259, %v1148, 0
        %v1399 = vsel %vm1259, %v1149, 0
        %v1402 = vsel %vm1259, %v1150, 0
        %v1405 = vsel %vm1259, %v1151, 0
        %v1408 = vsel %vm1259, %v1152, 0
        %v1411 = vsel %vm1259, %v1153, 0
        %v1414 = vsel %vm1259, %v1154, 0
        %v1417 = vsel %vm1259, %v1155, 0
        %v1420 = vsel %vm1259, %v1156, 0
        %v1423 = vsel %vm1259, %v1157, 0
        %v1426 = vsel %vm1259, %v1158, 0
        %v1429 = vsel %vm1259, %v1159, 0
        %v1432 = vsel %vm1259, %v1160, 0
        %v1435 = vsel %vm1259, %v1161, 0
        %v1438 = vsel %vm1259, %v1162, 0
        %v1441 = vsel %vm1259, %v1163, 0
        %v1444 = vsel %vm1259, %v1164, 0
        %v1447 = vsel %vm1259, %v1165, 0
        %v1450 = vsel %vm1259, %v1166, 0
        %v1453 = vsel %vm1259, %v1167, 0
        %v1456 = vsel %vm1259, %v1168, 0
        %v1459 = vsel %vm1259, %v1169, 0
        %v1462 = vsel %vm1259, %v1170, 0
        %v1465 = vsel %vm1259, %v1171, 0
        %v1468 = vsel %vm1259, %v1172, 0
        %v1471 = vsel %vm1259, %v1173, 0
        %v1474 = vsel %vm1259, %v1174, 0
        %v1477 = vsel %vm1259, %v1175, 0
        %v1480 = vsel %vm1259, %v1176, 0
        %v1483 = vsel %vm1259, %v1177, 0
        %v1486 = vsel %vm1259, %v1178, 0
        %v1489 = vsel %vm1259, %v1179, 0
        %v1492 = vsel %vm1259, %v1180, 0
        %v1495 = vsel %vm1259, %v1181, 0
        %v1498 = vsel %vm1259, %v1182, 0
        %v1501 = vsel %vm1259, %v1183, 0
        %v1504 = vsel %vm1259, %v1184, 0
        %v1507 = vsel %vm1259, %v1185, 0
        %v1510 = vsel %vm1259, %v1186, 0
        %v1513 = vsel %vm1259, %v1187, 0
        %v1516 = vsel %vm1259, %v1188, 0
        %v1519 = vsel %vm1259, %v1189, 0
        %v1522 = vsel %vm1259, %v1190, 0
        %v1525 = vsel %vm1259, %v1191, 0
        %v1528 = vsel %vm1259, %v1192, 0
        %v1531 = vsel %vm1259, %v1193, 0
        %v1534 = vsel %vm1259, %v1194, 0
        %v1537 = vsel %vm1259, %v1195, 0
        %v1540 = vsel %vm1259, %v1196, 0
        %v1543 = vsel %vm1259, %v1197, 0
        %v1546 = vsel %vm1259, %v1198, 0
        %v1549 = vsel %vm1259, %v1199, 0
        %v1552 = vsel %vm1259, %v1200, 0
        %v1555 = vsel %vm1259, %v1201, 0
        %v1558 = vsel %vm1259, %v1202, 0
        %v1561 = vsel %vm1259, %v1203, 0
        %v1564 = vsel %vm1259, %v1204, 0
        %v1567 = vsel %vm1259, %v1205, 0
        %v1570 = vsel %vm1259, %v1206, 0
        %v1573 = vsel %vm1259, %v1207, 0
        %v1576 = vsel %vm1259, %v1208, 0
        %v1579 = vsel %vm1259, %v1209, 0
        %v1582 = vsel %vm1259, %v1210, 0
        %v1585 = vsel %vm1259, %v1211, 0
        %v1588 = vsel %vm1259, %v1212, 0
        %v1591 = vsel %vm1259, %v1213, 0
        %v1594 = vsel %vm1259, %v1214, 0
        %v1597 = vsel %vm1259, %v1215, 0
        %v1600 = vsel %vm1259, %v1216, 0
        %v1603 = vsel %vm1259, %v1217, 0
        %v1606 = vsel %vm1259, %v1218, 0
        %v1609 = vsel %vm1259, %v1219, 0
        %v1612 = vsel %vm1259, %v1220, 0
        %v1615 = vsel %vm1259, %v1221, 0
        %v1618 = vsel %vm1259, %v1222, 0
        %v1621 = vsel %vm1259, %v1223, 0
        %v1624 = vsel %vm1259, %v1224, 0
        %v1627 = vsel %vm1259, %v1225, 0
        %v1630 = vsel %vm1259, %v1226, 0
        %v1633 = vsel %vm1259, %v1227, 0
        %v1636 = vsel %vm1259, %v1228, 0
        %v1639 = vsel %vm1259, %v1229, 0
        %v1642 = vsel %vm1259, %v1230, 0
        %v1645 = vsel %vm1259, %v1231, 0
        %v1648 = vsel %vm1259, %v1232, 0
        %v1651 = vsel %vm1259, %v1233, 0
        %v1654 = vsel %vm1259, %v1234, 0
        %v1657 = vsel %vm1259, %v1235, 0
        %v1660 = vsel %vm1259, %v1236, 0
        %v1663 = vsel %vm1259, %v1237, 0
        %v1666 = vsel %vm1259, %v1238, 0
        %1668 = vmatprep.subr.bf16.mxu0 0
        %1669 = vmatpush1.bf16.msra.mxu0 0
        %1670 = vmatprep.subr.bf16.mxu0 0
        %1671 = vmatpush1.bf16.msra.mxu0 0
        %1672 = vmatprep.subr.bf16.mxu0 0
        %1673 = vmatpush1.bf16.msra.mxu0 0
        %1674 = vmatprep.subr.bf16.mxu0 0
        %1675 = vmatpush1.bf16.msra.mxu0 0
        %1676 = vmatprep.subr.bf16.mxu0 0
        %1677 = vmatpush1.bf16.msra.mxu0 0
        %1678 = vmatprep.subr.bf16.mxu0 0
        %1679 = vmatpush1.bf16.msra.mxu0 0
        %1680 = vmatprep.subr.bf16.mxu0 %v1254
        %1681 = vmatpush1.bf16.msra.mxu0 %v1253
        %1682 = vmatprep.subr.bf16.mxu0 %v1252
        %1683 = vmatpush1.bf16.msra.mxu0 %v1251
        %1684 = vmatprep.subr.bf16.mxu0 0
        %1685 = vmatpush2.bf16.msra.mxu0 0
        %1686 = vmatprep.subr.bf16.mxu0 0
        %1687 = vmatpush2.bf16.msra.mxu0 0
        %1688 = vmatprep.subr.bf16.mxu0 0
        %1689 = vmatpush2.bf16.msra.mxu0 0
        %1690 = vmatprep.subr.bf16.mxu0 0
        %1691 = vmatpush2.bf16.msra.mxu0 0
        %1692 = vmatprep.subr.bf16.mxu0 0
        %1693 = vmatpush2.bf16.msra.mxu0 0
        %1694 = vmatprep.subr.bf16.mxu0 0
        %1695 = vmatpush2.bf16.msra.mxu0 0
        %1696 = vmatprep.subr.bf16.mxu0 0
        %1697 = vmatpush2.bf16.msra.mxu0 0
        %1698 = vmatprep.subr.bf16.mxu0 0
        %1699 = vmatpush2.bf16.msra.mxu0 0
        %1700 = vmatprep.mubr.bf16.mxu0 0
        %1701 = vmatmul.mubr.bf16.gmra.mxu0 %v1261
        %v1702 = vpop.f32.mrf.mxu0
        %v1703 = vadd.f32 0.0, %v1702
        %v1704 = vpop.f32.mrf.mxu0
        %v1705 = vadd.f32 0.0, %v1704
        %v1706 = vpop.f32.mrf.mxu0
        %v1707 = vadd.f32 0.0, %v1706
        %v1708 = vpop.f32.mrf.mxu0
        %v1709 = vadd.f32 0.0, %v1708
        %1710 = vmatprep.mubr.bf16.mxu0 0
        %1711 = vmatmul.mubr.bf16.gmra.mxu0 %v1264
        %v1712 = vpop.f32.mrf.mxu0
        %v1713 = vadd.f32 0.0, %v1712
        %v1714 = vpop.f32.mrf.mxu0
        %v1715 = vadd.f32 0.0, %v1714
        %v1716 = vpop.f32.mrf.mxu0
        %v1717 = vadd.f32 0.0, %v1716
        %v1718 = vpop.f32.mrf.mxu0
        %v1719 = vadd.f32 0.0, %v1718
        %1720 = vmatprep.mubr.bf16.mxu0 0
        %1721 = vmatmul.mubr.bf16.gmra.mxu0 %v1267
        %v1722 = vpop.f32.mrf.mxu0
        %v1723 = vadd.f32 0.0, %v1722
        %v1724 = vpop.f32.mrf.mxu0
        %v1725 = vadd.f32 0.0, %v1724
        %v1726 = vpop.f32.mrf.mxu0
        %v1727 = vadd.f32 0.0, %v1726
        %v1728 = vpop.f32.mrf.mxu0
        %v1729 = vadd.f32 0.0, %v1728
        %1730 = vmatprep.mubr.bf16.mxu0 0
        %1731 = vmatmul.mubr.bf16.gmra.mxu0 %v1270
        %v1732 = vpop.f32.mrf.mxu0
        %v1733 = vadd.f32 0.0, %v1732
        %v1734 = vpop.f32.mrf.mxu0
        %v1735 = vadd.f32 0.0, %v1734
        %v1736 = vpop.f32.mrf.mxu0
        %v1737 = vadd.f32 0.0, %v1736
        %v1738 = vpop.f32.mrf.mxu0
        %v1739 = vadd.f32 0.0, %v1738
        %1740 = vmatprep.mubr.bf16.mxu0 0
        %1741 = vmatmul.mubr.bf16.gmra.mxu0 %v1273
        %v1742 = vpop.f32.mrf.mxu0
        %v1743 = vadd.f32 0.0, %v1742
        %v1744 = vpop.f32.mrf.mxu0
        %v1745 = vadd.f32 0.0, %v1744
        %v1746 = vpop.f32.mrf.mxu0
        %v1747 = vadd.f32 0.0, %v1746
        %v1748 = vpop.f32.mrf.mxu0
        %v1749 = vadd.f32 0.0, %v1748
        %1750 = vmatprep.mubr.bf16.mxu0 0
        %1751 = vmatmul.mubr.bf16.gmra.mxu0 %v1276
        %v1752 = vpop.f32.mrf.mxu0
        %v1753 = vadd.f32 0.0, %v1752
        %v1754 = vpop.f32.mrf.mxu0
        %v1755 = vadd.f32 0.0, %v1754
        %v1756 = vpop.f32.mrf.mxu0
        %v1757 = vadd.f32 0.0, %v1756
        %v1758 = vpop.f32.mrf.mxu0
        %v1759 = vadd.f32 0.0, %v1758
        %1760 = vmatprep.mubr.bf16.mxu0 0
        %1761 = vmatmul.mubr.bf16.gmra.mxu0 %v1279
        %v1762 = vpop.f32.mrf.mxu0
        %v1763 = vadd.f32 0.0, %v1762
        %v1764 = vpop.f32.mrf.mxu0
        %v1765 = vadd.f32 0.0, %v1764
        %v1766 = vpop.f32.mrf.mxu0
        %v1767 = vadd.f32 0.0, %v1766
        %v1768 = vpop.f32.mrf.mxu0
        %v1769 = vadd.f32 0.0, %v1768
        %1770 = vmatprep.mubr.bf16.mxu0 0
        %1771 = vmatmul.mubr.bf16.gmra.mxu0 %v1282
        %v1772 = vpop.f32.mrf.mxu0
        %v1773 = vadd.f32 0.0, %v1772
        %v1774 = vpop.f32.mrf.mxu0
        %v1775 = vadd.f32 0.0, %v1774
        %v1776 = vpop.f32.mrf.mxu0
        %v1777 = vadd.f32 0.0, %v1776
        %v1778 = vpop.f32.mrf.mxu0
        %v1779 = vadd.f32 0.0, %v1778
        %1780 = vmatprep.mubr.bf16.mxu0 0
        %1781 = vmatmul.mubr.bf16.gmra.mxu0 %v1285
        %v1782 = vpop.f32.mrf.mxu0
        %v1783 = vadd.f32 0.0, %v1782
        %v1784 = vpop.f32.mrf.mxu0
        %v1785 = vadd.f32 0.0, %v1784
        %v1786 = vpop.f32.mrf.mxu0
        %v1787 = vadd.f32 0.0, %v1786
        %v1788 = vpop.f32.mrf.mxu0
        %v1789 = vadd.f32 0.0, %v1788
        %1790 = vmatprep.mubr.bf16.mxu0 0
        %1791 = vmatmul.mubr.bf16.gmra.mxu0 %v1288
        %v1792 = vpop.f32.mrf.mxu0
        %v1793 = vadd.f32 0.0, %v1792
        %v1794 = vpop.f32.mrf.mxu0
        %v1795 = vadd.f32 0.0, %v1794
        %v1796 = vpop.f32.mrf.mxu0
        %v1797 = vadd.f32 0.0, %v1796
        %v1798 = vpop.f32.mrf.mxu0
        %v1799 = vadd.f32 0.0, %v1798
        %1800 = vmatprep.mubr.bf16.mxu0 0
        %1801 = vmatmul.mubr.bf16.gmra.mxu0 %v1291
        %v1802 = vpop.f32.mrf.mxu0
        %v1803 = vadd.f32 0.0, %v1802
        %v1804 = vpop.f32.mrf.mxu0
        %v1805 = vadd.f32 0.0, %v1804
        %v1806 = vpop.f32.mrf.mxu0
        %v1807 = vadd.f32 0.0, %v1806
        %v1808 = vpop.f32.mrf.mxu0
        %v1809 = vadd.f32 0.0, %v1808
        %1810 = vmatprep.mubr.bf16.mxu0 0
        %1811 = vmatmul.mubr.bf16.gmra.mxu0 %v1294
        %v1812 = vpop.f32.mrf.mxu0
        %v1813 = vadd.f32 0.0, %v1812
        %v1814 = vpop.f32.mrf.mxu0
        %v1815 = vadd.f32 0.0, %v1814
        %v1816 = vpop.f32.mrf.mxu0
        %v1817 = vadd.f32 0.0, %v1816
        %v1818 = vpop.f32.mrf.mxu0
        %v1819 = vadd.f32 0.0, %v1818
        %1820 = vmatprep.mubr.bf16.mxu0 0
        %1821 = vmatmul.mubr.bf16.gmra.mxu0 %v1297
        %v1822 = vpop.f32.mrf.mxu0
        %v1823 = vadd.f32 0.0, %v1822
        %v1824 = vpop.f32.mrf.mxu0
        %v1825 = vadd.f32 0.0, %v1824
        %v1826 = vpop.f32.mrf.mxu0
        %v1827 = vadd.f32 0.0, %v1826
        %v1828 = vpop.f32.mrf.mxu0
        %v1829 = vadd.f32 0.0, %v1828
        %1830 = vmatprep.mubr.bf16.mxu0 0
        %1831 = vmatmul.mubr.bf16.gmra.mxu0 %v1300
        %v1832 = vpop.f32.mrf.mxu0
        %v1833 = vadd.f32 0.0, %v1832
        %v1834 = vpop.f32.mrf.mxu0
        %v1835 = vadd.f32 0.0, %v1834
        %v1836 = vpop.f32.mrf.mxu0
        %v1837 = vadd.f32 0.0, %v1836
        %v1838 = vpop.f32.mrf.mxu0
        %v1839 = vadd.f32 0.0, %v1838
        %1840 = vmatprep.mubr.bf16.mxu0 0
        %1841 = vmatmul.mubr.bf16.gmra.mxu0 %v1303
        %v1842 = vpop.f32.mrf.mxu0
        %v1843 = vadd.f32 0.0, %v1842
        %v1844 = vpop.f32.mrf.mxu0
        %v1845 = vadd.f32 0.0, %v1844
        %v1846 = vpop.f32.mrf.mxu0
        %v1847 = vadd.f32 0.0, %v1846
        %v1848 = vpop.f32.mrf.mxu0
        %v1849 = vadd.f32 0.0, %v1848
        %1850 = vmatprep.mubr.bf16.mxu0 0
        %1851 = vmatmul.mubr.bf16.gmra.mxu0 %v1306
        %v1852 = vpop.f32.mrf.mxu0
        %v1853 = vadd.f32 0.0, %v1852
        %v1854 = vpop.f32.mrf.mxu0
        %v1855 = vadd.f32 0.0, %v1854
        %v1856 = vpop.f32.mrf.mxu0
        %v1857 = vadd.f32 0.0, %v1856
        %v1858 = vpop.f32.mrf.mxu0
        %v1859 = vadd.f32 0.0, %v1858
        %1860 = vmatprep.mubr.bf16.mxu0 0
        %1861 = vmatmul.mubr.bf16.gmra.mxu0 %v1309
        %v1862 = vpop.f32.mrf.mxu0
        %v1863 = vadd.f32 0.0, %v1862
        %v1864 = vpop.f32.mrf.mxu0
        %v1865 = vadd.f32 0.0, %v1864
        %v1866 = vpop.f32.mrf.mxu0
        %v1867 = vadd.f32 0.0, %v1866
        %v1868 = vpop.f32.mrf.mxu0
        %v1869 = vadd.f32 0.0, %v1868
        %1870 = vmatprep.mubr.bf16.mxu0 0
        %1871 = vmatmul.mubr.bf16.gmra.mxu0 %v1312
        %v1872 = vpop.f32.mrf.mxu0
        %v1873 = vadd.f32 0.0, %v1872
        %v1874 = vpop.f32.mrf.mxu0
        %v1875 = vadd.f32 0.0, %v1874
        %v1876 = vpop.f32.mrf.mxu0
        %v1877 = vadd.f32 0.0, %v1876
        %v1878 = vpop.f32.mrf.mxu0
        %v1879 = vadd.f32 0.0, %v1878
        %1880 = vmatprep.mubr.bf16.mxu0 0
        %1881 = vmatmul.mubr.bf16.gmra.mxu0 %v1315
        %v1882 = vpop.f32.mrf.mxu0
        %v1883 = vadd.f32 0.0, %v1882
        %v1884 = vpop.f32.mrf.mxu0
        %v1885 = vadd.f32 0.0, %v1884
        %v1886 = vpop.f32.mrf.mxu0
        %v1887 = vadd.f32 0.0, %v1886
        %v1888 = vpop.f32.mrf.mxu0
        %v1889 = vadd.f32 0.0, %v1888
        %1890 = vmatprep.mubr.bf16.mxu0 0
        %1891 = vmatmul.mubr.bf16.gmra.mxu0 %v1318
        %v1892 = vpop.f32.mrf.mxu0
        %v1893 = vadd.f32 0.0, %v1892
        %v1894 = vpop.f32.mrf.mxu0
        %v1895 = vadd.f32 0.0, %v1894
        %v1896 = vpop.f32.mrf.mxu0
        %v1897 = vadd.f32 0.0, %v1896
        %v1898 = vpop.f32.mrf.mxu0
        %v1899 = vadd.f32 0.0, %v1898
        %1900 = vmatprep.mubr.bf16.mxu0 0
        %1901 = vmatmul.mubr.bf16.gmra.mxu0 %v1321
        %v1902 = vpop.f32.mrf.mxu0
        %v1903 = vadd.f32 0.0, %v1902
        %v1904 = vpop.f32.mrf.mxu0
        %v1905 = vadd.f32 0.0, %v1904
        %v1906 = vpop.f32.mrf.mxu0
        %v1907 = vadd.f32 0.0, %v1906
        %v1908 = vpop.f32.mrf.mxu0
        %v1909 = vadd.f32 0.0, %v1908
        %1910 = vmatprep.mubr.bf16.mxu0 0
        %1911 = vmatmul.mubr.bf16.gmra.mxu0 %v1324
        %v1912 = vpop.f32.mrf.mxu0
        %v1913 = vadd.f32 0.0, %v1912
        %v1914 = vpop.f32.mrf.mxu0
        %v1915 = vadd.f32 0.0, %v1914
        %v1916 = vpop.f32.mrf.mxu0
        %v1917 = vadd.f32 0.0, %v1916
        %v1918 = vpop.f32.mrf.mxu0
        %v1919 = vadd.f32 0.0, %v1918
        %1920 = vmatprep.mubr.bf16.mxu0 0
        %1921 = vmatmul.mubr.bf16.gmra.mxu0 %v1327
        %v1922 = vpop.f32.mrf.mxu0
        %v1923 = vadd.f32 0.0, %v1922
        %v1924 = vpop.f32.mrf.mxu0
        %v1925 = vadd.f32 0.0, %v1924
        %v1926 = vpop.f32.mrf.mxu0
        %v1927 = vadd.f32 0.0, %v1926
        %v1928 = vpop.f32.mrf.mxu0
        %v1929 = vadd.f32 0.0, %v1928
        %1930 = vmatprep.mubr.bf16.mxu0 0
        %1931 = vmatmul.mubr.bf16.gmra.mxu0 %v1330
        %v1932 = vpop.f32.mrf.mxu0
        %v1933 = vadd.f32 0.0, %v1932
        %v1934 = vpop.f32.mrf.mxu0
        %v1935 = vadd.f32 0.0, %v1934
        %v1936 = vpop.f32.mrf.mxu0
        %v1937 = vadd.f32 0.0, %v1936
        %v1938 = vpop.f32.mrf.mxu0
        %v1939 = vadd.f32 0.0, %v1938
        %1940 = vmatprep.mubr.bf16.mxu0 0
        %1941 = vmatmul.mubr.bf16.gmra.mxu0 %v1333
        %v1942 = vpop.f32.mrf.mxu0
        %v1943 = vadd.f32 0.0, %v1942
        %v1944 = vpop.f32.mrf.mxu0
        %v1945 = vadd.f32 0.0, %v1944
        %v1946 = vpop.f32.mrf.mxu0
        %v1947 = vadd.f32 0.0, %v1946
        %v1948 = vpop.f32.mrf.mxu0
        %v1949 = vadd.f32 0.0, %v1948
        %1950 = vmatprep.mubr.bf16.mxu0 0
        %1951 = vmatmul.mubr.bf16.gmra.mxu0 %v1336
        %v1952 = vpop.f32.mrf.mxu0
        %v1953 = vadd.f32 0.0, %v1952
        %v1954 = vpop.f32.mrf.mxu0
        %v1955 = vadd.f32 0.0, %v1954
        %v1956 = vpop.f32.mrf.mxu0
        %v1957 = vadd.f32 0.0, %v1956
        %v1958 = vpop.f32.mrf.mxu0
        %v1959 = vadd.f32 0.0, %v1958
        %1960 = vmatprep.mubr.bf16.mxu0 0
        %1961 = vmatmul.mubr.bf16.gmra.mxu0 %v1339
        %v1962 = vpop.f32.mrf.mxu0
        %v1963 = vadd.f32 0.0, %v1962
        %v1964 = vpop.f32.mrf.mxu0
        %v1965 = vadd.f32 0.0, %v1964
        %v1966 = vpop.f32.mrf.mxu0
        %v1967 = vadd.f32 0.0, %v1966
        %v1968 = vpop.f32.mrf.mxu0
        %v1969 = vadd.f32 0.0, %v1968
        %1970 = vmatprep.mubr.bf16.mxu0 0
        %1971 = vmatmul.mubr.bf16.gmra.mxu0 %v1342
        %v1972 = vpop.f32.mrf.mxu0
        %v1973 = vadd.f32 0.0, %v1972
        %v1974 = vpop.f32.mrf.mxu0
        %v1975 = vadd.f32 0.0, %v1974
        %v1976 = vpop.f32.mrf.mxu0
        %v1977 = vadd.f32 0.0, %v1976
        %v1978 = vpop.f32.mrf.mxu0
        %v1979 = vadd.f32 0.0, %v1978
        %1980 = vmatprep.mubr.bf16.mxu0 0
        %1981 = vmatmul.mubr.bf16.gmra.mxu0 %v1345
        %v1982 = vpop.f32.mrf.mxu0
        %v1983 = vadd.f32 0.0, %v1982
        %v1984 = vpop.f32.mrf.mxu0
        %v1985 = vadd.f32 0.0, %v1984
        %v1986 = vpop.f32.mrf.mxu0
        %v1987 = vadd.f32 0.0, %v1986
        %v1988 = vpop.f32.mrf.mxu0
        %v1989 = vadd.f32 0.0, %v1988
        %1990 = vmatprep.mubr.bf16.mxu0 0
        %1991 = vmatmul.mubr.bf16.gmra.mxu0 %v1348
        %v1992 = vpop.f32.mrf.mxu0
        %v1993 = vadd.f32 0.0, %v1992
        %v1994 = vpop.f32.mrf.mxu0
        %v1995 = vadd.f32 0.0, %v1994
        %v1996 = vpop.f32.mrf.mxu0
        %v1997 = vadd.f32 0.0, %v1996
        %v1998 = vpop.f32.mrf.mxu0
        %v1999 = vadd.f32 0.0, %v1998
        %2000 = vmatprep.mubr.bf16.mxu0 0
        %2001 = vmatmul.mubr.bf16.gmra.mxu0 %v1351
        %v2002 = vpop.f32.mrf.mxu0
        %v2003 = vadd.f32 0.0, %v2002
        %v2004 = vpop.f32.mrf.mxu0
        %v2005 = vadd.f32 0.0, %v2004
        %v2006 = vpop.f32.mrf.mxu0
        %v2007 = vadd.f32 0.0, %v2006
        %v2008 = vpop.f32.mrf.mxu0
        %v2009 = vadd.f32 0.0, %v2008
        %2010 = vmatprep.mubr.bf16.mxu0 0
        %2011 = vmatmul.mubr.bf16.gmra.mxu0 %v1354
        %v2012 = vpop.f32.mrf.mxu0
        %v2013 = vadd.f32 0.0, %v2012
        %v2014 = vpop.f32.mrf.mxu0
        %v2015 = vadd.f32 0.0, %v2014
        %v2016 = vpop.f32.mrf.mxu0
        %v2017 = vadd.f32 0.0, %v2016
        %v2018 = vpop.f32.mrf.mxu0
        %v2019 = vadd.f32 0.0, %v2018
        %2020 = vmatprep.mubr.bf16.mxu0 0
        %2021 = vmatmul.mubr.bf16.gmra.mxu0 %v1357
        %v2022 = vpop.f32.mrf.mxu0
        %v2023 = vadd.f32 0.0, %v2022
        %v2024 = vpop.f32.mrf.mxu0
        %v2025 = vadd.f32 0.0, %v2024
        %v2026 = vpop.f32.mrf.mxu0
        %v2027 = vadd.f32 0.0, %v2026
        %v2028 = vpop.f32.mrf.mxu0
        %v2029 = vadd.f32 0.0, %v2028
        %2030 = vmatprep.mubr.bf16.mxu0 0
        %2031 = vmatmul.mubr.bf16.gmra.mxu0 %v1360
        %v2032 = vpop.f32.mrf.mxu0
        %v2033 = vadd.f32 0.0, %v2032
        %v2034 = vpop.f32.mrf.mxu0
        %v2035 = vadd.f32 0.0, %v2034
        %v2036 = vpop.f32.mrf.mxu0
        %v2037 = vadd.f32 0.0, %v2036
        %v2038 = vpop.f32.mrf.mxu0
        %v2039 = vadd.f32 0.0, %v2038
        %2040 = vmatprep.mubr.bf16.mxu0 0
        %2041 = vmatmul.mubr.bf16.gmra.mxu0 %v1363
        %v2042 = vpop.f32.mrf.mxu0
        %v2043 = vadd.f32 0.0, %v2042
        %v2044 = vpop.f32.mrf.mxu0
        %v2045 = vadd.f32 0.0, %v2044
        %v2046 = vpop.f32.mrf.mxu0
        %v2047 = vadd.f32 0.0, %v2046
        %v2048 = vpop.f32.mrf.mxu0
        %v2049 = vadd.f32 0.0, %v2048
        %2050 = vmatprep.mubr.bf16.mxu0 0
        %2051 = vmatmul.mubr.bf16.gmra.mxu0 %v1366
        %v2052 = vpop.f32.mrf.mxu0
        %v2053 = vadd.f32 0.0, %v2052
        %v2054 = vpop.f32.mrf.mxu0
        %v2055 = vadd.f32 0.0, %v2054
        %v2056 = vpop.f32.mrf.mxu0
        %v2057 = vadd.f32 0.0, %v2056
        %v2058 = vpop.f32.mrf.mxu0
        %v2059 = vadd.f32 0.0, %v2058
        %2060 = vmatprep.mubr.bf16.mxu0 0
        %2061 = vmatmul.mubr.bf16.gmra.mxu0 %v1369
        %v2062 = vpop.f32.mrf.mxu0
        %v2063 = vadd.f32 0.0, %v2062
        %v2064 = vpop.f32.mrf.mxu0
        %v2065 = vadd.f32 0.0, %v2064
        %v2066 = vpop.f32.mrf.mxu0
        %v2067 = vadd.f32 0.0, %v2066
        %v2068 = vpop.f32.mrf.mxu0
        %v2069 = vadd.f32 0.0, %v2068
        %2070 = vmatprep.mubr.bf16.mxu0 0
        %2071 = vmatmul.mubr.bf16.gmra.mxu0 %v1372
        %v2072 = vpop.f32.mrf.mxu0
        %v2073 = vadd.f32 0.0, %v2072
        %v2074 = vpop.f32.mrf.mxu0
        %v2075 = vadd.f32 0.0, %v2074
        %v2076 = vpop.f32.mrf.mxu0
        %v2077 = vadd.f32 0.0, %v2076
        %v2078 = vpop.f32.mrf.mxu0
        %v2079 = vadd.f32 0.0, %v2078
        %2080 = vmatprep.mubr.bf16.mxu0 0
        %2081 = vmatmul.mubr.bf16.gmra.mxu0 %v1375
        %v2082 = vpop.f32.mrf.mxu0
        %v2083 = vadd.f32 0.0, %v2082
        %v2084 = vpop.f32.mrf.mxu0
        %v2085 = vadd.f32 0.0, %v2084
        %v2086 = vpop.f32.mrf.mxu0
        %v2087 = vadd.f32 0.0, %v2086
        %v2088 = vpop.f32.mrf.mxu0
        %v2089 = vadd.f32 0.0, %v2088
        %2090 = vmatprep.mubr.bf16.mxu0 0
        %2091 = vmatmul.mubr.bf16.gmra.mxu0 %v1378
        %v2092 = vpop.f32.mrf.mxu0
        %v2093 = vadd.f32 0.0, %v2092
        %v2094 = vpop.f32.mrf.mxu0
        %v2095 = vadd.f32 0.0, %v2094
        %v2096 = vpop.f32.mrf.mxu0
        %v2097 = vadd.f32 0.0, %v2096
        %v2098 = vpop.f32.mrf.mxu0
        %v2099 = vadd.f32 0.0, %v2098
        %2100 = vmatprep.mubr.bf16.mxu0 0
        %2101 = vmatmul.mubr.bf16.gmra.mxu0 %v1381
        %v2102 = vpop.f32.mrf.mxu0
        %v2103 = vadd.f32 0.0, %v2102
        %v2104 = vpop.f32.mrf.mxu0
        %v2105 = vadd.f32 0.0, %v2104
        %v2106 = vpop.f32.mrf.mxu0
        %v2107 = vadd.f32 0.0, %v2106
        %v2108 = vpop.f32.mrf.mxu0
        %v2109 = vadd.f32 0.0, %v2108
        %2110 = vmatprep.mubr.bf16.mxu0 0
        %2111 = vmatmul.mubr.bf16.gmra.mxu0 %v1384
        %v2112 = vpop.f32.mrf.mxu0
        %v2113 = vadd.f32 0.0, %v2112
        %v2114 = vpop.f32.mrf.mxu0
        %v2115 = vadd.f32 0.0, %v2114
        %v2116 = vpop.f32.mrf.mxu0
        %v2117 = vadd.f32 0.0, %v2116
        %v2118 = vpop.f32.mrf.mxu0
        %v2119 = vadd.f32 0.0, %v2118
        %2120 = vmatprep.mubr.bf16.mxu0 0
        %2121 = vmatmul.mubr.bf16.gmra.mxu0 %v1387
        %v2122 = vpop.f32.mrf.mxu0
        %v2123 = vadd.f32 0.0, %v2122
        %v2124 = vpop.f32.mrf.mxu0
        %v2125 = vadd.f32 0.0, %v2124
        %v2126 = vpop.f32.mrf.mxu0
        %v2127 = vadd.f32 0.0, %v2126
        %v2128 = vpop.f32.mrf.mxu0
        %v2129 = vadd.f32 0.0, %v2128
        %2130 = vmatprep.mubr.bf16.mxu0 0
        %2131 = vmatmul.mubr.bf16.gmra.mxu0 %v1390
        %v2132 = vpop.f32.mrf.mxu0
        %v2133 = vadd.f32 0.0, %v2132
        %v2134 = vpop.f32.mrf.mxu0
        %v2135 = vadd.f32 0.0, %v2134
        %v2136 = vpop.f32.mrf.mxu0
        %v2137 = vadd.f32 0.0, %v2136
        %v2138 = vpop.f32.mrf.mxu0
        %v2139 = vadd.f32 0.0, %v2138
        %2140 = vmatprep.mubr.bf16.mxu0 0
        %2141 = vmatmul.mubr.bf16.gmra.mxu0 %v1393
        %v2142 = vpop.f32.mrf.mxu0
        %v2143 = vadd.f32 0.0, %v2142
        %v2144 = vpop.f32.mrf.mxu0
        %v2145 = vadd.f32 0.0, %v2144
        %v2146 = vpop.f32.mrf.mxu0
        %v2147 = vadd.f32 0.0, %v2146
        %v2148 = vpop.f32.mrf.mxu0
        %v2149 = vadd.f32 0.0, %v2148
        %2150 = vmatprep.mubr.bf16.mxu0 0
        %2151 = vmatmul.mubr.bf16.gmra.mxu0 %v1396
        %v2152 = vpop.f32.mrf.mxu0
        %v2153 = vadd.f32 0.0, %v2152
        %v2154 = vpop.f32.mrf.mxu0
        %v2155 = vadd.f32 0.0, %v2154
        %v2156 = vpop.f32.mrf.mxu0
        %v2157 = vadd.f32 0.0, %v2156
        %v2158 = vpop.f32.mrf.mxu0
        %v2159 = vadd.f32 0.0, %v2158
        %2160 = vmatprep.mubr.bf16.mxu0 0
        %2161 = vmatmul.mubr.bf16.gmra.mxu0 %v1399
        %v2162 = vpop.f32.mrf.mxu0
        %v2163 = vadd.f32 0.0, %v2162
        %v2164 = vpop.f32.mrf.mxu0
        %v2165 = vadd.f32 0.0, %v2164
        %v2166 = vpop.f32.mrf.mxu0
        %v2167 = vadd.f32 0.0, %v2166
        %v2168 = vpop.f32.mrf.mxu0
        %v2169 = vadd.f32 0.0, %v2168
        %2170 = vmatprep.mubr.bf16.mxu0 0
        %2171 = vmatmul.mubr.bf16.gmra.mxu0 %v1402
        %v2172 = vpop.f32.mrf.mxu0
        %v2173 = vadd.f32 0.0, %v2172
        %v2174 = vpop.f32.mrf.mxu0
        %v2175 = vadd.f32 0.0, %v2174
        %v2176 = vpop.f32.mrf.mxu0
        %v2177 = vadd.f32 0.0, %v2176
        %v2178 = vpop.f32.mrf.mxu0
        %v2179 = vadd.f32 0.0, %v2178
        %2180 = vmatprep.mubr.bf16.mxu0 0
        %2181 = vmatmul.mubr.bf16.gmra.mxu0 %v1405
        %v2182 = vpop.f32.mrf.mxu0
        %v2183 = vadd.f32 0.0, %v2182
        %v2184 = vpop.f32.mrf.mxu0
        %v2185 = vadd.f32 0.0, %v2184
        %v2186 = vpop.f32.mrf.mxu0
        %v2187 = vadd.f32 0.0, %v2186
        %v2188 = vpop.f32.mrf.mxu0
        %v2189 = vadd.f32 0.0, %v2188
        %2190 = vmatprep.mubr.bf16.mxu0 0
        %2191 = vmatmul.mubr.bf16.gmra.mxu0 %v1408
        %v2192 = vpop.f32.mrf.mxu0
        %v2193 = vadd.f32 0.0, %v2192
        %v2194 = vpop.f32.mrf.mxu0
        %v2195 = vadd.f32 0.0, %v2194
        %v2196 = vpop.f32.mrf.mxu0
        %v2197 = vadd.f32 0.0, %v2196
        %v2198 = vpop.f32.mrf.mxu0
        %v2199 = vadd.f32 0.0, %v2198
        %2200 = vmatprep.mubr.bf16.mxu0 0
        %2201 = vmatmul.mubr.bf16.gmra.mxu0 %v1411
        %v2202 = vpop.f32.mrf.mxu0
        %v2203 = vadd.f32 0.0, %v2202
        %v2204 = vpop.f32.mrf.mxu0
        %v2205 = vadd.f32 0.0, %v2204
        %v2206 = vpop.f32.mrf.mxu0
        %v2207 = vadd.f32 0.0, %v2206
        %v2208 = vpop.f32.mrf.mxu0
        %v2209 = vadd.f32 0.0, %v2208
        %2210 = vmatprep.mubr.bf16.mxu0 0
        %2211 = vmatmul.mubr.bf16.gmra.mxu0 %v1414
        %v2212 = vpop.f32.mrf.mxu0
        %v2213 = vadd.f32 0.0, %v2212
        %v2214 = vpop.f32.mrf.mxu0
        %v2215 = vadd.f32 0.0, %v2214
        %v2216 = vpop.f32.mrf.mxu0
        %v2217 = vadd.f32 0.0, %v2216
        %v2218 = vpop.f32.mrf.mxu0
        %v2219 = vadd.f32 0.0, %v2218
        %2220 = vmatprep.mubr.bf16.mxu0 0
        %2221 = vmatmul.mubr.bf16.gmra.mxu0 %v1417
        %v2222 = vpop.f32.mrf.mxu0
        %v2223 = vadd.f32 0.0, %v2222
        %v2224 = vpop.f32.mrf.mxu0
        %v2225 = vadd.f32 0.0, %v2224
        %v2226 = vpop.f32.mrf.mxu0
        %v2227 = vadd.f32 0.0, %v2226
        %v2228 = vpop.f32.mrf.mxu0
        %v2229 = vadd.f32 0.0, %v2228
        %2230 = vmatprep.mubr.bf16.mxu0 0
        %2231 = vmatmul.mubr.bf16.gmra.mxu0 %v1420
        %v2232 = vpop.f32.mrf.mxu0
        %v2233 = vadd.f32 0.0, %v2232
        %v2234 = vpop.f32.mrf.mxu0
        %v2235 = vadd.f32 0.0, %v2234
        %v2236 = vpop.f32.mrf.mxu0
        %v2237 = vadd.f32 0.0, %v2236
        %v2238 = vpop.f32.mrf.mxu0
        %v2239 = vadd.f32 0.0, %v2238
        %2240 = vmatprep.mubr.bf16.mxu0 0
        %2241 = vmatmul.mubr.bf16.gmra.mxu0 %v1423
        %v2242 = vpop.f32.mrf.mxu0
        %v2243 = vadd.f32 0.0, %v2242
        %v2244 = vpop.f32.mrf.mxu0
        %v2245 = vadd.f32 0.0, %v2244
        %v2246 = vpop.f32.mrf.mxu0
        %v2247 = vadd.f32 0.0, %v2246
        %v2248 = vpop.f32.mrf.mxu0
        %v2249 = vadd.f32 0.0, %v2248
        %2250 = vmatprep.mubr.bf16.mxu0 0
        %2251 = vmatmul.mubr.bf16.gmra.mxu0 %v1426
        %v2252 = vpop.f32.mrf.mxu0
        %v2253 = vadd.f32 0.0, %v2252
        %v2254 = vpop.f32.mrf.mxu0
        %v2255 = vadd.f32 0.0, %v2254
        %v2256 = vpop.f32.mrf.mxu0
        %v2257 = vadd.f32 0.0, %v2256
        %v2258 = vpop.f32.mrf.mxu0
        %v2259 = vadd.f32 0.0, %v2258
        %2260 = vmatprep.mubr.bf16.mxu0 0
        %2261 = vmatmul.mubr.bf16.gmra.mxu0 %v1429
        %v2262 = vpop.f32.mrf.mxu0
        %v2263 = vadd.f32 0.0, %v2262
        %v2264 = vpop.f32.mrf.mxu0
        %v2265 = vadd.f32 0.0, %v2264
        %v2266 = vpop.f32.mrf.mxu0
        %v2267 = vadd.f32 0.0, %v2266
        %v2268 = vpop.f32.mrf.mxu0
        %v2269 = vadd.f32 0.0, %v2268
        %2270 = vmatprep.mubr.bf16.mxu0 0
        %2271 = vmatmul.mubr.bf16.gmra.mxu0 %v1432
        %v2272 = vpop.f32.mrf.mxu0
        %v2273 = vadd.f32 0.0, %v2272
        %v2274 = vpop.f32.mrf.mxu0
        %v2275 = vadd.f32 0.0, %v2274
        %v2276 = vpop.f32.mrf.mxu0
        %v2277 = vadd.f32 0.0, %v2276
        %v2278 = vpop.f32.mrf.mxu0
        %v2279 = vadd.f32 0.0, %v2278
        %2280 = vmatprep.mubr.bf16.mxu0 0
        %2281 = vmatmul.mubr.bf16.gmra.mxu0 %v1435
        %v2282 = vpop.f32.mrf.mxu0
        %v2283 = vadd.f32 0.0, %v2282
        %v2284 = vpop.f32.mrf.mxu0
        %v2285 = vadd.f32 0.0, %v2284
        %v2286 = vpop.f32.mrf.mxu0
        %v2287 = vadd.f32 0.0, %v2286
        %v2288 = vpop.f32.mrf.mxu0
        %v2289 = vadd.f32 0.0, %v2288
        %2290 = vmatprep.mubr.bf16.mxu0 0
        %2291 = vmatmul.mubr.bf16.gmra.mxu0 %v1438
        %v2292 = vpop.f32.mrf.mxu0
        %v2293 = vadd.f32 0.0, %v2292
        %v2294 = vpop.f32.mrf.mxu0
        %v2295 = vadd.f32 0.0, %v2294
        %v2296 = vpop.f32.mrf.mxu0
        %v2297 = vadd.f32 0.0, %v2296
        %v2298 = vpop.f32.mrf.mxu0
        %v2299 = vadd.f32 0.0, %v2298
        %2300 = vmatprep.mubr.bf16.mxu0 0
        %2301 = vmatmul.mubr.bf16.gmra.mxu0 %v1441
        %v2302 = vpop.f32.mrf.mxu0
        %v2303 = vadd.f32 0.0, %v2302
        %v2304 = vpop.f32.mrf.mxu0
        %v2305 = vadd.f32 0.0, %v2304
        %v2306 = vpop.f32.mrf.mxu0
        %v2307 = vadd.f32 0.0, %v2306
        %v2308 = vpop.f32.mrf.mxu0
        %v2309 = vadd.f32 0.0, %v2308
        %2310 = vmatprep.mubr.bf16.mxu0 0
        %2311 = vmatmul.mubr.bf16.gmra.mxu0 %v1444
        %v2312 = vpop.f32.mrf.mxu0
        %v2313 = vadd.f32 0.0, %v2312
        %v2314 = vpop.f32.mrf.mxu0
        %v2315 = vadd.f32 0.0, %v2314
        %v2316 = vpop.f32.mrf.mxu0
        %v2317 = vadd.f32 0.0, %v2316
        %v2318 = vpop.f32.mrf.mxu0
        %v2319 = vadd.f32 0.0, %v2318
        %2320 = vmatprep.mubr.bf16.mxu0 0
        %2321 = vmatmul.mubr.bf16.gmra.mxu0 %v1447
        %v2322 = vpop.f32.mrf.mxu0
        %v2323 = vadd.f32 0.0, %v2322
        %v2324 = vpop.f32.mrf.mxu0
        %v2325 = vadd.f32 0.0, %v2324
        %v2326 = vpop.f32.mrf.mxu0
        %v2327 = vadd.f32 0.0, %v2326
        %v2328 = vpop.f32.mrf.mxu0
        %v2329 = vadd.f32 0.0, %v2328
        %2330 = vmatprep.mubr.bf16.mxu0 0
        %2331 = vmatmul.mubr.bf16.gmra.mxu0 %v1450
        %v2332 = vpop.f32.mrf.mxu0
        %v2333 = vadd.f32 0.0, %v2332
        %v2334 = vpop.f32.mrf.mxu0
        %v2335 = vadd.f32 0.0, %v2334
        %v2336 = vpop.f32.mrf.mxu0
        %v2337 = vadd.f32 0.0, %v2336
        %v2338 = vpop.f32.mrf.mxu0
        %v2339 = vadd.f32 0.0, %v2338
        %2340 = vmatprep.mubr.bf16.mxu0 0
        %2341 = vmatmul.mubr.bf16.gmra.mxu0 %v1453
        %v2342 = vpop.f32.mrf.mxu0
        %v2343 = vadd.f32 0.0, %v2342
        %v2344 = vpop.f32.mrf.mxu0
        %v2345 = vadd.f32 0.0, %v2344
        %v2346 = vpop.f32.mrf.mxu0
        %v2347 = vadd.f32 0.0, %v2346
        %v2348 = vpop.f32.mrf.mxu0
        %v2349 = vadd.f32 0.0, %v2348
        %2350 = vmatprep.mubr.bf16.mxu0 0
        %2351 = vmatmul.mubr.bf16.gmra.mxu0 %v1456
        %v2352 = vpop.f32.mrf.mxu0
        %v2353 = vadd.f32 0.0, %v2352
        %v2354 = vpop.f32.mrf.mxu0
        %v2355 = vadd.f32 0.0, %v2354
        %v2356 = vpop.f32.mrf.mxu0
        %v2357 = vadd.f32 0.0, %v2356
        %v2358 = vpop.f32.mrf.mxu0
        %v2359 = vadd.f32 0.0, %v2358
        %2360 = vmatprep.mubr.bf16.mxu0 0
        %2361 = vmatmul.mubr.bf16.gmra.mxu0 %v1459
        %v2362 = vpop.f32.mrf.mxu0
        %v2363 = vadd.f32 0.0, %v2362
        %v2364 = vpop.f32.mrf.mxu0
        %v2365 = vadd.f32 0.0, %v2364
        %v2366 = vpop.f32.mrf.mxu0
        %v2367 = vadd.f32 0.0, %v2366
        %v2368 = vpop.f32.mrf.mxu0
        %v2369 = vadd.f32 0.0, %v2368
        %2370 = vmatprep.mubr.bf16.mxu0 0
        %2371 = vmatmul.mubr.bf16.gmra.mxu0 %v1462
        %v2372 = vpop.f32.mrf.mxu0
        %v2373 = vadd.f32 0.0, %v2372
        %v2374 = vpop.f32.mrf.mxu0
        %v2375 = vadd.f32 0.0, %v2374
        %v2376 = vpop.f32.mrf.mxu0
        %v2377 = vadd.f32 0.0, %v2376
        %v2378 = vpop.f32.mrf.mxu0
        %v2379 = vadd.f32 0.0, %v2378
        %2380 = vmatprep.mubr.bf16.mxu0 0
        %2381 = vmatmul.mubr.bf16.gmra.mxu0 %v1465
        %v2382 = vpop.f32.mrf.mxu0
        %v2383 = vadd.f32 0.0, %v2382
        %v2384 = vpop.f32.mrf.mxu0
        %v2385 = vadd.f32 0.0, %v2384
        %v2386 = vpop.f32.mrf.mxu0
        %v2387 = vadd.f32 0.0, %v2386
        %v2388 = vpop.f32.mrf.mxu0
        %v2389 = vadd.f32 0.0, %v2388
        %2390 = vmatprep.mubr.bf16.mxu0 0
        %2391 = vmatmul.mubr.bf16.gmra.mxu0 %v1468
        %v2392 = vpop.f32.mrf.mxu0
        %v2393 = vadd.f32 0.0, %v2392
        %v2394 = vpop.f32.mrf.mxu0
        %v2395 = vadd.f32 0.0, %v2394
        %v2396 = vpop.f32.mrf.mxu0
        %v2397 = vadd.f32 0.0, %v2396
        %v2398 = vpop.f32.mrf.mxu0
        %v2399 = vadd.f32 0.0, %v2398
        %2400 = vmatprep.mubr.bf16.mxu0 0
        %2401 = vmatmul.mubr.bf16.gmra.mxu0 %v1471
        %v2402 = vpop.f32.mrf.mxu0
        %v2403 = vadd.f32 0.0, %v2402
        %v2404 = vpop.f32.mrf.mxu0
        %v2405 = vadd.f32 0.0, %v2404
        %v2406 = vpop.f32.mrf.mxu0
        %v2407 = vadd.f32 0.0, %v2406
        %v2408 = vpop.f32.mrf.mxu0
        %v2409 = vadd.f32 0.0, %v2408
        %2410 = vmatprep.mubr.bf16.mxu0 0
        %2411 = vmatmul.mubr.bf16.gmra.mxu0 %v1474
        %v2412 = vpop.f32.mrf.mxu0
        %v2413 = vadd.f32 0.0, %v2412
        %v2414 = vpop.f32.mrf.mxu0
        %v2415 = vadd.f32 0.0, %v2414
        %v2416 = vpop.f32.mrf.mxu0
        %v2417 = vadd.f32 0.0, %v2416
        %v2418 = vpop.f32.mrf.mxu0
        %v2419 = vadd.f32 0.0, %v2418
        %2420 = vmatprep.mubr.bf16.mxu0 0
        %2421 = vmatmul.mubr.bf16.gmra.mxu0 %v1477
        %v2422 = vpop.f32.mrf.mxu0
        %v2423 = vadd.f32 0.0, %v2422
        %v2424 = vpop.f32.mrf.mxu0
        %v2425 = vadd.f32 0.0, %v2424
        %v2426 = vpop.f32.mrf.mxu0
        %v2427 = vadd.f32 0.0, %v2426
        %v2428 = vpop.f32.mrf.mxu0
        %v2429 = vadd.f32 0.0, %v2428
        %2430 = vmatprep.mubr.bf16.mxu0 0
        %2431 = vmatmul.mubr.bf16.gmra.mxu0 %v1480
        %v2432 = vpop.f32.mrf.mxu0
        %v2433 = vadd.f32 0.0, %v2432
        %v2434 = vpop.f32.mrf.mxu0
        %v2435 = vadd.f32 0.0, %v2434
        %v2436 = vpop.f32.mrf.mxu0
        %v2437 = vadd.f32 0.0, %v2436
        %v2438 = vpop.f32.mrf.mxu0
        %v2439 = vadd.f32 0.0, %v2438
        %2440 = vmatprep.mubr.bf16.mxu0 0
        %2441 = vmatmul.mubr.bf16.gmra.mxu0 %v1483
        %v2442 = vpop.f32.mrf.mxu0
        %v2443 = vadd.f32 0.0, %v2442
        %v2444 = vpop.f32.mrf.mxu0
        %v2445 = vadd.f32 0.0, %v2444
        %v2446 = vpop.f32.mrf.mxu0
        %v2447 = vadd.f32 0.0, %v2446
        %v2448 = vpop.f32.mrf.mxu0
        %v2449 = vadd.f32 0.0, %v2448
        %2450 = vmatprep.mubr.bf16.mxu0 0
        %2451 = vmatmul.mubr.bf16.gmra.mxu0 %v1486
        %v2452 = vpop.f32.mrf.mxu0
        %v2453 = vadd.f32 0.0, %v2452
        %v2454 = vpop.f32.mrf.mxu0
        %v2455 = vadd.f32 0.0, %v2454
        %v2456 = vpop.f32.mrf.mxu0
        %v2457 = vadd.f32 0.0, %v2456
        %v2458 = vpop.f32.mrf.mxu0
        %v2459 = vadd.f32 0.0, %v2458
        %2460 = vmatprep.mubr.bf16.mxu0 0
        %2461 = vmatmul.mubr.bf16.gmra.mxu0 %v1489
        %v2462 = vpop.f32.mrf.mxu0
        %v2463 = vadd.f32 0.0, %v2462
        %v2464 = vpop.f32.mrf.mxu0
        %v2465 = vadd.f32 0.0, %v2464
        %v2466 = vpop.f32.mrf.mxu0
        %v2467 = vadd.f32 0.0, %v2466
        %v2468 = vpop.f32.mrf.mxu0
        %v2469 = vadd.f32 0.0, %v2468
        %2470 = vmatprep.mubr.bf16.mxu0 0
        %2471 = vmatmul.mubr.bf16.gmra.mxu0 %v1492
        %v2472 = vpop.f32.mrf.mxu0
        %v2473 = vadd.f32 0.0, %v2472
        %v2474 = vpop.f32.mrf.mxu0
        %v2475 = vadd.f32 0.0, %v2474
        %v2476 = vpop.f32.mrf.mxu0
        %v2477 = vadd.f32 0.0, %v2476
        %v2478 = vpop.f32.mrf.mxu0
        %v2479 = vadd.f32 0.0, %v2478
        %2480 = vmatprep.mubr.bf16.mxu0 0
        %2481 = vmatmul.mubr.bf16.gmra.mxu0 %v1495
        %v2482 = vpop.f32.mrf.mxu0
        %v2483 = vadd.f32 0.0, %v2482
        %v2484 = vpop.f32.mrf.mxu0
        %v2485 = vadd.f32 0.0, %v2484
        %v2486 = vpop.f32.mrf.mxu0
        %v2487 = vadd.f32 0.0, %v2486
        %v2488 = vpop.f32.mrf.mxu0
        %v2489 = vadd.f32 0.0, %v2488
        %2490 = vmatprep.mubr.bf16.mxu0 0
        %2491 = vmatmul.mubr.bf16.gmra.mxu0 %v1498
        %v2492 = vpop.f32.mrf.mxu0
        %v2493 = vadd.f32 0.0, %v2492
        %v2494 = vpop.f32.mrf.mxu0
        %v2495 = vadd.f32 0.0, %v2494
        %v2496 = vpop.f32.mrf.mxu0
        %v2497 = vadd.f32 0.0, %v2496
        %v2498 = vpop.f32.mrf.mxu0
        %v2499 = vadd.f32 0.0, %v2498
        %2500 = vmatprep.mubr.bf16.mxu0 0
        %2501 = vmatmul.mubr.bf16.gmra.mxu0 %v1501
        %v2502 = vpop.f32.mrf.mxu0
        %v2503 = vadd.f32 0.0, %v2502
        %v2504 = vpop.f32.mrf.mxu0
        %v2505 = vadd.f32 0.0, %v2504
        %v2506 = vpop.f32.mrf.mxu0
        %v2507 = vadd.f32 0.0, %v2506
        %v2508 = vpop.f32.mrf.mxu0
        %v2509 = vadd.f32 0.0, %v2508
        %2510 = vmatprep.mubr.bf16.mxu0 0
        %2511 = vmatmul.mubr.bf16.gmra.mxu0 %v1504
        %v2512 = vpop.f32.mrf.mxu0
        %v2513 = vadd.f32 0.0, %v2512
        %v2514 = vpop.f32.mrf.mxu0
        %v2515 = vadd.f32 0.0, %v2514
        %v2516 = vpop.f32.mrf.mxu0
        %v2517 = vadd.f32 0.0, %v2516
        %v2518 = vpop.f32.mrf.mxu0
        %v2519 = vadd.f32 0.0, %v2518
        %2520 = vmatprep.mubr.bf16.mxu0 0
        %2521 = vmatmul.mubr.bf16.gmra.mxu0 %v1507
        %v2522 = vpop.f32.mrf.mxu0
        %v2523 = vadd.f32 0.0, %v2522
        %v2524 = vpop.f32.mrf.mxu0
        %v2525 = vadd.f32 0.0, %v2524
        %v2526 = vpop.f32.mrf.mxu0
        %v2527 = vadd.f32 0.0, %v2526
        %v2528 = vpop.f32.mrf.mxu0
        %v2529 = vadd.f32 0.0, %v2528
        %2530 = vmatprep.mubr.bf16.mxu0 0
        %2531 = vmatmul.mubr.bf16.gmra.mxu0 %v1510
        %v2532 = vpop.f32.mrf.mxu0
        %v2533 = vadd.f32 0.0, %v2532
        %v2534 = vpop.f32.mrf.mxu0
        %v2535 = vadd.f32 0.0, %v2534
        %v2536 = vpop.f32.mrf.mxu0
        %v2537 = vadd.f32 0.0, %v2536
        %v2538 = vpop.f32.mrf.mxu0
        %v2539 = vadd.f32 0.0, %v2538
        %2540 = vmatprep.mubr.bf16.mxu0 0
        %2541 = vmatmul.mubr.bf16.gmra.mxu0 %v1513
        %v2542 = vpop.f32.mrf.mxu0
        %v2543 = vadd.f32 0.0, %v2542
        %v2544 = vpop.f32.mrf.mxu0
        %v2545 = vadd.f32 0.0, %v2544
        %v2546 = vpop.f32.mrf.mxu0
        %v2547 = vadd.f32 0.0, %v2546
        %v2548 = vpop.f32.mrf.mxu0
        %v2549 = vadd.f32 0.0, %v2548
        %2550 = vmatprep.mubr.bf16.mxu0 0
        %2551 = vmatmul.mubr.bf16.gmra.mxu0 %v1516
        %v2552 = vpop.f32.mrf.mxu0
        %v2553 = vadd.f32 0.0, %v2552
        %v2554 = vpop.f32.mrf.mxu0
        %v2555 = vadd.f32 0.0, %v2554
        %v2556 = vpop.f32.mrf.mxu0
        %v2557 = vadd.f32 0.0, %v2556
        %v2558 = vpop.f32.mrf.mxu0
        %v2559 = vadd.f32 0.0, %v2558
        %2560 = vmatprep.mubr.bf16.mxu0 0
        %2561 = vmatmul.mubr.bf16.gmra.mxu0 %v1519
        %v2562 = vpop.f32.mrf.mxu0
        %v2563 = vadd.f32 0.0, %v2562
        %v2564 = vpop.f32.mrf.mxu0
        %v2565 = vadd.f32 0.0, %v2564
        %v2566 = vpop.f32.mrf.mxu0
        %v2567 = vadd.f32 0.0, %v2566
        %v2568 = vpop.f32.mrf.mxu0
        %v2569 = vadd.f32 0.0, %v2568
        %2570 = vmatprep.mubr.bf16.mxu0 0
        %2571 = vmatmul.mubr.bf16.gmra.mxu0 %v1522
        %v2572 = vpop.f32.mrf.mxu0
        %v2573 = vadd.f32 0.0, %v2572
        %v2574 = vpop.f32.mrf.mxu0
        %v2575 = vadd.f32 0.0, %v2574
        %v2576 = vpop.f32.mrf.mxu0
        %v2577 = vadd.f32 0.0, %v2576
        %v2578 = vpop.f32.mrf.mxu0
        %v2579 = vadd.f32 0.0, %v2578
        %2580 = vmatprep.mubr.bf16.mxu0 0
        %2581 = vmatmul.mubr.bf16.gmra.mxu0 %v1525
        %v2582 = vpop.f32.mrf.mxu0
        %v2583 = vadd.f32 0.0, %v2582
        %v2584 = vpop.f32.mrf.mxu0
        %v2585 = vadd.f32 0.0, %v2584
        %v2586 = vpop.f32.mrf.mxu0
        %v2587 = vadd.f32 0.0, %v2586
        %v2588 = vpop.f32.mrf.mxu0
        %v2589 = vadd.f32 0.0, %v2588
        %2590 = vmatprep.mubr.bf16.mxu0 0
        %2591 = vmatmul.mubr.bf16.gmra.mxu0 %v1528
        %v2592 = vpop.f32.mrf.mxu0
        %v2593 = vadd.f32 0.0, %v2592
        %v2594 = vpop.f32.mrf.mxu0
        %v2595 = vadd.f32 0.0, %v2594
        %v2596 = vpop.f32.mrf.mxu0
        %v2597 = vadd.f32 0.0, %v2596
        %v2598 = vpop.f32.mrf.mxu0
        %v2599 = vadd.f32 0.0, %v2598
        %2600 = vmatprep.mubr.bf16.mxu0 0
        %2601 = vmatmul.mubr.bf16.gmra.mxu0 %v1531
        %v2602 = vpop.f32.mrf.mxu0
        %v2603 = vadd.f32 0.0, %v2602
        %v2604 = vpop.f32.mrf.mxu0
        %v2605 = vadd.f32 0.0, %v2604
        %v2606 = vpop.f32.mrf.mxu0
        %v2607 = vadd.f32 0.0, %v2606
        %v2608 = vpop.f32.mrf.mxu0
        %v2609 = vadd.f32 0.0, %v2608
        %2610 = vmatprep.mubr.bf16.mxu0 0
        %2611 = vmatmul.mubr.bf16.gmra.mxu0 %v1534
        %v2612 = vpop.f32.mrf.mxu0
        %v2613 = vadd.f32 0.0, %v2612
        %v2614 = vpop.f32.mrf.mxu0
        %v2615 = vadd.f32 0.0, %v2614
        %v2616 = vpop.f32.mrf.mxu0
        %v2617 = vadd.f32 0.0, %v2616
        %v2618 = vpop.f32.mrf.mxu0
        %v2619 = vadd.f32 0.0, %v2618
        %2620 = vmatprep.mubr.bf16.mxu0 0
        %2621 = vmatmul.mubr.bf16.gmra.mxu0 %v1537
        %v2622 = vpop.f32.mrf.mxu0
        %v2623 = vadd.f32 0.0, %v2622
        %v2624 = vpop.f32.mrf.mxu0
        %v2625 = vadd.f32 0.0, %v2624
        %v2626 = vpop.f32.mrf.mxu0
        %v2627 = vadd.f32 0.0, %v2626
        %v2628 = vpop.f32.mrf.mxu0
        %v2629 = vadd.f32 0.0, %v2628
        %2630 = vmatprep.mubr.bf16.mxu0 0
        %2631 = vmatmul.mubr.bf16.gmra.mxu0 %v1540
        %v2632 = vpop.f32.mrf.mxu0
        %v2633 = vadd.f32 0.0, %v2632
        %v2634 = vpop.f32.mrf.mxu0
        %v2635 = vadd.f32 0.0, %v2634
        %v2636 = vpop.f32.mrf.mxu0
        %v2637 = vadd.f32 0.0, %v2636
        %v2638 = vpop.f32.mrf.mxu0
        %v2639 = vadd.f32 0.0, %v2638
        %2640 = vmatprep.mubr.bf16.mxu0 0
        %2641 = vmatmul.mubr.bf16.gmra.mxu0 %v1543
        %v2642 = vpop.f32.mrf.mxu0
        %v2643 = vadd.f32 0.0, %v2642
        %v2644 = vpop.f32.mrf.mxu0
        %v2645 = vadd.f32 0.0, %v2644
        %v2646 = vpop.f32.mrf.mxu0
        %v2647 = vadd.f32 0.0, %v2646
        %v2648 = vpop.f32.mrf.mxu0
        %v2649 = vadd.f32 0.0, %v2648
        %2650 = vmatprep.mubr.bf16.mxu0 0
        %2651 = vmatmul.mubr.bf16.gmra.mxu0 %v1546
        %v2652 = vpop.f32.mrf.mxu0
        %v2653 = vadd.f32 0.0, %v2652
        %v2654 = vpop.f32.mrf.mxu0
        %v2655 = vadd.f32 0.0, %v2654
        %v2656 = vpop.f32.mrf.mxu0
        %v2657 = vadd.f32 0.0, %v2656
        %v2658 = vpop.f32.mrf.mxu0
        %v2659 = vadd.f32 0.0, %v2658
        %2660 = vmatprep.mubr.bf16.mxu0 0
        %2661 = vmatmul.mubr.bf16.gmra.mxu0 %v1549
        %v2662 = vpop.f32.mrf.mxu0
        %v2663 = vadd.f32 0.0, %v2662
        %v2664 = vpop.f32.mrf.mxu0
        %v2665 = vadd.f32 0.0, %v2664
        %v2666 = vpop.f32.mrf.mxu0
        %v2667 = vadd.f32 0.0, %v2666
        %v2668 = vpop.f32.mrf.mxu0
        %v2669 = vadd.f32 0.0, %v2668
        %2670 = vmatprep.mubr.bf16.mxu0 0
        %2671 = vmatmul.mubr.bf16.gmra.mxu0 %v1552
        %v2672 = vpop.f32.mrf.mxu0
        %v2673 = vadd.f32 0.0, %v2672
        %v2674 = vpop.f32.mrf.mxu0
        %v2675 = vadd.f32 0.0, %v2674
        %v2676 = vpop.f32.mrf.mxu0
        %v2677 = vadd.f32 0.0, %v2676
        %v2678 = vpop.f32.mrf.mxu0
        %v2679 = vadd.f32 0.0, %v2678
        %2680 = vmatprep.mubr.bf16.mxu0 0
        %2681 = vmatmul.mubr.bf16.gmra.mxu0 %v1555
        %v2682 = vpop.f32.mrf.mxu0
        %v2683 = vadd.f32 0.0, %v2682
        %v2684 = vpop.f32.mrf.mxu0
        %v2685 = vadd.f32 0.0, %v2684
        %v2686 = vpop.f32.mrf.mxu0
        %v2687 = vadd.f32 0.0, %v2686
        %v2688 = vpop.f32.mrf.mxu0
        %v2689 = vadd.f32 0.0, %v2688
        %2690 = vmatprep.mubr.bf16.mxu0 0
        %2691 = vmatmul.mubr.bf16.gmra.mxu0 %v1558
        %v2692 = vpop.f32.mrf.mxu0
        %v2693 = vadd.f32 0.0, %v2692
        %v2694 = vpop.f32.mrf.mxu0
        %v2695 = vadd.f32 0.0, %v2694
        %v2696 = vpop.f32.mrf.mxu0
        %v2697 = vadd.f32 0.0, %v2696
        %v2698 = vpop.f32.mrf.mxu0
        %v2699 = vadd.f32 0.0, %v2698
        %2700 = vmatprep.mubr.bf16.mxu0 0
        %2701 = vmatmul.mubr.bf16.gmra.mxu0 %v1561
        %v2702 = vpop.f32.mrf.mxu0
        %v2703 = vadd.f32 0.0, %v2702
        %v2704 = vpop.f32.mrf.mxu0
        %v2705 = vadd.f32 0.0, %v2704
        %v2706 = vpop.f32.mrf.mxu0
        %v2707 = vadd.f32 0.0, %v2706
        %v2708 = vpop.f32.mrf.mxu0
        %v2709 = vadd.f32 0.0, %v2708
        %2710 = vmatprep.mubr.bf16.mxu0 0
        %2711 = vmatmul.mubr.bf16.gmra.mxu0 %v1564
        %v2712 = vpop.f32.mrf.mxu0
        %v2713 = vadd.f32 0.0, %v2712
        %v2714 = vpop.f32.mrf.mxu0
        %v2715 = vadd.f32 0.0, %v2714
        %v2716 = vpop.f32.mrf.mxu0
        %v2717 = vadd.f32 0.0, %v2716
        %v2718 = vpop.f32.mrf.mxu0
        %v2719 = vadd.f32 0.0, %v2718
        %2720 = vmatprep.mubr.bf16.mxu0 0
        %2721 = vmatmul.mubr.bf16.gmra.mxu0 %v1567
        %v2722 = vpop.f32.mrf.mxu0
        %v2723 = vadd.f32 0.0, %v2722
        %v2724 = vpop.f32.mrf.mxu0
        %v2725 = vadd.f32 0.0, %v2724
        %v2726 = vpop.f32.mrf.mxu0
        %v2727 = vadd.f32 0.0, %v2726
        %v2728 = vpop.f32.mrf.mxu0
        %v2729 = vadd.f32 0.0, %v2728
        %2730 = vmatprep.mubr.bf16.mxu0 0
        %2731 = vmatmul.mubr.bf16.gmra.mxu0 %v1570
        %v2732 = vpop.f32.mrf.mxu0
        %v2733 = vadd.f32 0.0, %v2732
        %v2734 = vpop.f32.mrf.mxu0
        %v2735 = vadd.f32 0.0, %v2734
        %v2736 = vpop.f32.mrf.mxu0
        %v2737 = vadd.f32 0.0, %v2736
        %v2738 = vpop.f32.mrf.mxu0
        %v2739 = vadd.f32 0.0, %v2738
        %2740 = vmatprep.mubr.bf16.mxu0 0
        %2741 = vmatmul.mubr.bf16.gmra.mxu0 %v1573
        %v2742 = vpop.f32.mrf.mxu0
        %v2743 = vadd.f32 0.0, %v2742
        %v2744 = vpop.f32.mrf.mxu0
        %v2745 = vadd.f32 0.0, %v2744
        %v2746 = vpop.f32.mrf.mxu0
        %v2747 = vadd.f32 0.0, %v2746
        %v2748 = vpop.f32.mrf.mxu0
        %v2749 = vadd.f32 0.0, %v2748
        %2750 = vmatprep.mubr.bf16.mxu0 0
        %2751 = vmatmul.mubr.bf16.gmra.mxu0 %v1576
        %v2752 = vpop.f32.mrf.mxu0
        %v2753 = vadd.f32 0.0, %v2752
        %v2754 = vpop.f32.mrf.mxu0
        %v2755 = vadd.f32 0.0, %v2754
        %v2756 = vpop.f32.mrf.mxu0
        %v2757 = vadd.f32 0.0, %v2756
        %v2758 = vpop.f32.mrf.mxu0
        %v2759 = vadd.f32 0.0, %v2758
        %2760 = vmatprep.mubr.bf16.mxu0 0
        %2761 = vmatmul.mubr.bf16.gmra.mxu0 %v1579
        %v2762 = vpop.f32.mrf.mxu0
        %v2763 = vadd.f32 0.0, %v2762
        %v2764 = vpop.f32.mrf.mxu0
        %v2765 = vadd.f32 0.0, %v2764
        %v2766 = vpop.f32.mrf.mxu0
        %v2767 = vadd.f32 0.0, %v2766
        %v2768 = vpop.f32.mrf.mxu0
        %v2769 = vadd.f32 0.0, %v2768
        %2770 = vmatprep.mubr.bf16.mxu0 0
        %2771 = vmatmul.mubr.bf16.gmra.mxu0 %v1582
        %v2772 = vpop.f32.mrf.mxu0
        %v2773 = vadd.f32 0.0, %v2772
        %v2774 = vpop.f32.mrf.mxu0
        %v2775 = vadd.f32 0.0, %v2774
        %v2776 = vpop.f32.mrf.mxu0
        %v2777 = vadd.f32 0.0, %v2776
        %v2778 = vpop.f32.mrf.mxu0
        %v2779 = vadd.f32 0.0, %v2778
        %2780 = vmatprep.mubr.bf16.mxu0 0
        %2781 = vmatmul.mubr.bf16.gmra.mxu0 %v1585
        %v2782 = vpop.f32.mrf.mxu0
        %v2783 = vadd.f32 0.0, %v2782
        %v2784 = vpop.f32.mrf.mxu0
        %v2785 = vadd.f32 0.0, %v2784
        %v2786 = vpop.f32.mrf.mxu0
        %v2787 = vadd.f32 0.0, %v2786
        %v2788 = vpop.f32.mrf.mxu0
        %v2789 = vadd.f32 0.0, %v2788
        %2790 = vmatprep.mubr.bf16.mxu0 0
        %2791 = vmatmul.mubr.bf16.gmra.mxu0 %v1588
        %v2792 = vpop.f32.mrf.mxu0
        %v2793 = vadd.f32 0.0, %v2792
        %v2794 = vpop.f32.mrf.mxu0
        %v2795 = vadd.f32 0.0, %v2794
        %v2796 = vpop.f32.mrf.mxu0
        %v2797 = vadd.f32 0.0, %v2796
        %v2798 = vpop.f32.mrf.mxu0
        %v2799 = vadd.f32 0.0, %v2798
        %2800 = vmatprep.mubr.bf16.mxu0 0
        %2801 = vmatmul.mubr.bf16.gmra.mxu0 %v1591
        %v2802 = vpop.f32.mrf.mxu0
        %v2803 = vadd.f32 0.0, %v2802
        %v2804 = vpop.f32.mrf.mxu0
        %v2805 = vadd.f32 0.0, %v2804
        %v2806 = vpop.f32.mrf.mxu0
        %v2807 = vadd.f32 0.0, %v2806
        %v2808 = vpop.f32.mrf.mxu0
        %v2809 = vadd.f32 0.0, %v2808
        %2810 = vmatprep.mubr.bf16.mxu0 0
        %2811 = vmatmul.mubr.bf16.gmra.mxu0 %v1594
        %v2812 = vpop.f32.mrf.mxu0
        %v2813 = vadd.f32 0.0, %v2812
        %v2814 = vpop.f32.mrf.mxu0
        %v2815 = vadd.f32 0.0, %v2814
        %v2816 = vpop.f32.mrf.mxu0
        %v2817 = vadd.f32 0.0, %v2816
        %v2818 = vpop.f32.mrf.mxu0
        %v2819 = vadd.f32 0.0, %v2818
        %2820 = vmatprep.mubr.bf16.mxu0 0
        %2821 = vmatmul.mubr.bf16.gmra.mxu0 %v1597
        %v2822 = vpop.f32.mrf.mxu0
        %v2823 = vadd.f32 0.0, %v2822
        %v2824 = vpop.f32.mrf.mxu0
        %v2825 = vadd.f32 0.0, %v2824
        %v2826 = vpop.f32.mrf.mxu0
        %v2827 = vadd.f32 0.0, %v2826
        %v2828 = vpop.f32.mrf.mxu0
        %v2829 = vadd.f32 0.0, %v2828
        %2830 = vmatprep.mubr.bf16.mxu0 0
        %2831 = vmatmul.mubr.bf16.gmra.mxu0 %v1600
        %v2832 = vpop.f32.mrf.mxu0
        %v2833 = vadd.f32 0.0, %v2832
        %v2834 = vpop.f32.mrf.mxu0
        %v2835 = vadd.f32 0.0, %v2834
        %v2836 = vpop.f32.mrf.mxu0
        %v2837 = vadd.f32 0.0, %v2836
        %v2838 = vpop.f32.mrf.mxu0
        %v2839 = vadd.f32 0.0, %v2838
        %2840 = vmatprep.mubr.bf16.mxu0 0
        %2841 = vmatmul.mubr.bf16.gmra.mxu0 %v1603
        %v2842 = vpop.f32.mrf.mxu0
        %v2843 = vadd.f32 0.0, %v2842
        %v2844 = vpop.f32.mrf.mxu0
        %v2845 = vadd.f32 0.0, %v2844
        %v2846 = vpop.f32.mrf.mxu0
        %v2847 = vadd.f32 0.0, %v2846
        %v2848 = vpop.f32.mrf.mxu0
        %v2849 = vadd.f32 0.0, %v2848
        %2850 = vmatprep.mubr.bf16.mxu0 0
        %2851 = vmatmul.mubr.bf16.gmra.mxu0 %v1606
        %v2852 = vpop.f32.mrf.mxu0
        %v2853 = vadd.f32 0.0, %v2852
        %v2854 = vpop.f32.mrf.mxu0
        %v2855 = vadd.f32 0.0, %v2854
        %v2856 = vpop.f32.mrf.mxu0
        %v2857 = vadd.f32 0.0, %v2856
        %v2858 = vpop.f32.mrf.mxu0
        %v2859 = vadd.f32 0.0, %v2858
        %2860 = vmatprep.mubr.bf16.mxu0 0
        %2861 = vmatmul.mubr.bf16.gmra.mxu0 %v1609
        %v2862 = vpop.f32.mrf.mxu0
        %v2863 = vadd.f32 0.0, %v2862
        %v2864 = vpop.f32.mrf.mxu0
        %v2865 = vadd.f32 0.0, %v2864
        %v2866 = vpop.f32.mrf.mxu0
        %v2867 = vadd.f32 0.0, %v2866
        %v2868 = vpop.f32.mrf.mxu0
        %v2869 = vadd.f32 0.0, %v2868
        %2870 = vmatprep.mubr.bf16.mxu0 0
        %2871 = vmatmul.mubr.bf16.gmra.mxu0 %v1612
        %v2872 = vpop.f32.mrf.mxu0
        %v2873 = vadd.f32 0.0, %v2872
        %v2874 = vpop.f32.mrf.mxu0
        %v2875 = vadd.f32 0.0, %v2874
        %v2876 = vpop.f32.mrf.mxu0
        %v2877 = vadd.f32 0.0, %v2876
        %v2878 = vpop.f32.mrf.mxu0
        %v2879 = vadd.f32 0.0, %v2878
        %2880 = vmatprep.mubr.bf16.mxu0 0
        %2881 = vmatmul.mubr.bf16.gmra.mxu0 %v1615
        %v2882 = vpop.f32.mrf.mxu0
        %v2883 = vadd.f32 0.0, %v2882
        %v2884 = vpop.f32.mrf.mxu0
        %v2885 = vadd.f32 0.0, %v2884
        %v2886 = vpop.f32.mrf.mxu0
        %v2887 = vadd.f32 0.0, %v2886
        %v2888 = vpop.f32.mrf.mxu0
        %v2889 = vadd.f32 0.0, %v2888
        %2890 = vmatprep.mubr.bf16.mxu0 0
        %2891 = vmatmul.mubr.bf16.gmra.mxu0 %v1618
        %v2892 = vpop.f32.mrf.mxu0
        %v2893 = vadd.f32 0.0, %v2892
        %v2894 = vpop.f32.mrf.mxu0
        %v2895 = vadd.f32 0.0, %v2894
        %v2896 = vpop.f32.mrf.mxu0
        %v2897 = vadd.f32 0.0, %v2896
        %v2898 = vpop.f32.mrf.mxu0
        %v2899 = vadd.f32 0.0, %v2898
        %2900 = vmatprep.mubr.bf16.mxu0 0
        %2901 = vmatmul.mubr.bf16.gmra.mxu0 %v1621
        %v2902 = vpop.f32.mrf.mxu0
        %v2903 = vadd.f32 0.0, %v2902
        %v2904 = vpop.f32.mrf.mxu0
        %v2905 = vadd.f32 0.0, %v2904
        %v2906 = vpop.f32.mrf.mxu0
        %v2907 = vadd.f32 0.0, %v2906
        %v2908 = vpop.f32.mrf.mxu0
        %v2909 = vadd.f32 0.0, %v2908
        %2910 = vmatprep.mubr.bf16.mxu0 0
        %2911 = vmatmul.mubr.bf16.gmra.mxu0 %v1624
        %v2912 = vpop.f32.mrf.mxu0
        %v2913 = vadd.f32 0.0, %v2912
        %v2914 = vpop.f32.mrf.mxu0
        %v2915 = vadd.f32 0.0, %v2914
        %v2916 = vpop.f32.mrf.mxu0
        %v2917 = vadd.f32 0.0, %v2916
        %v2918 = vpop.f32.mrf.mxu0
        %v2919 = vadd.f32 0.0, %v2918
        %2920 = vmatprep.mubr.bf16.mxu0 0
        %2921 = vmatmul.mubr.bf16.gmra.mxu0 %v1627
        %v2922 = vpop.f32.mrf.mxu0
        %v2923 = vadd.f32 0.0, %v2922
        %v2924 = vpop.f32.mrf.mxu0
        %v2925 = vadd.f32 0.0, %v2924
        %v2926 = vpop.f32.mrf.mxu0
        %v2927 = vadd.f32 0.0, %v2926
        %v2928 = vpop.f32.mrf.mxu0
        %v2929 = vadd.f32 0.0, %v2928
        %2930 = vmatprep.mubr.bf16.mxu0 0
        %2931 = vmatmul.mubr.bf16.gmra.mxu0 %v1630
        %v2932 = vpop.f32.mrf.mxu0
        %v2933 = vadd.f32 0.0, %v2932
        %v2934 = vpop.f32.mrf.mxu0
        %v2935 = vadd.f32 0.0, %v2934
        %v2936 = vpop.f32.mrf.mxu0
        %v2937 = vadd.f32 0.0, %v2936
        %v2938 = vpop.f32.mrf.mxu0
        %v2939 = vadd.f32 0.0, %v2938
        %2940 = vmatprep.mubr.bf16.mxu0 0
        %2941 = vmatmul.mubr.bf16.gmra.mxu0 %v1633
        %v2942 = vpop.f32.mrf.mxu0
        %v2943 = vadd.f32 0.0, %v2942
        %v2944 = vpop.f32.mrf.mxu0
        %v2945 = vadd.f32 0.0, %v2944
        %v2946 = vpop.f32.mrf.mxu0
        %v2947 = vadd.f32 0.0, %v2946
        %v2948 = vpop.f32.mrf.mxu0
        %v2949 = vadd.f32 0.0, %v2948
        %2950 = vmatprep.mubr.bf16.mxu0 0
        %2951 = vmatmul.mubr.bf16.gmra.mxu0 %v1636
        %v2952 = vpop.f32.mrf.mxu0
        %v2953 = vadd.f32 0.0, %v2952
        %v2954 = vpop.f32.mrf.mxu0
        %v2955 = vadd.f32 0.0, %v2954
        %v2956 = vpop.f32.mrf.mxu0
        %v2957 = vadd.f32 0.0, %v2956
        %v2958 = vpop.f32.mrf.mxu0
        %v2959 = vadd.f32 0.0, %v2958
        %2960 = vmatprep.mubr.bf16.mxu0 0
        %2961 = vmatmul.mubr.bf16.gmra.mxu0 %v1639
        %v2962 = vpop.f32.mrf.mxu0
        %v2963 = vadd.f32 0.0, %v2962
        %v2964 = vpop.f32.mrf.mxu0
        %v2965 = vadd.f32 0.0, %v2964
        %v2966 = vpop.f32.mrf.mxu0
        %v2967 = vadd.f32 0.0, %v2966
        %v2968 = vpop.f32.mrf.mxu0
        %v2969 = vadd.f32 0.0, %v2968
        %2970 = vmatprep.mubr.bf16.mxu0 0
        %2971 = vmatmul.mubr.bf16.gmra.mxu0 %v1642
        %v2972 = vpop.f32.mrf.mxu0
        %v2973 = vadd.f32 0.0, %v2972
        %v2974 = vpop.f32.mrf.mxu0
        %v2975 = vadd.f32 0.0, %v2974
        %v2976 = vpop.f32.mrf.mxu0
        %v2977 = vadd.f32 0.0, %v2976
        %v2978 = vpop.f32.mrf.mxu0
        %v2979 = vadd.f32 0.0, %v2978
        %2980 = vmatprep.mubr.bf16.mxu0 0
        %2981 = vmatmul.mubr.bf16.gmra.mxu0 %v1645
        %v2982 = vpop.f32.mrf.mxu0
        %v2983 = vadd.f32 0.0, %v2982
        %v2984 = vpop.f32.mrf.mxu0
        %v2985 = vadd.f32 0.0, %v2984
        %v2986 = vpop.f32.mrf.mxu0
        %v2987 = vadd.f32 0.0, %v2986
        %v2988 = vpop.f32.mrf.mxu0
        %v2989 = vadd.f32 0.0, %v2988
        %2990 = vmatprep.mubr.bf16.mxu0 0
        %2991 = vmatmul.mubr.bf16.gmra.mxu0 %v1648
        %v2992 = vpop.f32.mrf.mxu0
        %v2993 = vadd.f32 0.0, %v2992
        %v2994 = vpop.f32.mrf.mxu0
        %v2995 = vadd.f32 0.0, %v2994
        %v2996 = vpop.f32.mrf.mxu0
        %v2997 = vadd.f32 0.0, %v2996
        %v2998 = vpop.f32.mrf.mxu0
        %v2999 = vadd.f32 0.0, %v2998
        %3000 = vmatprep.mubr.bf16.mxu0 0
        %3001 = vmatmul.mubr.bf16.gmra.mxu0 %v1651
        %v3002 = vpop.f32.mrf.mxu0
        %v3003 = vadd.f32 0.0, %v3002
        %v3004 = vpop.f32.mrf.mxu0
        %v3005 = vadd.f32 0.0, %v3004
        %v3006 = vpop.f32.mrf.mxu0
        %v3007 = vadd.f32 0.0, %v3006
        %v3008 = vpop.f32.mrf.mxu0
        %v3009 = vadd.f32 0.0, %v3008
        %3010 = vmatprep.mubr.bf16.mxu0 0
        %3011 = vmatmul.mubr.bf16.gmra.mxu0 %v1654
        %v3012 = vpop.f32.mrf.mxu0
        %v3013 = vadd.f32 0.0, %v3012
        %v3014 = vpop.f32.mrf.mxu0
        %v3015 = vadd.f32 0.0, %v3014
        %v3016 = vpop.f32.mrf.mxu0
        %v3017 = vadd.f32 0.0, %v3016
        %v3018 = vpop.f32.mrf.mxu0
        %v3019 = vadd.f32 0.0, %v3018
        %3020 = vmatprep.mubr.bf16.mxu0 0
        %3021 = vmatmul.mubr.bf16.gmra.mxu0 %v1657
        %v3022 = vpop.f32.mrf.mxu0
        %v3023 = vadd.f32 0.0, %v3022
        %v3024 = vpop.f32.mrf.mxu0
        %v3025 = vadd.f32 0.0, %v3024
        %v3026 = vpop.f32.mrf.mxu0
        %v3027 = vadd.f32 0.0, %v3026
        %v3028 = vpop.f32.mrf.mxu0
        %v3029 = vadd.f32 0.0, %v3028
        %3030 = vmatprep.mubr.bf16.mxu0 0
        %3031 = vmatmul.mubr.bf16.gmra.mxu0 %v1660
        %v3032 = vpop.f32.mrf.mxu0
        %v3033 = vadd.f32 0.0, %v3032
        %v3034 = vpop.f32.mrf.mxu0
        %v3035 = vadd.f32 0.0, %v3034
        %v3036 = vpop.f32.mrf.mxu0
        %v3037 = vadd.f32 0.0, %v3036
        %v3038 = vpop.f32.mrf.mxu0
        %v3039 = vadd.f32 0.0, %v3038
        %3040 = vmatprep.mubr.bf16.mxu0 0
        %3041 = vmatmul.mubr.bf16.gmra.mxu0 %v1663
        %v3042 = vpop.f32.mrf.mxu0
        %v3043 = vadd.f32 0.0, %v3042
        %v3044 = vpop.f32.mrf.mxu0
        %v3045 = vadd.f32 0.0, %v3044
        %v3046 = vpop.f32.mrf.mxu0
        %v3047 = vadd.f32 0.0, %v3046
        %v3048 = vpop.f32.mrf.mxu0
        %v3049 = vadd.f32 0.0, %v3048
        %3050 = vmatprep.mubr.bf16.mxu0 0
        %3051 = vmatmul.mubr.bf16.gmra.mxu0 %v1666
        %v3052 = vpop.f32.mrf.mxu0
        %v3053 = vadd.f32 0.0, %v3052
        %v3054 = vpop.f32.mrf.mxu0
        %v3055 = vadd.f32 0.0, %v3054
        %v3056 = vpop.f32.mrf.mxu0
        %v3057 = vadd.f32 0.0, %v3056
        %v3058 = vpop.f32.mrf.mxu0
        %v3059 = vadd.f32 0.0, %v3058
        %3060 = vdwg.mxu0
        %v3061 = vmax.f32 %v1703, 0.0
        %v3062 = vmax.f32 %v1705, 0.0
        %v3063 = vmax.f32 %v1707, 0.0
        %v3064 = vmax.f32 %v1709, 0.0
        %v3065 = vmax.f32 %v1713, 0.0
        %v3066 = vmax.f32 %v1715, 0.0
        %v3067 = vmax.f32 %v1717, 0.0
        %v3068 = vmax.f32 %v1719, 0.0
        %v3069 = vmax.f32 %v1723, 0.0
        %v3070 = vmax.f32 %v1725, 0.0
        %v3071 = vmax.f32 %v1727, 0.0
        %v3072 = vmax.f32 %v1729, 0.0
        %v3073 = vmax.f32 %v1733, 0.0
        %v3074 = vmax.f32 %v1735, 0.0
        %v3075 = vmax.f32 %v1737, 0.0
        %v3076 = vmax.f32 %v1739, 0.0
        %v3077 = vmax.f32 %v1743, 0.0
        %v3078 = vmax.f32 %v1745, 0.0
        %v3079 = vmax.f32 %v1747, 0.0
        %v3080 = vmax.f32 %v1749, 0.0
        %v3081 = vmax.f32 %v1753, 0.0
        %v3082 = vmax.f32 %v1755, 0.0
        %v3083 = vmax.f32 %v1757, 0.0
        %v3084 = vmax.f32 %v1759, 0.0
        %v3085 = vmax.f32 %v1763, 0.0
        %v3086 = vmax.f32 %v1765, 0.0
        %v3087 = vmax.f32 %v1767, 0.0
        %v3088 = vmax.f32 %v1769, 0.0
        %v3089 = vmax.f32 %v1773, 0.0
        %v3090 = vmax.f32 %v1775, 0.0
        %v3091 = vmax.f32 %v1777, 0.0
        %v3092 = vmax.f32 %v1779, 0.0
        %v3093 = vmax.f32 %v1783, 0.0
        %v3094 = vmax.f32 %v1785, 0.0
        %v3095 = vmax.f32 %v1787, 0.0
        %v3096 = vmax.f32 %v1789, 0.0
        %v3097 = vmax.f32 %v1793, 0.0
        %v3098 = vmax.f32 %v1795, 0.0
        %v3099 = vmax.f32 %v1797, 0.0
        %v3100 = vmax.f32 %v1799, 0.0
        %v3101 = vmax.f32 %v1803, 0.0
        %v3102 = vmax.f32 %v1805, 0.0
        %v3103 = vmax.f32 %v1807, 0.0
        %v3104 = vmax.f32 %v1809, 0.0
        %v3105 = vmax.f32 %v1813, 0.0
        %v3106 = vmax.f32 %v1815, 0.0
        %v3107 = vmax.f32 %v1817, 0.0
        %v3108 = vmax.f32 %v1819, 0.0
        %v3109 = vmax.f32 %v1823, 0.0
        %v3110 = vmax.f32 %v1825, 0.0
        %v3111 = vmax.f32 %v1827, 0.0
        %v3112 = vmax.f32 %v1829, 0.0
        %v3113 = vmax.f32 %v1833, 0.0
        %v3114 = vmax.f32 %v1835, 0.0
        %v3115 = vmax.f32 %v1837, 0.0
        %v3116 = vmax.f32 %v1839, 0.0
        %v3117 = vmax.f32 %v1843, 0.0
        %v3118 = vmax.f32 %v1845, 0.0
        %v3119 = vmax.f32 %v1847, 0.0
        %v3120 = vmax.f32 %v1849, 0.0
        %v3121 = vmax.f32 %v1853, 0.0
        %v3122 = vmax.f32 %v1855, 0.0
        %v3123 = vmax.f32 %v1857, 0.0
        %v3124 = vmax.f32 %v1859, 0.0
        %v3125 = vmax.f32 %v1863, 0.0
        %v3126 = vmax.f32 %v1865, 0.0
        %v3127 = vmax.f32 %v1867, 0.0
        %v3128 = vmax.f32 %v1869, 0.0
        %v3129 = vmax.f32 %v1873, 0.0
        %v3130 = vmax.f32 %v1875, 0.0
        %v3131 = vmax.f32 %v1877, 0.0
        %v3132 = vmax.f32 %v1879, 0.0
        %v3133 = vmax.f32 %v1883, 0.0
        %v3134 = vmax.f32 %v1885, 0.0
        %v3135 = vmax.f32 %v1887, 0.0
        %v3136 = vmax.f32 %v1889, 0.0
        %v3137 = vmax.f32 %v1893, 0.0
        %v3138 = vmax.f32 %v1895, 0.0
        %v3139 = vmax.f32 %v1897, 0.0
        %v3140 = vmax.f32 %v1899, 0.0
        %v3141 = vmax.f32 %v1903, 0.0
        %v3142 = vmax.f32 %v1905, 0.0
        %v3143 = vmax.f32 %v1907, 0.0
        %v3144 = vmax.f32 %v1909, 0.0
        %v3145 = vmax.f32 %v1913, 0.0
        %v3146 = vmax.f32 %v1915, 0.0
        %v3147 = vmax.f32 %v1917, 0.0
        %v3148 = vmax.f32 %v1919, 0.0
        %v3149 = vmax.f32 %v1923, 0.0
        %v3150 = vmax.f32 %v1925, 0.0
        %v3151 = vmax.f32 %v1927, 0.0
        %v3152 = vmax.f32 %v1929, 0.0
        %v3153 = vmax.f32 %v1933, 0.0
        %v3154 = vmax.f32 %v1935, 0.0
        %v3155 = vmax.f32 %v1937, 0.0
        %v3156 = vmax.f32 %v1939, 0.0
        %v3157 = vmax.f32 %v1943, 0.0
        %v3158 = vmax.f32 %v1945, 0.0
        %v3159 = vmax.f32 %v1947, 0.0
        %v3160 = vmax.f32 %v1949, 0.0
        %v3161 = vmax.f32 %v1953, 0.0
        %v3162 = vmax.f32 %v1955, 0.0
        %v3163 = vmax.f32 %v1957, 0.0
        %v3164 = vmax.f32 %v1959, 0.0
        %v3165 = vmax.f32 %v1963, 0.0
        %v3166 = vmax.f32 %v1965, 0.0
        %v3167 = vmax.f32 %v1967, 0.0
        %v3168 = vmax.f32 %v1969, 0.0
        %v3169 = vmax.f32 %v1973, 0.0
        %v3170 = vmax.f32 %v1975, 0.0
        %v3171 = vmax.f32 %v1977, 0.0
        %v3172 = vmax.f32 %v1979, 0.0
        %v3173 = vmax.f32 %v1983, 0.0
        %v3174 = vmax.f32 %v1985, 0.0
        %v3175 = vmax.f32 %v1987, 0.0
        %v3176 = vmax.f32 %v1989, 0.0
        %v3177 = vmax.f32 %v1993, 0.0
        %v3178 = vmax.f32 %v1995, 0.0
        %v3179 = vmax.f32 %v1997, 0.0
        %v3180 = vmax.f32 %v1999, 0.0
        %v3181 = vmax.f32 %v2003, 0.0
        %v3182 = vmax.f32 %v2005, 0.0
        %v3183 = vmax.f32 %v2007, 0.0
        %v3184 = vmax.f32 %v2009, 0.0
        %v3185 = vmax.f32 %v2013, 0.0
        %v3186 = vmax.f32 %v2015, 0.0
        %v3187 = vmax.f32 %v2017, 0.0
        %v3188 = vmax.f32 %v2019, 0.0
        %v3189 = vmax.f32 %v2023, 0.0
        %v3190 = vmax.f32 %v2025, 0.0
        %v3191 = vmax.f32 %v2027, 0.0
        %v3192 = vmax.f32 %v2029, 0.0
        %v3193 = vmax.f32 %v2033, 0.0
        %v3194 = vmax.f32 %v2035, 0.0
        %v3195 = vmax.f32 %v2037, 0.0
        %v3196 = vmax.f32 %v2039, 0.0
        %v3197 = vmax.f32 %v2043, 0.0
        %v3198 = vmax.f32 %v2045, 0.0
        %v3199 = vmax.f32 %v2047, 0.0
        %v3200 = vmax.f32 %v2049, 0.0
        %v3201 = vmax.f32 %v2053, 0.0
        %v3202 = vmax.f32 %v2055, 0.0
        %v3203 = vmax.f32 %v2057, 0.0
        %v3204 = vmax.f32 %v2059, 0.0
        %v3205 = vmax.f32 %v2063, 0.0
        %v3206 = vmax.f32 %v2065, 0.0
        %v3207 = vmax.f32 %v2067, 0.0
        %v3208 = vmax.f32 %v2069, 0.0
        %v3209 = vmax.f32 %v2073, 0.0
        %v3210 = vmax.f32 %v2075, 0.0
        %v3211 = vmax.f32 %v2077, 0.0
        %v3212 = vmax.f32 %v2079, 0.0
        %v3213 = vmax.f32 %v2083, 0.0
        %v3214 = vmax.f32 %v2085, 0.0
        %v3215 = vmax.f32 %v2087, 0.0
        %v3216 = vmax.f32 %v2089, 0.0
        %v3217 = vmax.f32 %v2093, 0.0
        %v3218 = vmax.f32 %v2095, 0.0
        %v3219 = vmax.f32 %v2097, 0.0
        %v3220 = vmax.f32 %v2099, 0.0
        %v3221 = vmax.f32 %v2103, 0.0
        %v3222 = vmax.f32 %v2105, 0.0
        %v3223 = vmax.f32 %v2107, 0.0
        %v3224 = vmax.f32 %v2109, 0.0
        %v3225 = vmax.f32 %v2113, 0.0
        %v3226 = vmax.f32 %v2115, 0.0
        %v3227 = vmax.f32 %v2117, 0.0
        %v3228 = vmax.f32 %v2119, 0.0
        %v3229 = vmax.f32 %v2123, 0.0
        %v3230 = vmax.f32 %v2125, 0.0
        %v3231 = vmax.f32 %v2127, 0.0
        %v3232 = vmax.f32 %v2129, 0.0
        %v3233 = vmax.f32 %v2133, 0.0
        %v3234 = vmax.f32 %v2135, 0.0
        %v3235 = vmax.f32 %v2137, 0.0
        %v3236 = vmax.f32 %v2139, 0.0
        %v3237 = vmax.f32 %v2143, 0.0
        %v3238 = vmax.f32 %v2145, 0.0
        %v3239 = vmax.f32 %v2147, 0.0
        %v3240 = vmax.f32 %v2149, 0.0
        %v3241 = vmax.f32 %v2153, 0.0
        %v3242 = vmax.f32 %v2155, 0.0
        %v3243 = vmax.f32 %v2157, 0.0
        %v3244 = vmax.f32 %v2159, 0.0
        %v3245 = vmax.f32 %v2163, 0.0
        %v3246 = vmax.f32 %v2165, 0.0
        %v3247 = vmax.f32 %v2167, 0.0
        %v3248 = vmax.f32 %v2169, 0.0
        %v3249 = vmax.f32 %v2173, 0.0
        %v3250 = vmax.f32 %v2175, 0.0
        %v3251 = vmax.f32 %v2177, 0.0
        %v3252 = vmax.f32 %v2179, 0.0
        %v3253 = vmax.f32 %v2183, 0.0
        %v3254 = vmax.f32 %v2185, 0.0
        %v3255 = vmax.f32 %v2187, 0.0
        %v3256 = vmax.f32 %v2189, 0.0
        %v3257 = vmax.f32 %v2193, 0.0
        %v3258 = vmax.f32 %v2195, 0.0
        %v3259 = vmax.f32 %v2197, 0.0
        %v3260 = vmax.f32 %v2199, 0.0
        %v3261 = vmax.f32 %v2203, 0.0
        %v3262 = vmax.f32 %v2205, 0.0
        %v3263 = vmax.f32 %v2207, 0.0
        %v3264 = vmax.f32 %v2209, 0.0
        %v3265 = vmax.f32 %v2213, 0.0
        %v3266 = vmax.f32 %v2215, 0.0
        %v3267 = vmax.f32 %v2217, 0.0
        %v3268 = vmax.f32 %v2219, 0.0
        %v3269 = vmax.f32 %v2223, 0.0
        %v3270 = vmax.f32 %v2225, 0.0
        %v3271 = vmax.f32 %v2227, 0.0
        %v3272 = vmax.f32 %v2229, 0.0
        %v3273 = vmax.f32 %v2233, 0.0
        %v3274 = vmax.f32 %v2235, 0.0
        %v3275 = vmax.f32 %v2237, 0.0
        %v3276 = vmax.f32 %v2239, 0.0
        %v3277 = vmax.f32 %v2243, 0.0
        %v3278 = vmax.f32 %v2245, 0.0
        %v3279 = vmax.f32 %v2247, 0.0
        %v3280 = vmax.f32 %v2249, 0.0
        %v3281 = vmax.f32 %v2253, 0.0
        %v3282 = vmax.f32 %v2255, 0.0
        %v3283 = vmax.f32 %v2257, 0.0
        %v3284 = vmax.f32 %v2259, 0.0
        %v3285 = vmax.f32 %v2263, 0.0
        %v3286 = vmax.f32 %v2265, 0.0
        %v3287 = vmax.f32 %v2267, 0.0
        %v3288 = vmax.f32 %v2269, 0.0
        %v3289 = vmax.f32 %v2273, 0.0
        %v3290 = vmax.f32 %v2275, 0.0
        %v3291 = vmax.f32 %v2277, 0.0
        %v3292 = vmax.f32 %v2279, 0.0
        %v3293 = vmax.f32 %v2283, 0.0
        %v3294 = vmax.f32 %v2285, 0.0
        %v3295 = vmax.f32 %v2287, 0.0
        %v3296 = vmax.f32 %v2289, 0.0
        %v3297 = vmax.f32 %v2293, 0.0
        %v3298 = vmax.f32 %v2295, 0.0
        %v3299 = vmax.f32 %v2297, 0.0
        %v3300 = vmax.f32 %v2299, 0.0
        %v3301 = vmax.f32 %v2303, 0.0
        %v3302 = vmax.f32 %v2305, 0.0
        %v3303 = vmax.f32 %v2307, 0.0
        %v3304 = vmax.f32 %v2309, 0.0
        %v3305 = vmax.f32 %v2313, 0.0
        %v3306 = vmax.f32 %v2315, 0.0
        %v3307 = vmax.f32 %v2317, 0.0
        %v3308 = vmax.f32 %v2319, 0.0
        %v3309 = vmax.f32 %v2323, 0.0
        %v3310 = vmax.f32 %v2325, 0.0
        %v3311 = vmax.f32 %v2327, 0.0
        %v3312 = vmax.f32 %v2329, 0.0
        %v3313 = vmax.f32 %v2333, 0.0
        %v3314 = vmax.f32 %v2335, 0.0
        %v3315 = vmax.f32 %v2337, 0.0
        %v3316 = vmax.f32 %v2339, 0.0
        %v3317 = vmax.f32 %v2343, 0.0
        %v3318 = vmax.f32 %v2345, 0.0
        %v3319 = vmax.f32 %v2347, 0.0
        %v3320 = vmax.f32 %v2349, 0.0
        %v3321 = vmax.f32 %v2353, 0.0
        %v3322 = vmax.f32 %v2355, 0.0
        %v3323 = vmax.f32 %v2357, 0.0
        %v3324 = vmax.f32 %v2359, 0.0
        %v3325 = vmax.f32 %v2363, 0.0
        %v3326 = vmax.f32 %v2365, 0.0
        %v3327 = vmax.f32 %v2367, 0.0
        %v3328 = vmax.f32 %v2369, 0.0
        %v3329 = vmax.f32 %v2373, 0.0
        %v3330 = vmax.f32 %v2375, 0.0
        %v3331 = vmax.f32 %v2377, 0.0
        %v3332 = vmax.f32 %v2379, 0.0
        %v3333 = vmax.f32 %v2383, 0.0
        %v3334 = vmax.f32 %v2385, 0.0
        %v3335 = vmax.f32 %v2387, 0.0
        %v3336 = vmax.f32 %v2389, 0.0
        %v3337 = vmax.f32 %v2393, 0.0
        %v3338 = vmax.f32 %v2395, 0.0
        %v3339 = vmax.f32 %v2397, 0.0
        %v3340 = vmax.f32 %v2399, 0.0
        %v3341 = vmax.f32 %v2403, 0.0
        %v3342 = vmax.f32 %v2405, 0.0
        %v3343 = vmax.f32 %v2407, 0.0
        %v3344 = vmax.f32 %v2409, 0.0
        %v3345 = vmax.f32 %v2413, 0.0
        %v3346 = vmax.f32 %v2415, 0.0
        %v3347 = vmax.f32 %v2417, 0.0
        %v3348 = vmax.f32 %v2419, 0.0
        %v3349 = vmax.f32 %v2423, 0.0
        %v3350 = vmax.f32 %v2425, 0.0
        %v3351 = vmax.f32 %v2427, 0.0
        %v3352 = vmax.f32 %v2429, 0.0
        %v3353 = vmax.f32 %v2433, 0.0
        %v3354 = vmax.f32 %v2435, 0.0
        %v3355 = vmax.f32 %v2437, 0.0
        %v3356 = vmax.f32 %v2439, 0.0
        %v3357 = vmax.f32 %v2443, 0.0
        %v3358 = vmax.f32 %v2445, 0.0
        %v3359 = vmax.f32 %v2447, 0.0
        %v3360 = vmax.f32 %v2449, 0.0
        %v3361 = vmax.f32 %v2453, 0.0
        %v3362 = vmax.f32 %v2455, 0.0
        %v3363 = vmax.f32 %v2457, 0.0
        %v3364 = vmax.f32 %v2459, 0.0
        %v3365 = vmax.f32 %v2463, 0.0
        %v3366 = vmax.f32 %v2465, 0.0
        %v3367 = vmax.f32 %v2467, 0.0
        %v3368 = vmax.f32 %v2469, 0.0
        %v3369 = vmax.f32 %v2473, 0.0
        %v3370 = vmax.f32 %v2475, 0.0
        %v3371 = vmax.f32 %v2477, 0.0
        %v3372 = vmax.f32 %v2479, 0.0
        %v3373 = vmax.f32 %v2483, 0.0
        %v3374 = vmax.f32 %v2485, 0.0
        %v3375 = vmax.f32 %v2487, 0.0
        %v3376 = vmax.f32 %v2489, 0.0
        %v3377 = vmax.f32 %v2493, 0.0
        %v3378 = vmax.f32 %v2495, 0.0
        %v3379 = vmax.f32 %v2497, 0.0
        %v3380 = vmax.f32 %v2499, 0.0
        %v3381 = vmax.f32 %v2503, 0.0
        %v3382 = vmax.f32 %v2505, 0.0
        %v3383 = vmax.f32 %v2507, 0.0
        %v3384 = vmax.f32 %v2509, 0.0
        %v3385 = vmax.f32 %v2513, 0.0
        %v3386 = vmax.f32 %v2515, 0.0
        %v3387 = vmax.f32 %v2517, 0.0
        %v3388 = vmax.f32 %v2519, 0.0
        %v3389 = vmax.f32 %v2523, 0.0
        %v3390 = vmax.f32 %v2525, 0.0
        %v3391 = vmax.f32 %v2527, 0.0
        %v3392 = vmax.f32 %v2529, 0.0
        %v3393 = vmax.f32 %v2533, 0.0
        %v3394 = vmax.f32 %v2535, 0.0
        %v3395 = vmax.f32 %v2537, 0.0
        %v3396 = vmax.f32 %v2539, 0.0
        %v3397 = vmax.f32 %v2543, 0.0
        %v3398 = vmax.f32 %v2545, 0.0
        %v3399 = vmax.f32 %v2547, 0.0
        %v3400 = vmax.f32 %v2549, 0.0
        %v3401 = vmax.f32 %v2553, 0.0
        %v3402 = vmax.f32 %v2555, 0.0
        %v3403 = vmax.f32 %v2557, 0.0
        %v3404 = vmax.f32 %v2559, 0.0
        %v3405 = vmax.f32 %v2563, 0.0
        %v3406 = vmax.f32 %v2565, 0.0
        %v3407 = vmax.f32 %v2567, 0.0
        %v3408 = vmax.f32 %v2569, 0.0
        %v3409 = vmax.f32 %v2573, 0.0
        %v3410 = vmax.f32 %v2575, 0.0
        %v3411 = vmax.f32 %v2577, 0.0
        %v3412 = vmax.f32 %v2579, 0.0
        %v3413 = vmax.f32 %v2583, 0.0
        %v3414 = vmax.f32 %v2585, 0.0
        %v3415 = vmax.f32 %v2587, 0.0
        %v3416 = vmax.f32 %v2589, 0.0
        %v3417 = vmax.f32 %v2593, 0.0
        %v3418 = vmax.f32 %v2595, 0.0
        %v3419 = vmax.f32 %v2597, 0.0
        %v3420 = vmax.f32 %v2599, 0.0
        %v3421 = vmax.f32 %v2603, 0.0
        %v3422 = vmax.f32 %v2605, 0.0
        %v3423 = vmax.f32 %v2607, 0.0
        %v3424 = vmax.f32 %v2609, 0.0
        %v3425 = vmax.f32 %v2613, 0.0
        %v3426 = vmax.f32 %v2615, 0.0
        %v3427 = vmax.f32 %v2617, 0.0
        %v3428 = vmax.f32 %v2619, 0.0
        %v3429 = vmax.f32 %v2623, 0.0
        %v3430 = vmax.f32 %v2625, 0.0
        %v3431 = vmax.f32 %v2627, 0.0
        %v3432 = vmax.f32 %v2629, 0.0
        %v3433 = vmax.f32 %v2633, 0.0
        %v3434 = vmax.f32 %v2635, 0.0
        %v3435 = vmax.f32 %v2637, 0.0
        %v3436 = vmax.f32 %v2639, 0.0
        %v3437 = vmax.f32 %v2643, 0.0
        %v3438 = vmax.f32 %v2645, 0.0
        %v3439 = vmax.f32 %v2647, 0.0
        %v3440 = vmax.f32 %v2649, 0.0
        %v3441 = vmax.f32 %v2653, 0.0
        %v3442 = vmax.f32 %v2655, 0.0
        %v3443 = vmax.f32 %v2657, 0.0
        %v3444 = vmax.f32 %v2659, 0.0
        %v3445 = vmax.f32 %v2663, 0.0
        %v3446 = vmax.f32 %v2665, 0.0
        %v3447 = vmax.f32 %v2667, 0.0
        %v3448 = vmax.f32 %v2669, 0.0
        %v3449 = vmax.f32 %v2673, 0.0
        %v3450 = vmax.f32 %v2675, 0.0
        %v3451 = vmax.f32 %v2677, 0.0
        %v3452 = vmax.f32 %v2679, 0.0
        %v3453 = vmax.f32 %v2683, 0.0
        %v3454 = vmax.f32 %v2685, 0.0
        %v3455 = vmax.f32 %v2687, 0.0
        %v3456 = vmax.f32 %v2689, 0.0
        %v3457 = vmax.f32 %v2693, 0.0
        %v3458 = vmax.f32 %v2695, 0.0
        %v3459 = vmax.f32 %v2697, 0.0
        %v3460 = vmax.f32 %v2699, 0.0
        %v3461 = vmax.f32 %v2703, 0.0
        %v3462 = vmax.f32 %v2705, 0.0
        %v3463 = vmax.f32 %v2707, 0.0
        %v3464 = vmax.f32 %v2709, 0.0
        %v3465 = vmax.f32 %v2713, 0.0
        %v3466 = vmax.f32 %v2715, 0.0
        %v3467 = vmax.f32 %v2717, 0.0
        %v3468 = vmax.f32 %v2719, 0.0
        %v3469 = vmax.f32 %v2723, 0.0
        %v3470 = vmax.f32 %v2725, 0.0
        %v3471 = vmax.f32 %v2727, 0.0
        %v3472 = vmax.f32 %v2729, 0.0
        %v3473 = vmax.f32 %v2733, 0.0
        %v3474 = vmax.f32 %v2735, 0.0
        %v3475 = vmax.f32 %v2737, 0.0
        %v3476 = vmax.f32 %v2739, 0.0
        %v3477 = vmax.f32 %v2743, 0.0
        %v3478 = vmax.f32 %v2745, 0.0
        %v3479 = vmax.f32 %v2747, 0.0
        %v3480 = vmax.f32 %v2749, 0.0
        %v3481 = vmax.f32 %v2753, 0.0
        %v3482 = vmax.f32 %v2755, 0.0
        %v3483 = vmax.f32 %v2757, 0.0
        %v3484 = vmax.f32 %v2759, 0.0
        %v3485 = vmax.f32 %v2763, 0.0
        %v3486 = vmax.f32 %v2765, 0.0
        %v3487 = vmax.f32 %v2767, 0.0
        %v3488 = vmax.f32 %v2769, 0.0
        %v3489 = vmax.f32 %v2773, 0.0
        %v3490 = vmax.f32 %v2775, 0.0
        %v3491 = vmax.f32 %v2777, 0.0
        %v3492 = vmax.f32 %v2779, 0.0
        %v3493 = vmax.f32 %v2783, 0.0
        %v3494 = vmax.f32 %v2785, 0.0
        %v3495 = vmax.f32 %v2787, 0.0
        %v3496 = vmax.f32 %v2789, 0.0
        %v3497 = vmax.f32 %v2793, 0.0
        %v3498 = vmax.f32 %v2795, 0.0
        %v3499 = vmax.f32 %v2797, 0.0
        %v3500 = vmax.f32 %v2799, 0.0
        %v3501 = vmax.f32 %v2803, 0.0
        %v3502 = vmax.f32 %v2805, 0.0
        %v3503 = vmax.f32 %v2807, 0.0
        %v3504 = vmax.f32 %v2809, 0.0
        %v3505 = vmax.f32 %v2813, 0.0
        %v3506 = vmax.f32 %v2815, 0.0
        %v3507 = vmax.f32 %v2817, 0.0
        %v3508 = vmax.f32 %v2819, 0.0
        %v3509 = vmax.f32 %v2823, 0.0
        %v3510 = vmax.f32 %v2825, 0.0
        %v3511 = vmax.f32 %v2827, 0.0
        %v3512 = vmax.f32 %v2829, 0.0
        %v3513 = vmax.f32 %v2833, 0.0
        %v3514 = vmax.f32 %v2835, 0.0
        %v3515 = vmax.f32 %v2837, 0.0
        %v3516 = vmax.f32 %v2839, 0.0
        %v3517 = vmax.f32 %v2843, 0.0
        %v3518 = vmax.f32 %v2845, 0.0
        %v3519 = vmax.f32 %v2847, 0.0
        %v3520 = vmax.f32 %v2849, 0.0
        %v3521 = vmax.f32 %v2853, 0.0
        %v3522 = vmax.f32 %v2855, 0.0
        %v3523 = vmax.f32 %v2857, 0.0
        %v3524 = vmax.f32 %v2859, 0.0
        %v3525 = vmax.f32 %v2863, 0.0
        %v3526 = vmax.f32 %v2865, 0.0
        %v3527 = vmax.f32 %v2867, 0.0
        %v3528 = vmax.f32 %v2869, 0.0
        %v3529 = vmax.f32 %v2873, 0.0
        %v3530 = vmax.f32 %v2875, 0.0
        %v3531 = vmax.f32 %v2877, 0.0
        %v3532 = vmax.f32 %v2879, 0.0
        %v3533 = vmax.f32 %v2883, 0.0
        %v3534 = vmax.f32 %v2885, 0.0
        %v3535 = vmax.f32 %v2887, 0.0
        %v3536 = vmax.f32 %v2889, 0.0
        %v3537 = vmax.f32 %v2893, 0.0
        %v3538 = vmax.f32 %v2895, 0.0
        %v3539 = vmax.f32 %v2897, 0.0
        %v3540 = vmax.f32 %v2899, 0.0
        %v3541 = vmax.f32 %v2903, 0.0
        %v3542 = vmax.f32 %v2905, 0.0
        %v3543 = vmax.f32 %v2907, 0.0
        %v3544 = vmax.f32 %v2909, 0.0
        %v3545 = vmax.f32 %v2913, 0.0
        %v3546 = vmax.f32 %v2915, 0.0
        %v3547 = vmax.f32 %v2917, 0.0
        %v3548 = vmax.f32 %v2919, 0.0
        %v3549 = vmax.f32 %v2923, 0.0
        %v3550 = vmax.f32 %v2925, 0.0
        %v3551 = vmax.f32 %v2927, 0.0
        %v3552 = vmax.f32 %v2929, 0.0
        %v3553 = vmax.f32 %v2933, 0.0
        %v3554 = vmax.f32 %v2935, 0.0
        %v3555 = vmax.f32 %v2937, 0.0
        %v3556 = vmax.f32 %v2939, 0.0
        %v3557 = vmax.f32 %v2943, 0.0
        %v3558 = vmax.f32 %v2945, 0.0
        %v3559 = vmax.f32 %v2947, 0.0
        %v3560 = vmax.f32 %v2949, 0.0
        %v3561 = vmax.f32 %v2953, 0.0
        %v3562 = vmax.f32 %v2955, 0.0
        %v3563 = vmax.f32 %v2957, 0.0
        %v3564 = vmax.f32 %v2959, 0.0
        %v3565 = vmax.f32 %v2963, 0.0
        %v3566 = vmax.f32 %v2965, 0.0
        %v3567 = vmax.f32 %v2967, 0.0
        %v3568 = vmax.f32 %v2969, 0.0
        %v3569 = vmax.f32 %v2973, 0.0
        %v3570 = vmax.f32 %v2975, 0.0
        %v3571 = vmax.f32 %v2977, 0.0
        %v3572 = vmax.f32 %v2979, 0.0
        %v3573 = vmax.f32 %v2983, 0.0
        %v3574 = vmax.f32 %v2985, 0.0
        %v3575 = vmax.f32 %v2987, 0.0
        %v3576 = vmax.f32 %v2989, 0.0
        %v3577 = vmax.f32 %v2993, 0.0
        %v3578 = vmax.f32 %v2995, 0.0
        %v3579 = vmax.f32 %v2997, 0.0
        %v3580 = vmax.f32 %v2999, 0.0
        %v3581 = vmax.f32 %v3003, 0.0
        %v3582 = vmax.f32 %v3005, 0.0
        %v3583 = vmax.f32 %v3007, 0.0
        %v3584 = vmax.f32 %v3009, 0.0
        %v3585 = vmax.f32 %v3013, 0.0
        %v3586 = vmax.f32 %v3015, 0.0
        %v3587 = vmax.f32 %v3017, 0.0
        %v3588 = vmax.f32 %v3019, 0.0
        %v3589 = vmax.f32 %v3023, 0.0
        %v3590 = vmax.f32 %v3025, 0.0
        %v3591 = vmax.f32 %v3027, 0.0
        %v3592 = vmax.f32 %v3029, 0.0
        %v3593 = vmax.f32 %v3033, 0.0
        %v3594 = vmax.f32 %v3035, 0.0
        %v3595 = vmax.f32 %v3037, 0.0
        %v3596 = vmax.f32 %v3039, 0.0
        %v3597 = vmax.f32 %v3043, 0.0
        %v3598 = vmax.f32 %v3045, 0.0
        %v3599 = vmax.f32 %v3047, 0.0
        %v3600 = vmax.f32 %v3049, 0.0
        %v3601 = vmax.f32 %v3053, 0.0
        %v3602 = vmax.f32 %v3055, 0.0
        %v3603 = vmax.f32 %v3057, 0.0
        %v3604 = vmax.f32 %v3059, 0.0
        %v3605 = vld [vmem:[%s273] sm:$0xff]
        %v3606 = vld [vmem:[%s273 + $0x8] sm:$0xff]
        %v3607 = vld [vmem:[%s273 + $0x10] sm:$0xff]
        %v3608 = vld [vmem:[%s273 + $0x18] sm:$0xff]
        %v3609 = vld [vmem:[%s273 + $0x20] sm:$0xff]
        %v3610 = vld [vmem:[%s273 + $0x28] sm:$0xff]
        %v3611 = vld [vmem:[%s273 + $0x30] sm:$0xff]
        %v3612 = vld [vmem:[%s273 + $0x38] sm:$0xff]
        %v3613 = vld [vmem:[%s273 + $0x40] sm:$0xff]
        %v3614 = vld [vmem:[%s273 + $0x48] sm:$0xff]
        %v3615 = vld [vmem:[%s273 + $0x50] sm:$0xff]
        %v3616 = vld [vmem:[%s273 + $0x58] sm:$0xff]
        %v3617 = vld [vmem:[%s273 + $0x60] sm:$0xff]
        %v3618 = vld [vmem:[%s273 + $0x68] sm:$0xff]
        %v3619 = vld [vmem:[%s273 + $0x70] sm:$0xff]
        %v3620 = vld [vmem:[%s273 + $0x78] sm:$0xff]
        %v3621 = vld [vmem:[%s273 + $0x80] sm:$0xff]
        %v3622 = vld [vmem:[%s273 + $0x88] sm:$0xff]
        %v3623 = vld [vmem:[%s273 + $0x90] sm:$0xff]
        %v3624 = vld [vmem:[%s273 + $0x98] sm:$0xff]
        %v3625 = vld [vmem:[%s273 + $0xa0] sm:$0xff]
        %v3626 = vld [vmem:[%s273 + $0xa8] sm:$0xff]
        %v3627 = vld [vmem:[%s273 + $0xb0] sm:$0xff]
        %v3628 = vld [vmem:[%s273 + $0xb8] sm:$0xff]
        %v3629 = vld [vmem:[%s273 + $0xc0] sm:$0xff]
        %v3630 = vld [vmem:[%s273 + $0xc8] sm:$0xff]
        %v3631 = vld [vmem:[%s273 + $0xd0] sm:$0xff]
        %v3632 = vld [vmem:[%s273 + $0xd8] sm:$0xff]
        %v3633 = vld [vmem:[%s273 + $0xe0] sm:$0xff]
        %v3634 = vld [vmem:[%s273 + $0xe8] sm:$0xff]
        %v3635 = vld [vmem:[%s273 + $0xf0] sm:$0xff]
        %v3636 = vld [vmem:[%s273 + $0xf8] sm:$0xff]
        %v3637 = vld [vmem:[%s273 + $0x100] sm:$0xff]
        %v3638 = vld [vmem:[%s273 + $0x108] sm:$0xff]
        %v3639 = vld [vmem:[%s273 + $0x110] sm:$0xff]
        %v3640 = vld [vmem:[%s273 + $0x118] sm:$0xff]
        %v3641 = vld [vmem:[%s273 + $0x120] sm:$0xff]
        %v3642 = vld [vmem:[%s273 + $0x128] sm:$0xff]
        %v3643 = vld [vmem:[%s273 + $0x130] sm:$0xff]
        %v3644 = vld [vmem:[%s273 + $0x138] sm:$0xff]
        %v3645 = vld [vmem:[%s273 + $0x140] sm:$0xff]
        %v3646 = vld [vmem:[%s273 + $0x148] sm:$0xff]
        %v3647 = vld [vmem:[%s273 + $0x150] sm:$0xff]
        %v3648 = vld [vmem:[%s273 + $0x158] sm:$0xff]
        %v3649 = vld [vmem:[%s273 + $0x160] sm:$0xff]
        %v3650 = vld [vmem:[%s273 + $0x168] sm:$0xff]
        %v3651 = vld [vmem:[%s273 + $0x170] sm:$0xff]
        %v3652 = vld [vmem:[%s273 + $0x178] sm:$0xff]
        %v3653 = vld [vmem:[%s273 + $0x180] sm:$0xff]
        %v3654 = vld [vmem:[%s273 + $0x188] sm:$0xff]
        %v3655 = vld [vmem:[%s273 + $0x190] sm:$0xff]
        %v3656 = vld [vmem:[%s273 + $0x198] sm:$0xff]
        %v3657 = vld [vmem:[%s273 + $0x1a0] sm:$0xff]
        %v3658 = vld [vmem:[%s273 + $0x1a8] sm:$0xff]
        %v3659 = vld [vmem:[%s273 + $0x1b0] sm:$0xff]
        %v3660 = vld [vmem:[%s273 + $0x1b8] sm:$0xff]
        %v3661 = vld [vmem:[%s273 + $0x1c0] sm:$0xff]
        %v3662 = vld [vmem:[%s273 + $0x1c8] sm:$0xff]
        %v3663 = vld [vmem:[%s273 + $0x1d0] sm:$0xff]
        %v3664 = vld [vmem:[%s273 + $0x1d8] sm:$0xff]
        %v3665 = vld [vmem:[%s273 + $0x1e0] sm:$0xff]
        %v3666 = vld [vmem:[%s273 + $0x1e8] sm:$0xff]
        %v3667 = vld [vmem:[%s273 + $0x1f0] sm:$0xff]
        %v3668 = vld [vmem:[%s273 + $0x1f8] sm:$0xff]
        %v3669 = vld [vmem:[%s273 + $0x200] sm:$0xff]
        %v3670 = vld [vmem:[%s273 + $0x208] sm:$0xff]
        %v3671 = vld [vmem:[%s273 + $0x210] sm:$0xff]
        %v3672 = vld [vmem:[%s273 + $0x218] sm:$0xff]
        %v3673 = vld [vmem:[%s273 + $0x220] sm:$0xff]
        %v3674 = vld [vmem:[%s273 + $0x228] sm:$0xff]
        %v3675 = vld [vmem:[%s273 + $0x230] sm:$0xff]
        %v3676 = vld [vmem:[%s273 + $0x238] sm:$0xff]
        %v3677 = vld [vmem:[%s273 + $0x240] sm:$0xff]
        %v3678 = vld [vmem:[%s273 + $0x248] sm:$0xff]
        %v3679 = vld [vmem:[%s273 + $0x250] sm:$0xff]
        %v3680 = vld [vmem:[%s273 + $0x258] sm:$0xff]
        %v3681 = vld [vmem:[%s273 + $0x260] sm:$0xff]
        %v3682 = vld [vmem:[%s273 + $0x268] sm:$0xff]
        %v3683 = vld [vmem:[%s273 + $0x270] sm:$0xff]
        %v3684 = vld [vmem:[%s273 + $0x278] sm:$0xff]
        %v3685 = vld [vmem:[%s273 + $0x280] sm:$0xff]
        %v3686 = vld [vmem:[%s273 + $0x288] sm:$0xff]
        %v3687 = vld [vmem:[%s273 + $0x290] sm:$0xff]
        %v3688 = vld [vmem:[%s273 + $0x298] sm:$0xff]
        %v3689 = vld [vmem:[%s273 + $0x2a0] sm:$0xff]
        %v3690 = vld [vmem:[%s273 + $0x2a8] sm:$0xff]
        %v3691 = vld [vmem:[%s273 + $0x2b0] sm:$0xff]
        %v3692 = vld [vmem:[%s273 + $0x2b8] sm:$0xff]
        %v3693 = vld [vmem:[%s273 + $0x2c0] sm:$0xff]
        %v3694 = vld [vmem:[%s273 + $0x2c8] sm:$0xff]
        %v3695 = vld [vmem:[%s273 + $0x2d0] sm:$0xff]
        %v3696 = vld [vmem:[%s273 + $0x2d8] sm:$0xff]
        %v3697 = vld [vmem:[%s273 + $0x2e0] sm:$0xff]
        %v3698 = vld [vmem:[%s273 + $0x2e8] sm:$0xff]
        %v3699 = vld [vmem:[%s273 + $0x2f0] sm:$0xff]
        %v3700 = vld [vmem:[%s273 + $0x2f8] sm:$0xff]
        %v3701 = vld [vmem:[%s273 + $0x300] sm:$0xff]
        %v3702 = vld [vmem:[%s273 + $0x308] sm:$0xff]
        %v3703 = vld [vmem:[%s273 + $0x310] sm:$0xff]
        %v3704 = vld [vmem:[%s273 + $0x318] sm:$0xff]
        %v3705 = vld [vmem:[%s273 + $0x320] sm:$0xff]
        %v3706 = vld [vmem:[%s273 + $0x328] sm:$0xff]
        %v3707 = vld [vmem:[%s273 + $0x330] sm:$0xff]
        %v3708 = vld [vmem:[%s273 + $0x338] sm:$0xff]
        %v3709 = vld [vmem:[%s273 + $0x340] sm:$0xff]
        %v3710 = vld [vmem:[%s273 + $0x348] sm:$0xff]
        %v3711 = vld [vmem:[%s273 + $0x350] sm:$0xff]
        %v3712 = vld [vmem:[%s273 + $0x358] sm:$0xff]
        %v3713 = vld [vmem:[%s273 + $0x360] sm:$0xff]
        %v3714 = vld [vmem:[%s273 + $0x368] sm:$0xff]
        %v3715 = vld [vmem:[%s273 + $0x370] sm:$0xff]
        %v3716 = vld [vmem:[%s273 + $0x378] sm:$0xff]
        %v3717 = vld [vmem:[%s273 + $0x380] sm:$0xff]
        %v3718 = vld [vmem:[%s273 + $0x388] sm:$0xff]
        %v3719 = vld [vmem:[%s273 + $0x390] sm:$0xff]
        %v3720 = vld [vmem:[%s273 + $0x398] sm:$0xff]
        %v3721 = vld [vmem:[%s273 + $0x3a0] sm:$0xff]
        %v3722 = vld [vmem:[%s273 + $0x3a8] sm:$0xff]
        %v3723 = vld [vmem:[%s273 + $0x3b0] sm:$0xff]
        %v3724 = vld [vmem:[%s273 + $0x3b8] sm:$0xff]
        %v3725 = vld [vmem:[%s273 + $0x3c0] sm:$0xff]
        %v3726 = vld [vmem:[%s273 + $0x3c8] sm:$0xff]
        %v3727 = vld [vmem:[%s273 + $0x3d0] sm:$0xff]
        %v3728 = vld [vmem:[%s273 + $0x3d8] sm:$0xff]
        %v3729 = vld [vmem:[%s273 + $0x3e0] sm:$0xff]
        %v3730 = vld [vmem:[%s273 + $0x3e8] sm:$0xff]
        %v3731 = vld [vmem:[%s273 + $0x3f0] sm:$0xff]
        %v3732 = vld [vmem:[%s273 + $0x3f8] sm:$0xff]
        %v3733 = vld [vmem:[%s273 + $0x400] sm:$0xff]
        %v3734 = vld [vmem:[%s273 + $0x408] sm:$0xff]
        %v3735 = vld [vmem:[%s273 + $0x410] sm:$0xff]
        %v3736 = vld [vmem:[%s273 + $0x418] sm:$0xff]
        %v3737 = vld [vmem:[%s273 + $0x420] sm:$0xff]
        %v3738 = vld [vmem:[%s273 + $0x428] sm:$0xff]
        %v3739 = vld [vmem:[%s273 + $0x430] sm:$0xff]
        %v3740 = vld [vmem:[%s273 + $0x438] sm:$0xff]
        %v3741 = vld [vmem:[%s273 + $0x440] sm:$0xff]
        %v3742 = vld [vmem:[%s273 + $0x448] sm:$0xff]
        %v3743 = vld [vmem:[%s273 + $0x450] sm:$0xff]
        %v3744 = vld [vmem:[%s273 + $0x458] sm:$0xff]
        %v3745 = vld [vmem:[%s273 + $0x460] sm:$0xff]
        %v3746 = vld [vmem:[%s273 + $0x468] sm:$0xff]
        %v3747 = vld [vmem:[%s273 + $0x470] sm:$0xff]
        %v3748 = vld [vmem:[%s273 + $0x478] sm:$0xff]
        %v3749 = vld [vmem:[%s273 + $0x480] sm:$0xff]
        %v3750 = vld [vmem:[%s273 + $0x488] sm:$0xff]
        %v3751 = vld [vmem:[%s273 + $0x490] sm:$0xff]
        %v3752 = vld [vmem:[%s273 + $0x498] sm:$0xff]
        %v3753 = vld [vmem:[%s273 + $0x4a0] sm:$0xff]
        %v3754 = vld [vmem:[%s273 + $0x4a8] sm:$0xff]
        %v3755 = vld [vmem:[%s273 + $0x4b0] sm:$0xff]
        %v3756 = vld [vmem:[%s273 + $0x4b8] sm:$0xff]
        %v3757 = vld [vmem:[%s273 + $0x4c0] sm:$0xff]
        %v3758 = vld [vmem:[%s273 + $0x4c8] sm:$0xff]
        %v3759 = vld [vmem:[%s273 + $0x4d0] sm:$0xff]
        %v3760 = vld [vmem:[%s273 + $0x4d8] sm:$0xff]
        %v3761 = vld [vmem:[%s273 + $0x4e0] sm:$0xff]
        %v3762 = vld [vmem:[%s273 + $0x4e8] sm:$0xff]
        %v3763 = vld [vmem:[%s273 + $0x4f0] sm:$0xff]
        %v3764 = vld [vmem:[%s273 + $0x4f8] sm:$0xff]
        %v3765 = vld [vmem:[%s273 + $0x500] sm:$0xff]
        %v3766 = vld [vmem:[%s273 + $0x508] sm:$0xff]
        %v3767 = vld [vmem:[%s273 + $0x510] sm:$0xff]
        %v3768 = vld [vmem:[%s273 + $0x518] sm:$0xff]
        %v3769 = vld [vmem:[%s273 + $0x520] sm:$0xff]
        %v3770 = vld [vmem:[%s273 + $0x528] sm:$0xff]
        %v3771 = vld [vmem:[%s273 + $0x530] sm:$0xff]
        %v3772 = vld [vmem:[%s273 + $0x538] sm:$0xff]
        %v3773 = vld [vmem:[%s273 + $0x540] sm:$0xff]
        %v3774 = vld [vmem:[%s273 + $0x548] sm:$0xff]
        %v3775 = vld [vmem:[%s273 + $0x550] sm:$0xff]
        %v3776 = vld [vmem:[%s273 + $0x558] sm:$0xff]
        %v3777 = vld [vmem:[%s273 + $0x560] sm:$0xff]
        %v3778 = vld [vmem:[%s273 + $0x568] sm:$0xff]
        %v3779 = vld [vmem:[%s273 + $0x570] sm:$0xff]
        %v3780 = vld [vmem:[%s273 + $0x578] sm:$0xff]
        %v3781 = vld [vmem:[%s273 + $0x580] sm:$0xff]
        %v3782 = vld [vmem:[%s273 + $0x588] sm:$0xff]
        %v3783 = vld [vmem:[%s273 + $0x590] sm:$0xff]
        %v3784 = vld [vmem:[%s273 + $0x598] sm:$0xff]
        %v3785 = vld [vmem:[%s273 + $0x5a0] sm:$0xff]
        %v3786 = vld [vmem:[%s273 + $0x5a8] sm:$0xff]
        %v3787 = vld [vmem:[%s273 + $0x5b0] sm:$0xff]
        %v3788 = vld [vmem:[%s273 + $0x5b8] sm:$0xff]
        %v3789 = vld [vmem:[%s273 + $0x5c0] sm:$0xff]
        %v3790 = vld [vmem:[%s273 + $0x5c8] sm:$0xff]
        %v3791 = vld [vmem:[%s273 + $0x5d0] sm:$0xff]
        %v3792 = vld [vmem:[%s273 + $0x5d8] sm:$0xff]
        %v3793 = vld [vmem:[%s273 + $0x5e0] sm:$0xff]
        %v3794 = vld [vmem:[%s273 + $0x5e8] sm:$0xff]
        %v3795 = vld [vmem:[%s273 + $0x5f0] sm:$0xff]
        %v3796 = vld [vmem:[%s273 + $0x5f8] sm:$0xff]
        %v3797 = vld [vmem:[%s273 + $0x600] sm:$0xff]
        %v3798 = vld [vmem:[%s273 + $0x608] sm:$0xff]
        %v3799 = vld [vmem:[%s273 + $0x610] sm:$0xff]
        %v3800 = vld [vmem:[%s273 + $0x618] sm:$0xff]
        %v3801 = vld [vmem:[%s273 + $0x620] sm:$0xff]
        %v3802 = vld [vmem:[%s273 + $0x628] sm:$0xff]
        %v3803 = vld [vmem:[%s273 + $0x630] sm:$0xff]
        %v3804 = vld [vmem:[%s273 + $0x638] sm:$0xff]
        %v3805 = vld [vmem:[%s273 + $0x640] sm:$0xff]
        %v3806 = vld [vmem:[%s273 + $0x648] sm:$0xff]
        %v3807 = vld [vmem:[%s273 + $0x650] sm:$0xff]
        %v3808 = vld [vmem:[%s273 + $0x658] sm:$0xff]
        %v3809 = vld [vmem:[%s273 + $0x660] sm:$0xff]
        %v3810 = vld [vmem:[%s273 + $0x668] sm:$0xff]
        %v3811 = vld [vmem:[%s273 + $0x670] sm:$0xff]
        %v3812 = vld [vmem:[%s273 + $0x678] sm:$0xff]
        %v3813 = vld [vmem:[%s273 + $0x680] sm:$0xff]
        %v3814 = vld [vmem:[%s273 + $0x688] sm:$0xff]
        %v3815 = vld [vmem:[%s273 + $0x690] sm:$0xff]
        %v3816 = vld [vmem:[%s273 + $0x698] sm:$0xff]
        %v3817 = vld [vmem:[%s273 + $0x6a0] sm:$0xff]
        %v3818 = vld [vmem:[%s273 + $0x6a8] sm:$0xff]
        %v3819 = vld [vmem:[%s273 + $0x6b0] sm:$0xff]
        %v3820 = vld [vmem:[%s273 + $0x6b8] sm:$0xff]
        %v3821 = vld [vmem:[%s273 + $0x6c0] sm:$0xff]
        %v3822 = vld [vmem:[%s273 + $0x6c8] sm:$0xff]
        %v3823 = vld [vmem:[%s273 + $0x6d0] sm:$0xff]
        %v3824 = vld [vmem:[%s273 + $0x6d8] sm:$0xff]
        %v3825 = vld [vmem:[%s273 + $0x6e0] sm:$0xff]
        %v3826 = vld [vmem:[%s273 + $0x6e8] sm:$0xff]
        %v3827 = vld [vmem:[%s273 + $0x6f0] sm:$0xff]
        %v3828 = vld [vmem:[%s273 + $0x6f8] sm:$0xff]
        %v3829 = vld [vmem:[%s273 + $0x700] sm:$0xff]
        %v3830 = vld [vmem:[%s273 + $0x708] sm:$0xff]
        %v3831 = vld [vmem:[%s273 + $0x710] sm:$0xff]
        %v3832 = vld [vmem:[%s273 + $0x718] sm:$0xff]
        %v3833 = vld [vmem:[%s273 + $0x720] sm:$0xff]
        %v3834 = vld [vmem:[%s273 + $0x728] sm:$0xff]
        %v3835 = vld [vmem:[%s273 + $0x730] sm:$0xff]
        %v3836 = vld [vmem:[%s273 + $0x738] sm:$0xff]
        %v3837 = vld [vmem:[%s273 + $0x740] sm:$0xff]
        %v3838 = vld [vmem:[%s273 + $0x748] sm:$0xff]
        %v3839 = vld [vmem:[%s273 + $0x750] sm:$0xff]
        %v3840 = vld [vmem:[%s273 + $0x758] sm:$0xff]
        %v3841 = vld [vmem:[%s273 + $0x760] sm:$0xff]
        %v3842 = vld [vmem:[%s273 + $0x768] sm:$0xff]
        %v3843 = vld [vmem:[%s273 + $0x770] sm:$0xff]
        %v3844 = vld [vmem:[%s273 + $0x778] sm:$0xff]
        %v3845 = vld [vmem:[%s273 + $0x780] sm:$0xff]
        %v3846 = vld [vmem:[%s273 + $0x788] sm:$0xff]
        %v3847 = vld [vmem:[%s273 + $0x790] sm:$0xff]
        %v3848 = vld [vmem:[%s273 + $0x798] sm:$0xff]
        %v3849 = vld [vmem:[%s273 + $0x7a0] sm:$0xff]
        %v3850 = vld [vmem:[%s273 + $0x7a8] sm:$0xff]
        %v3851 = vld [vmem:[%s273 + $0x7b0] sm:$0xff]
        %v3852 = vld [vmem:[%s273 + $0x7b8] sm:$0xff]
        %v3853 = vld [vmem:[%s273 + $0x7c0] sm:$0xff]
        %v3854 = vld [vmem:[%s273 + $0x7c8] sm:$0xff]
        %v3855 = vld [vmem:[%s273 + $0x7d0] sm:$0xff]
        %v3856 = vld [vmem:[%s273 + $0x7d8] sm:$0xff]
        %v3857 = vld [vmem:[%s273 + $0x7e0] sm:$0xff]
        %v3858 = vld [vmem:[%s273 + $0x7e8] sm:$0xff]
        %v3859 = vld [vmem:[%s273 + $0x7f0] sm:$0xff]
        %v3860 = vld [vmem:[%s273 + $0x7f8] sm:$0xff]
        %v3861 = vld [vmem:[%s273 + $0x800] sm:$0xff]
        %v3862 = vld [vmem:[%s273 + $0x808] sm:$0xff]
        %v3863 = vld [vmem:[%s273 + $0x810] sm:$0xff]
        %v3864 = vld [vmem:[%s273 + $0x818] sm:$0xff]
        %v3865 = vld [vmem:[%s273 + $0x820] sm:$0xff]
        %v3866 = vld [vmem:[%s273 + $0x828] sm:$0xff]
        %v3867 = vld [vmem:[%s273 + $0x830] sm:$0xff]
        %v3868 = vld [vmem:[%s273 + $0x838] sm:$0xff]
        %v3869 = vld [vmem:[%s273 + $0x840] sm:$0xff]
        %v3870 = vld [vmem:[%s273 + $0x848] sm:$0xff]
        %v3871 = vld [vmem:[%s273 + $0x850] sm:$0xff]
        %v3872 = vld [vmem:[%s273 + $0x858] sm:$0xff]
        %v3873 = vld [vmem:[%s273 + $0x860] sm:$0xff]
        %v3874 = vld [vmem:[%s273 + $0x868] sm:$0xff]
        %v3875 = vld [vmem:[%s273 + $0x870] sm:$0xff]
        %v3876 = vld [vmem:[%s273 + $0x878] sm:$0xff]
        %3878 = vset.pattern.permute.xlu0 0
        %3879 = vperm.xlu0 %3878, %v3605
        %v3880 = vpop.permute.xlu0 %3879
        %3883 = vset.pattern.permute.xlu0 0
        %3884 = vperm.xlu0 %3883, %v3606
        %v3885 = vpop.permute.xlu0 %3884
        %3888 = vset.pattern.permute.xlu0 0
        %3889 = vperm.xlu0 %3888, %v3607
        %v3890 = vpop.permute.xlu0 %3889
        %3893 = vset.pattern.permute.xlu0 0
        %3894 = vperm.xlu0 %3893, %v3608
        %v3895 = vpop.permute.xlu0 %3894
        %3898 = vset.pattern.permute.xlu0 0
        %3899 = vperm.xlu0 %3898, %v3609
        %v3900 = vpop.permute.xlu0 %3899
        %3903 = vset.pattern.permute.xlu0 0
        %3904 = vperm.xlu0 %3903, %v3610
        %v3905 = vpop.permute.xlu0 %3904
        %3908 = vset.pattern.permute.xlu0 0
        %3909 = vperm.xlu0 %3908, %v3611
        %v3910 = vpop.permute.xlu0 %3909
        %3913 = vset.pattern.permute.xlu0 0
        %3914 = vperm.xlu0 %3913, %v3612
        %v3915 = vpop.permute.xlu0 %3914
        %3918 = vset.pattern.permute.xlu0 0
        %3919 = vperm.xlu0 %3918, %v3613
        %v3920 = vpop.permute.xlu0 %3919
        %3923 = vset.pattern.permute.xlu0 0
        %3924 = vperm.xlu0 %3923, %v3614
        %v3925 = vpop.permute.xlu0 %3924
        %3928 = vset.pattern.permute.xlu0 0
        %3929 = vperm.xlu0 %3928, %v3615
        %v3930 = vpop.permute.xlu0 %3929
        %3933 = vset.pattern.permute.xlu0 0
        %3934 = vperm.xlu0 %3933, %v3616
        %v3935 = vpop.permute.xlu0 %3934
        %3938 = vset.pattern.permute.xlu0 0
        %3939 = vperm.xlu0 %3938, %v3617
        %v3940 = vpop.permute.xlu0 %3939
        %3943 = vset.pattern.permute.xlu0 0
        %3944 = vperm.xlu0 %3943, %v3618
        %v3945 = vpop.permute.xlu0 %3944
        %3948 = vset.pattern.permute.xlu0 0
        %3949 = vperm.xlu0 %3948, %v3619
        %v3950 = vpop.permute.xlu0 %3949
        %3953 = vset.pattern.permute.xlu0 0
        %3954 = vperm.xlu0 %3953, %v3620
        %v3955 = vpop.permute.xlu0 %3954
        %3958 = vset.pattern.permute.xlu0 0
        %3959 = vperm.xlu0 %3958, %v3621
        %v3960 = vpop.permute.xlu0 %3959
        %3963 = vset.pattern.permute.xlu0 0
        %3964 = vperm.xlu0 %3963, %v3622
        %v3965 = vpop.permute.xlu0 %3964
        %3968 = vset.pattern.permute.xlu0 0
        %3969 = vperm.xlu0 %3968, %v3623
        %v3970 = vpop.permute.xlu0 %3969
        %3973 = vset.pattern.permute.xlu0 0
        %3974 = vperm.xlu0 %3973, %v3624
        %v3975 = vpop.permute.xlu0 %3974
        %3978 = vset.pattern.permute.xlu0 0
        %3979 = vperm.xlu0 %3978, %v3625
        %v3980 = vpop.permute.xlu0 %3979
        %3983 = vset.pattern.permute.xlu0 0
        %3984 = vperm.xlu0 %3983, %v3626
        %v3985 = vpop.permute.xlu0 %3984
        %3988 = vset.pattern.permute.xlu0 0
        %3989 = vperm.xlu0 %3988, %v3627
        %v3990 = vpop.permute.xlu0 %3989
        %3993 = vset.pattern.permute.xlu0 0
        %3994 = vperm.xlu0 %3993, %v3628
        %v3995 = vpop.permute.xlu0 %3994
        %3998 = vset.pattern.permute.xlu0 0
        %3999 = vperm.xlu0 %3998, %v3629
        %v4000 = vpop.permute.xlu0 %3999
        %4003 = vset.pattern.permute.xlu0 0
        %4004 = vperm.xlu0 %4003, %v3630
        %v4005 = vpop.permute.xlu0 %4004
        %4008 = vset.pattern.permute.xlu0 0
        %4009 = vperm.xlu0 %4008, %v3631
        %v4010 = vpop.permute.xlu0 %4009
        %4013 = vset.pattern.permute.xlu0 0
        %4014 = vperm.xlu0 %4013, %v3632
        %v4015 = vpop.permute.xlu0 %4014
        %4018 = vset.pattern.permute.xlu0 0
        %4019 = vperm.xlu0 %4018, %v3633
        %v4020 = vpop.permute.xlu0 %4019
        %4023 = vset.pattern.permute.xlu0 0
        %4024 = vperm.xlu0 %4023, %v3634
        %v4025 = vpop.permute.xlu0 %4024
        %4028 = vset.pattern.permute.xlu0 0
        %4029 = vperm.xlu0 %4028, %v3635
        %v4030 = vpop.permute.xlu0 %4029
        %4033 = vset.pattern.permute.xlu0 0
        %4034 = vperm.xlu0 %4033, %v3636
        %v4035 = vpop.permute.xlu0 %4034
        %4038 = vset.pattern.permute.xlu0 0
        %4039 = vperm.xlu0 %4038, %v3637
        %v4040 = vpop.permute.xlu0 %4039
        %4043 = vset.pattern.permute.xlu0 0
        %4044 = vperm.xlu0 %4043, %v3638
        %v4045 = vpop.permute.xlu0 %4044
        %4048 = vset.pattern.permute.xlu0 0
        %4049 = vperm.xlu0 %4048, %v3639
        %v4050 = vpop.permute.xlu0 %4049
        %4053 = vset.pattern.permute.xlu0 0
        %4054 = vperm.xlu0 %4053, %v3640
        %v4055 = vpop.permute.xlu0 %4054
        %4058 = vset.pattern.permute.xlu0 0
        %4059 = vperm.xlu0 %4058, %v3641
        %v4060 = vpop.permute.xlu0 %4059
        %4063 = vset.pattern.permute.xlu0 0
        %4064 = vperm.xlu0 %4063, %v3642
        %v4065 = vpop.permute.xlu0 %4064
        %4068 = vset.pattern.permute.xlu0 0
        %4069 = vperm.xlu0 %4068, %v3643
        %v4070 = vpop.permute.xlu0 %4069
        %4073 = vset.pattern.permute.xlu0 0
        %4074 = vperm.xlu0 %4073, %v3644
        %v4075 = vpop.permute.xlu0 %4074
        %4078 = vset.pattern.permute.xlu0 0
        %4079 = vperm.xlu0 %4078, %v3645
        %v4080 = vpop.permute.xlu0 %4079
        %4083 = vset.pattern.permute.xlu0 0
        %4084 = vperm.xlu0 %4083, %v3646
        %v4085 = vpop.permute.xlu0 %4084
        %4088 = vset.pattern.permute.xlu0 0
        %4089 = vperm.xlu0 %4088, %v3647
        %v4090 = vpop.permute.xlu0 %4089
        %4093 = vset.pattern.permute.xlu0 0
        %4094 = vperm.xlu0 %4093, %v3648
        %v4095 = vpop.permute.xlu0 %4094
        %4098 = vset.pattern.permute.xlu0 0
        %4099 = vperm.xlu0 %4098, %v3649
        %v4100 = vpop.permute.xlu0 %4099
        %4103 = vset.pattern.permute.xlu0 0
        %4104 = vperm.xlu0 %4103, %v3650
        %v4105 = vpop.permute.xlu0 %4104
        %4108 = vset.pattern.permute.xlu0 0
        %4109 = vperm.xlu0 %4108, %v3651
        %v4110 = vpop.permute.xlu0 %4109
        %4113 = vset.pattern.permute.xlu0 0
        %4114 = vperm.xlu0 %4113, %v3652
        %v4115 = vpop.permute.xlu0 %4114
        %4118 = vset.pattern.permute.xlu0 0
        %4119 = vperm.xlu0 %4118, %v3653
        %v4120 = vpop.permute.xlu0 %4119
        %4123 = vset.pattern.permute.xlu0 0
        %4124 = vperm.xlu0 %4123, %v3654
        %v4125 = vpop.permute.xlu0 %4124
        %4128 = vset.pattern.permute.xlu0 0
        %4129 = vperm.xlu0 %4128, %v3655
        %v4130 = vpop.permute.xlu0 %4129
        %4133 = vset.pattern.permute.xlu0 0
        %4134 = vperm.xlu0 %4133, %v3656
        %v4135 = vpop.permute.xlu0 %4134
        %4138 = vset.pattern.permute.xlu0 0
        %4139 = vperm.xlu0 %4138, %v3657
        %v4140 = vpop.permute.xlu0 %4139
        %4143 = vset.pattern.permute.xlu0 0
        %4144 = vperm.xlu0 %4143, %v3658
        %v4145 = vpop.permute.xlu0 %4144
        %4148 = vset.pattern.permute.xlu0 0
        %4149 = vperm.xlu0 %4148, %v3659
        %v4150 = vpop.permute.xlu0 %4149
        %4153 = vset.pattern.permute.xlu0 0
        %4154 = vperm.xlu0 %4153, %v3660
        %v4155 = vpop.permute.xlu0 %4154
        %4158 = vset.pattern.permute.xlu0 0
        %4159 = vperm.xlu0 %4158, %v3661
        %v4160 = vpop.permute.xlu0 %4159
        %4163 = vset.pattern.permute.xlu0 0
        %4164 = vperm.xlu0 %4163, %v3662
        %v4165 = vpop.permute.xlu0 %4164
        %4168 = vset.pattern.permute.xlu0 0
        %4169 = vperm.xlu0 %4168, %v3663
        %v4170 = vpop.permute.xlu0 %4169
        %4173 = vset.pattern.permute.xlu0 0
        %4174 = vperm.xlu0 %4173, %v3664
        %v4175 = vpop.permute.xlu0 %4174
        %4178 = vset.pattern.permute.xlu0 0
        %4179 = vperm.xlu0 %4178, %v3665
        %v4180 = vpop.permute.xlu0 %4179
        %4183 = vset.pattern.permute.xlu0 0
        %4184 = vperm.xlu0 %4183, %v3666
        %v4185 = vpop.permute.xlu0 %4184
        %4188 = vset.pattern.permute.xlu0 0
        %4189 = vperm.xlu0 %4188, %v3667
        %v4190 = vpop.permute.xlu0 %4189
        %4193 = vset.pattern.permute.xlu0 0
        %4194 = vperm.xlu0 %4193, %v3668
        %v4195 = vpop.permute.xlu0 %4194
        %4198 = vset.pattern.permute.xlu0 0
        %4199 = vperm.xlu0 %4198, %v3669
        %v4200 = vpop.permute.xlu0 %4199
        %4203 = vset.pattern.permute.xlu0 0
        %4204 = vperm.xlu0 %4203, %v3670
        %v4205 = vpop.permute.xlu0 %4204
        %4208 = vset.pattern.permute.xlu0 0
        %4209 = vperm.xlu0 %4208, %v3671
        %v4210 = vpop.permute.xlu0 %4209
        %4213 = vset.pattern.permute.xlu0 0
        %4214 = vperm.xlu0 %4213, %v3672
        %v4215 = vpop.permute.xlu0 %4214
        %4218 = vset.pattern.permute.xlu0 0
        %4219 = vperm.xlu0 %4218, %v3673
        %v4220 = vpop.permute.xlu0 %4219
        %4223 = vset.pattern.permute.xlu0 0
        %4224 = vperm.xlu0 %4223, %v3674
        %v4225 = vpop.permute.xlu0 %4224
        %4228 = vset.pattern.permute.xlu0 0
        %4229 = vperm.xlu0 %4228, %v3675
        %v4230 = vpop.permute.xlu0 %4229
        %4233 = vset.pattern.permute.xlu0 0
        %4234 = vperm.xlu0 %4233, %v3676
        %v4235 = vpop.permute.xlu0 %4234
        %4238 = vset.pattern.permute.xlu0 0
        %4239 = vperm.xlu0 %4238, %v3677
        %v4240 = vpop.permute.xlu0 %4239
        %4243 = vset.pattern.permute.xlu0 0
        %4244 = vperm.xlu0 %4243, %v3678
        %v4245 = vpop.permute.xlu0 %4244
        %4248 = vset.pattern.permute.xlu0 0
        %4249 = vperm.xlu0 %4248, %v3679
        %v4250 = vpop.permute.xlu0 %4249
        %4253 = vset.pattern.permute.xlu0 0
        %4254 = vperm.xlu0 %4253, %v3680
        %v4255 = vpop.permute.xlu0 %4254
        %4258 = vset.pattern.permute.xlu0 0
        %4259 = vperm.xlu0 %4258, %v3681
        %v4260 = vpop.permute.xlu0 %4259
        %4263 = vset.pattern.permute.xlu0 0
        %4264 = vperm.xlu0 %4263, %v3682
        %v4265 = vpop.permute.xlu0 %4264
        %4268 = vset.pattern.permute.xlu0 0
        %4269 = vperm.xlu0 %4268, %v3683
        %v4270 = vpop.permute.xlu0 %4269
        %4273 = vset.pattern.permute.xlu0 0
        %4274 = vperm.xlu0 %4273, %v3684
        %v4275 = vpop.permute.xlu0 %4274
        %4278 = vset.pattern.permute.xlu0 0
        %4279 = vperm.xlu0 %4278, %v3685
        %v4280 = vpop.permute.xlu0 %4279
        %4283 = vset.pattern.permute.xlu0 0
        %4284 = vperm.xlu0 %4283, %v3686
        %v4285 = vpop.permute.xlu0 %4284
        %4288 = vset.pattern.permute.xlu0 0
        %4289 = vperm.xlu0 %4288, %v3687
        %v4290 = vpop.permute.xlu0 %4289
        %4293 = vset.pattern.permute.xlu0 0
        %4294 = vperm.xlu0 %4293, %v3688
        %v4295 = vpop.permute.xlu0 %4294
        %4298 = vset.pattern.permute.xlu0 0
        %4299 = vperm.xlu0 %4298, %v3689
        %v4300 = vpop.permute.xlu0 %4299
        %4303 = vset.pattern.permute.xlu0 0
        %4304 = vperm.xlu0 %4303, %v3690
        %v4305 = vpop.permute.xlu0 %4304
        %4308 = vset.pattern.permute.xlu0 0
        %4309 = vperm.xlu0 %4308, %v3691
        %v4310 = vpop.permute.xlu0 %4309
        %4313 = vset.pattern.permute.xlu0 0
        %4314 = vperm.xlu0 %4313, %v3692
        %v4315 = vpop.permute.xlu0 %4314
        %4318 = vset.pattern.permute.xlu0 0
        %4319 = vperm.xlu0 %4318, %v3693
        %v4320 = vpop.permute.xlu0 %4319
        %4323 = vset.pattern.permute.xlu0 0
        %4324 = vperm.xlu0 %4323, %v3694
        %v4325 = vpop.permute.xlu0 %4324
        %4328 = vset.pattern.permute.xlu0 0
        %4329 = vperm.xlu0 %4328, %v3695
        %v4330 = vpop.permute.xlu0 %4329
        %4333 = vset.pattern.permute.xlu0 0
        %4334 = vperm.xlu0 %4333, %v3696
        %v4335 = vpop.permute.xlu0 %4334
        %4338 = vset.pattern.permute.xlu0 0
        %4339 = vperm.xlu0 %4338, %v3697
        %v4340 = vpop.permute.xlu0 %4339
        %4343 = vset.pattern.permute.xlu0 0
        %4344 = vperm.xlu0 %4343, %v3698
        %v4345 = vpop.permute.xlu0 %4344
        %4348 = vset.pattern.permute.xlu0 0
        %4349 = vperm.xlu0 %4348, %v3699
        %v4350 = vpop.permute.xlu0 %4349
        %4353 = vset.pattern.permute.xlu0 0
        %4354 = vperm.xlu0 %4353, %v3700
        %v4355 = vpop.permute.xlu0 %4354
        %4358 = vset.pattern.permute.xlu0 0
        %4359 = vperm.xlu0 %4358, %v3701
        %v4360 = vpop.permute.xlu0 %4359
        %4363 = vset.pattern.permute.xlu0 0
        %4364 = vperm.xlu0 %4363, %v3702
        %v4365 = vpop.permute.xlu0 %4364
        %4368 = vset.pattern.permute.xlu0 0
        %4369 = vperm.xlu0 %4368, %v3703
        %v4370 = vpop.permute.xlu0 %4369
        %4373 = vset.pattern.permute.xlu0 0
        %4374 = vperm.xlu0 %4373, %v3704
        %v4375 = vpop.permute.xlu0 %4374
        %4378 = vset.pattern.permute.xlu0 0
        %4379 = vperm.xlu0 %4378, %v3705
        %v4380 = vpop.permute.xlu0 %4379
        %4383 = vset.pattern.permute.xlu0 0
        %4384 = vperm.xlu0 %4383, %v3706
        %v4385 = vpop.permute.xlu0 %4384
        %4388 = vset.pattern.permute.xlu0 0
        %4389 = vperm.xlu0 %4388, %v3707
        %v4390 = vpop.permute.xlu0 %4389
        %4393 = vset.pattern.permute.xlu0 0
        %4394 = vperm.xlu0 %4393, %v3708
        %v4395 = vpop.permute.xlu0 %4394
        %4398 = vset.pattern.permute.xlu0 0
        %4399 = vperm.xlu0 %4398, %v3709
        %v4400 = vpop.permute.xlu0 %4399
        %4403 = vset.pattern.permute.xlu0 0
        %4404 = vperm.xlu0 %4403, %v3710
        %v4405 = vpop.permute.xlu0 %4404
        %4408 = vset.pattern.permute.xlu0 0
        %4409 = vperm.xlu0 %4408, %v3711
        %v4410 = vpop.permute.xlu0 %4409
        %4413 = vset.pattern.permute.xlu0 0
        %4414 = vperm.xlu0 %4413, %v3712
        %v4415 = vpop.permute.xlu0 %4414
        %4418 = vset.pattern.permute.xlu0 0
        %4419 = vperm.xlu0 %4418, %v3713
        %v4420 = vpop.permute.xlu0 %4419
        %4423 = vset.pattern.permute.xlu0 0
        %4424 = vperm.xlu0 %4423, %v3714
        %v4425 = vpop.permute.xlu0 %4424
        %4428 = vset.pattern.permute.xlu0 0
        %4429 = vperm.xlu0 %4428, %v3715
        %v4430 = vpop.permute.xlu0 %4429
        %4433 = vset.pattern.permute.xlu0 0
        %4434 = vperm.xlu0 %4433, %v3716
        %v4435 = vpop.permute.xlu0 %4434
        %4438 = vset.pattern.permute.xlu0 0
        %4439 = vperm.xlu0 %4438, %v3717
        %v4440 = vpop.permute.xlu0 %4439
        %4443 = vset.pattern.permute.xlu0 0
        %4444 = vperm.xlu0 %4443, %v3718
        %v4445 = vpop.permute.xlu0 %4444
        %4448 = vset.pattern.permute.xlu0 0
        %4449 = vperm.xlu0 %4448, %v3719
        %v4450 = vpop.permute.xlu0 %4449
        %4453 = vset.pattern.permute.xlu0 0
        %4454 = vperm.xlu0 %4453, %v3720
        %v4455 = vpop.permute.xlu0 %4454
        %4458 = vset.pattern.permute.xlu0 0
        %4459 = vperm.xlu0 %4458, %v3721
        %v4460 = vpop.permute.xlu0 %4459
        %4463 = vset.pattern.permute.xlu0 0
        %4464 = vperm.xlu0 %4463, %v3722
        %v4465 = vpop.permute.xlu0 %4464
        %4468 = vset.pattern.permute.xlu0 0
        %4469 = vperm.xlu0 %4468, %v3723
        %v4470 = vpop.permute.xlu0 %4469
        %4473 = vset.pattern.permute.xlu0 0
        %4474 = vperm.xlu0 %4473, %v3724
        %v4475 = vpop.permute.xlu0 %4474
        %4478 = vset.pattern.permute.xlu0 0
        %4479 = vperm.xlu0 %4478, %v3725
        %v4480 = vpop.permute.xlu0 %4479
        %4483 = vset.pattern.permute.xlu0 0
        %4484 = vperm.xlu0 %4483, %v3726
        %v4485 = vpop.permute.xlu0 %4484
        %4488 = vset.pattern.permute.xlu0 0
        %4489 = vperm.xlu0 %4488, %v3727
        %v4490 = vpop.permute.xlu0 %4489
        %4493 = vset.pattern.permute.xlu0 0
        %4494 = vperm.xlu0 %4493, %v3728
        %v4495 = vpop.permute.xlu0 %4494
        %4498 = vset.pattern.permute.xlu0 0
        %4499 = vperm.xlu0 %4498, %v3729
        %v4500 = vpop.permute.xlu0 %4499
        %4503 = vset.pattern.permute.xlu0 0
        %4504 = vperm.xlu0 %4503, %v3730
        %v4505 = vpop.permute.xlu0 %4504
        %4508 = vset.pattern.permute.xlu0 0
        %4509 = vperm.xlu0 %4508, %v3731
        %v4510 = vpop.permute.xlu0 %4509
        %4513 = vset.pattern.permute.xlu0 0
        %4514 = vperm.xlu0 %4513, %v3732
        %v4515 = vpop.permute.xlu0 %4514
        %4518 = vset.pattern.permute.xlu0 0
        %4519 = vperm.xlu0 %4518, %v3733
        %v4520 = vpop.permute.xlu0 %4519
        %4523 = vset.pattern.permute.xlu0 0
        %4524 = vperm.xlu0 %4523, %v3734
        %v4525 = vpop.permute.xlu0 %4524
        %4528 = vset.pattern.permute.xlu0 0
        %4529 = vperm.xlu0 %4528, %v3735
        %v4530 = vpop.permute.xlu0 %4529
        %4533 = vset.pattern.permute.xlu0 0
        %4534 = vperm.xlu0 %4533, %v3736
        %v4535 = vpop.permute.xlu0 %4534
        %4538 = vset.pattern.permute.xlu0 0
        %4539 = vperm.xlu0 %4538, %v3737
        %v4540 = vpop.permute.xlu0 %4539
        %4543 = vset.pattern.permute.xlu0 0
        %4544 = vperm.xlu0 %4543, %v3738
        %v4545 = vpop.permute.xlu0 %4544
        %4548 = vset.pattern.permute.xlu0 0
        %4549 = vperm.xlu0 %4548, %v3739
        %v4550 = vpop.permute.xlu0 %4549
        %4553 = vset.pattern.permute.xlu0 0
        %4554 = vperm.xlu0 %4553, %v3740
        %v4555 = vpop.permute.xlu0 %4554
        %4558 = vset.pattern.permute.xlu0 0
        %4559 = vperm.xlu0 %4558, %v3741
        %v4560 = vpop.permute.xlu0 %4559
        %4563 = vset.pattern.permute.xlu0 0
        %4564 = vperm.xlu0 %4563, %v3742
        %v4565 = vpop.permute.xlu0 %4564
        %4568 = vset.pattern.permute.xlu0 0
        %4569 = vperm.xlu0 %4568, %v3743
        %v4570 = vpop.permute.xlu0 %4569
        %4573 = vset.pattern.permute.xlu0 0
        %4574 = vperm.xlu0 %4573, %v3744
        %v4575 = vpop.permute.xlu0 %4574
        %4578 = vset.pattern.permute.xlu0 0
        %4579 = vperm.xlu0 %4578, %v3745
        %v4580 = vpop.permute.xlu0 %4579
        %4583 = vset.pattern.permute.xlu0 0
        %4584 = vperm.xlu0 %4583, %v3746
        %v4585 = vpop.permute.xlu0 %4584
        %4588 = vset.pattern.permute.xlu0 0
        %4589 = vperm.xlu0 %4588, %v3747
        %v4590 = vpop.permute.xlu0 %4589
        %4593 = vset.pattern.permute.xlu0 0
        %4594 = vperm.xlu0 %4593, %v3748
        %v4595 = vpop.permute.xlu0 %4594
        %4598 = vset.pattern.permute.xlu0 0
        %4599 = vperm.xlu0 %4598, %v3749
        %v4600 = vpop.permute.xlu0 %4599
        %4603 = vset.pattern.permute.xlu0 0
        %4604 = vperm.xlu0 %4603, %v3750
        %v4605 = vpop.permute.xlu0 %4604
        %4608 = vset.pattern.permute.xlu0 0
        %4609 = vperm.xlu0 %4608, %v3751
        %v4610 = vpop.permute.xlu0 %4609
        %4613 = vset.pattern.permute.xlu0 0
        %4614 = vperm.xlu0 %4613, %v3752
        %v4615 = vpop.permute.xlu0 %4614
        %4618 = vset.pattern.permute.xlu0 0
        %4619 = vperm.xlu0 %4618, %v3753
        %v4620 = vpop.permute.xlu0 %4619
        %4623 = vset.pattern.permute.xlu0 0
        %4624 = vperm.xlu0 %4623, %v3754
        %v4625 = vpop.permute.xlu0 %4624
        %4628 = vset.pattern.permute.xlu0 0
        %4629 = vperm.xlu0 %4628, %v3755
        %v4630 = vpop.permute.xlu0 %4629
        %4633 = vset.pattern.permute.xlu0 0
        %4634 = vperm.xlu0 %4633, %v3756
        %v4635 = vpop.permute.xlu0 %4634
        %4638 = vset.pattern.permute.xlu0 0
        %4639 = vperm.xlu0 %4638, %v3757
        %v4640 = vpop.permute.xlu0 %4639
        %4643 = vset.pattern.permute.xlu0 0
        %4644 = vperm.xlu0 %4643, %v3758
        %v4645 = vpop.permute.xlu0 %4644
        %4648 = vset.pattern.permute.xlu0 0
        %4649 = vperm.xlu0 %4648, %v3759
        %v4650 = vpop.permute.xlu0 %4649
        %4653 = vset.pattern.permute.xlu0 0
        %4654 = vperm.xlu0 %4653, %v3760
        %v4655 = vpop.permute.xlu0 %4654
        %4658 = vset.pattern.permute.xlu0 0
        %4659 = vperm.xlu0 %4658, %v3761
        %v4660 = vpop.permute.xlu0 %4659
        %4663 = vset.pattern.permute.xlu0 0
        %4664 = vperm.xlu0 %4663, %v3762
        %v4665 = vpop.permute.xlu0 %4664
        %4668 = vset.pattern.permute.xlu0 0
        %4669 = vperm.xlu0 %4668, %v3763
        %v4670 = vpop.permute.xlu0 %4669
        %4673 = vset.pattern.permute.xlu0 0
        %4674 = vperm.xlu0 %4673, %v3764
        %v4675 = vpop.permute.xlu0 %4674
        %4678 = vset.pattern.permute.xlu0 0
        %4679 = vperm.xlu0 %4678, %v3765
        %v4680 = vpop.permute.xlu0 %4679
        %4683 = vset.pattern.permute.xlu0 0
        %4684 = vperm.xlu0 %4683, %v3766
        %v4685 = vpop.permute.xlu0 %4684
        %4688 = vset.pattern.permute.xlu0 0
        %4689 = vperm.xlu0 %4688, %v3767
        %v4690 = vpop.permute.xlu0 %4689
        %4693 = vset.pattern.permute.xlu0 0
        %4694 = vperm.xlu0 %4693, %v3768
        %v4695 = vpop.permute.xlu0 %4694
        %4698 = vset.pattern.permute.xlu0 0
        %4699 = vperm.xlu0 %4698, %v3769
        %v4700 = vpop.permute.xlu0 %4699
        %4703 = vset.pattern.permute.xlu0 0
        %4704 = vperm.xlu0 %4703, %v3770
        %v4705 = vpop.permute.xlu0 %4704
        %4708 = vset.pattern.permute.xlu0 0
        %4709 = vperm.xlu0 %4708, %v3771
        %v4710 = vpop.permute.xlu0 %4709
        %4713 = vset.pattern.permute.xlu0 0
        %4714 = vperm.xlu0 %4713, %v3772
        %v4715 = vpop.permute.xlu0 %4714
        %4718 = vset.pattern.permute.xlu0 0
        %4719 = vperm.xlu0 %4718, %v3773
        %v4720 = vpop.permute.xlu0 %4719
        %4723 = vset.pattern.permute.xlu0 0
        %4724 = vperm.xlu0 %4723, %v3774
        %v4725 = vpop.permute.xlu0 %4724
        %4728 = vset.pattern.permute.xlu0 0
        %4729 = vperm.xlu0 %4728, %v3775
        %v4730 = vpop.permute.xlu0 %4729
        %4733 = vset.pattern.permute.xlu0 0
        %4734 = vperm.xlu0 %4733, %v3776
        %v4735 = vpop.permute.xlu0 %4734
        %4738 = vset.pattern.permute.xlu0 0
        %4739 = vperm.xlu0 %4738, %v3777
        %v4740 = vpop.permute.xlu0 %4739
        %4743 = vset.pattern.permute.xlu0 0
        %4744 = vperm.xlu0 %4743, %v3778
        %v4745 = vpop.permute.xlu0 %4744
        %4748 = vset.pattern.permute.xlu0 0
        %4749 = vperm.xlu0 %4748, %v3779
        %v4750 = vpop.permute.xlu0 %4749
        %4753 = vset.pattern.permute.xlu0 0
        %4754 = vperm.xlu0 %4753, %v3780
        %v4755 = vpop.permute.xlu0 %4754
        %4758 = vset.pattern.permute.xlu0 0
        %4759 = vperm.xlu0 %4758, %v3781
        %v4760 = vpop.permute.xlu0 %4759
        %4763 = vset.pattern.permute.xlu0 0
        %4764 = vperm.xlu0 %4763, %v3782
        %v4765 = vpop.permute.xlu0 %4764
        %4768 = vset.pattern.permute.xlu0 0
        %4769 = vperm.xlu0 %4768, %v3783
        %v4770 = vpop.permute.xlu0 %4769
        %4773 = vset.pattern.permute.xlu0 0
        %4774 = vperm.xlu0 %4773, %v3784
        %v4775 = vpop.permute.xlu0 %4774
        %4778 = vset.pattern.permute.xlu0 0
        %4779 = vperm.xlu0 %4778, %v3785
        %v4780 = vpop.permute.xlu0 %4779
        %4783 = vset.pattern.permute.xlu0 0
        %4784 = vperm.xlu0 %4783, %v3786
        %v4785 = vpop.permute.xlu0 %4784
        %4788 = vset.pattern.permute.xlu0 0
        %4789 = vperm.xlu0 %4788, %v3787
        %v4790 = vpop.permute.xlu0 %4789
        %4793 = vset.pattern.permute.xlu0 0
        %4794 = vperm.xlu0 %4793, %v3788
        %v4795 = vpop.permute.xlu0 %4794
        %4798 = vset.pattern.permute.xlu0 0
        %4799 = vperm.xlu0 %4798, %v3789
        %v4800 = vpop.permute.xlu0 %4799
        %4803 = vset.pattern.permute.xlu0 0
        %4804 = vperm.xlu0 %4803, %v3790
        %v4805 = vpop.permute.xlu0 %4804
        %4808 = vset.pattern.permute.xlu0 0
        %4809 = vperm.xlu0 %4808, %v3791
        %v4810 = vpop.permute.xlu0 %4809
        %4813 = vset.pattern.permute.xlu0 0
        %4814 = vperm.xlu0 %4813, %v3792
        %v4815 = vpop.permute.xlu0 %4814
        %4818 = vset.pattern.permute.xlu0 0
        %4819 = vperm.xlu0 %4818, %v3793
        %v4820 = vpop.permute.xlu0 %4819
        %4823 = vset.pattern.permute.xlu0 0
        %4824 = vperm.xlu0 %4823, %v3794
        %v4825 = vpop.permute.xlu0 %4824
        %4828 = vset.pattern.permute.xlu0 0
        %4829 = vperm.xlu0 %4828, %v3795
        %v4830 = vpop.permute.xlu0 %4829
        %4833 = vset.pattern.permute.xlu0 0
        %4834 = vperm.xlu0 %4833, %v3796
        %v4835 = vpop.permute.xlu0 %4834
        %4838 = vset.pattern.permute.xlu0 0
        %4839 = vperm.xlu0 %4838, %v3797
        %v4840 = vpop.permute.xlu0 %4839
        %4843 = vset.pattern.permute.xlu0 0
        %4844 = vperm.xlu0 %4843, %v3798
        %v4845 = vpop.permute.xlu0 %4844
        %4848 = vset.pattern.permute.xlu0 0
        %4849 = vperm.xlu0 %4848, %v3799
        %v4850 = vpop.permute.xlu0 %4849
        %4853 = vset.pattern.permute.xlu0 0
        %4854 = vperm.xlu0 %4853, %v3800
        %v4855 = vpop.permute.xlu0 %4854
        %4858 = vset.pattern.permute.xlu0 0
        %4859 = vperm.xlu0 %4858, %v3801
        %v4860 = vpop.permute.xlu0 %4859
        %4863 = vset.pattern.permute.xlu0 0
        %4864 = vperm.xlu0 %4863, %v3802
        %v4865 = vpop.permute.xlu0 %4864
        %4868 = vset.pattern.permute.xlu0 0
        %4869 = vperm.xlu0 %4868, %v3803
        %v4870 = vpop.permute.xlu0 %4869
        %4873 = vset.pattern.permute.xlu0 0
        %4874 = vperm.xlu0 %4873, %v3804
        %v4875 = vpop.permute.xlu0 %4874
        %4878 = vset.pattern.permute.xlu0 0
        %4879 = vperm.xlu0 %4878, %v3805
        %v4880 = vpop.permute.xlu0 %4879
        %4883 = vset.pattern.permute.xlu0 0
        %4884 = vperm.xlu0 %4883, %v3806
        %v4885 = vpop.permute.xlu0 %4884
        %4888 = vset.pattern.permute.xlu0 0
        %4889 = vperm.xlu0 %4888, %v3807
        %v4890 = vpop.permute.xlu0 %4889
        %4893 = vset.pattern.permute.xlu0 0
        %4894 = vperm.xlu0 %4893, %v3808
        %v4895 = vpop.permute.xlu0 %4894
        %4898 = vset.pattern.permute.xlu0 0
        %4899 = vperm.xlu0 %4898, %v3809
        %v4900 = vpop.permute.xlu0 %4899
        %4903 = vset.pattern.permute.xlu0 0
        %4904 = vperm.xlu0 %4903, %v3810
        %v4905 = vpop.permute.xlu0 %4904
        %4908 = vset.pattern.permute.xlu0 0
        %4909 = vperm.xlu0 %4908, %v3811
        %v4910 = vpop.permute.xlu0 %4909
        %4913 = vset.pattern.permute.xlu0 0
        %4914 = vperm.xlu0 %4913, %v3812
        %v4915 = vpop.permute.xlu0 %4914
        %4918 = vset.pattern.permute.xlu0 0
        %4919 = vperm.xlu0 %4918, %v3813
        %v4920 = vpop.permute.xlu0 %4919
        %4923 = vset.pattern.permute.xlu0 0
        %4924 = vperm.xlu0 %4923, %v3814
        %v4925 = vpop.permute.xlu0 %4924
        %4928 = vset.pattern.permute.xlu0 0
        %4929 = vperm.xlu0 %4928, %v3815
        %v4930 = vpop.permute.xlu0 %4929
        %4933 = vset.pattern.permute.xlu0 0
        %4934 = vperm.xlu0 %4933, %v3816
        %v4935 = vpop.permute.xlu0 %4934
        %4938 = vset.pattern.permute.xlu0 0
        %4939 = vperm.xlu0 %4938, %v3817
        %v4940 = vpop.permute.xlu0 %4939
        %4943 = vset.pattern.permute.xlu0 0
        %4944 = vperm.xlu0 %4943, %v3818
        %v4945 = vpop.permute.xlu0 %4944
        %4948 = vset.pattern.permute.xlu0 0
        %4949 = vperm.xlu0 %4948, %v3819
        %v4950 = vpop.permute.xlu0 %4949
        %4953 = vset.pattern.permute.xlu0 0
        %4954 = vperm.xlu0 %4953, %v3820
        %v4955 = vpop.permute.xlu0 %4954
        %4958 = vset.pattern.permute.xlu0 0
        %4959 = vperm.xlu0 %4958, %v3821
        %v4960 = vpop.permute.xlu0 %4959
        %4963 = vset.pattern.permute.xlu0 0
        %4964 = vperm.xlu0 %4963, %v3822
        %v4965 = vpop.permute.xlu0 %4964
        %4968 = vset.pattern.permute.xlu0 0
        %4969 = vperm.xlu0 %4968, %v3823
        %v4970 = vpop.permute.xlu0 %4969
        %4973 = vset.pattern.permute.xlu0 0
        %4974 = vperm.xlu0 %4973, %v3824
        %v4975 = vpop.permute.xlu0 %4974
        %4978 = vset.pattern.permute.xlu0 0
        %4979 = vperm.xlu0 %4978, %v3825
        %v4980 = vpop.permute.xlu0 %4979
        %4983 = vset.pattern.permute.xlu0 0
        %4984 = vperm.xlu0 %4983, %v3826
        %v4985 = vpop.permute.xlu0 %4984
        %4988 = vset.pattern.permute.xlu0 0
        %4989 = vperm.xlu0 %4988, %v3827
        %v4990 = vpop.permute.xlu0 %4989
        %4993 = vset.pattern.permute.xlu0 0
        %4994 = vperm.xlu0 %4993, %v3828
        %v4995 = vpop.permute.xlu0 %4994
        %4998 = vset.pattern.permute.xlu0 0
        %4999 = vperm.xlu0 %4998, %v3829
        %v5000 = vpop.permute.xlu0 %4999
        %5003 = vset.pattern.permute.xlu0 0
        %5004 = vperm.xlu0 %5003, %v3830
        %v5005 = vpop.permute.xlu0 %5004
        %5008 = vset.pattern.permute.xlu0 0
        %5009 = vperm.xlu0 %5008, %v3831
        %v5010 = vpop.permute.xlu0 %5009
        %5013 = vset.pattern.permute.xlu0 0
        %5014 = vperm.xlu0 %5013, %v3832
        %v5015 = vpop.permute.xlu0 %5014
        %5018 = vset.pattern.permute.xlu0 0
        %5019 = vperm.xlu0 %5018, %v3833
        %v5020 = vpop.permute.xlu0 %5019
        %5023 = vset.pattern.permute.xlu0 0
        %5024 = vperm.xlu0 %5023, %v3834
        %v5025 = vpop.permute.xlu0 %5024
        %5028 = vset.pattern.permute.xlu0 0
        %5029 = vperm.xlu0 %5028, %v3835
        %v5030 = vpop.permute.xlu0 %5029
        %5033 = vset.pattern.permute.xlu0 0
        %5034 = vperm.xlu0 %5033, %v3836
        %v5035 = vpop.permute.xlu0 %5034
        %5038 = vset.pattern.permute.xlu0 0
        %5039 = vperm.xlu0 %5038, %v3837
        %v5040 = vpop.permute.xlu0 %5039
        %5043 = vset.pattern.permute.xlu0 0
        %5044 = vperm.xlu0 %5043, %v3838
        %v5045 = vpop.permute.xlu0 %5044
        %5048 = vset.pattern.permute.xlu0 0
        %5049 = vperm.xlu0 %5048, %v3839
        %v5050 = vpop.permute.xlu0 %5049
        %5053 = vset.pattern.permute.xlu0 0
        %5054 = vperm.xlu0 %5053, %v3840
        %v5055 = vpop.permute.xlu0 %5054
        %5058 = vset.pattern.permute.xlu0 0
        %5059 = vperm.xlu0 %5058, %v3841
        %v5060 = vpop.permute.xlu0 %5059
        %5063 = vset.pattern.permute.xlu0 0
        %5064 = vperm.xlu0 %5063, %v3842
        %v5065 = vpop.permute.xlu0 %5064
        %5068 = vset.pattern.permute.xlu0 0
        %5069 = vperm.xlu0 %5068, %v3843
        %v5070 = vpop.permute.xlu0 %5069
        %5073 = vset.pattern.permute.xlu0 0
        %5074 = vperm.xlu0 %5073, %v3844
        %v5075 = vpop.permute.xlu0 %5074
        %5078 = vset.pattern.permute.xlu0 0
        %5079 = vperm.xlu0 %5078, %v3845
        %v5080 = vpop.permute.xlu0 %5079
        %5083 = vset.pattern.permute.xlu0 0
        %5084 = vperm.xlu0 %5083, %v3846
        %v5085 = vpop.permute.xlu0 %5084
        %5088 = vset.pattern.permute.xlu0 0
        %5089 = vperm.xlu0 %5088, %v3847
        %v5090 = vpop.permute.xlu0 %5089
        %5093 = vset.pattern.permute.xlu0 0
        %5094 = vperm.xlu0 %5093, %v3848
        %v5095 = vpop.permute.xlu0 %5094
        %5098 = vset.pattern.permute.xlu0 0
        %5099 = vperm.xlu0 %5098, %v3849
        %v5100 = vpop.permute.xlu0 %5099
        %5103 = vset.pattern.permute.xlu0 0
        %5104 = vperm.xlu0 %5103, %v3850
        %v5105 = vpop.permute.xlu0 %5104
        %5108 = vset.pattern.permute.xlu0 0
        %5109 = vperm.xlu0 %5108, %v3851
        %v5110 = vpop.permute.xlu0 %5109
        %5113 = vset.pattern.permute.xlu0 0
        %5114 = vperm.xlu0 %5113, %v3852
        %v5115 = vpop.permute.xlu0 %5114
        %5118 = vset.pattern.permute.xlu0 0
        %5119 = vperm.xlu0 %5118, %v3853
        %v5120 = vpop.permute.xlu0 %5119
        %5123 = vset.pattern.permute.xlu0 0
        %5124 = vperm.xlu0 %5123, %v3854
        %v5125 = vpop.permute.xlu0 %5124
        %5128 = vset.pattern.permute.xlu0 0
        %5129 = vperm.xlu0 %5128, %v3855
        %v5130 = vpop.permute.xlu0 %5129
        %5133 = vset.pattern.permute.xlu0 0
        %5134 = vperm.xlu0 %5133, %v3856
        %v5135 = vpop.permute.xlu0 %5134
        %5138 = vset.pattern.permute.xlu0 0
        %5139 = vperm.xlu0 %5138, %v3857
        %v5140 = vpop.permute.xlu0 %5139
        %5143 = vset.pattern.permute.xlu0 0
        %5144 = vperm.xlu0 %5143, %v3858
        %v5145 = vpop.permute.xlu0 %5144
        %5148 = vset.pattern.permute.xlu0 0
        %5149 = vperm.xlu0 %5148, %v3859
        %v5150 = vpop.permute.xlu0 %5149
        %5153 = vset.pattern.permute.xlu0 0
        %5154 = vperm.xlu0 %5153, %v3860
        %v5155 = vpop.permute.xlu0 %5154
        %5158 = vset.pattern.permute.xlu0 0
        %5159 = vperm.xlu0 %5158, %v3861
        %v5160 = vpop.permute.xlu0 %5159
        %5163 = vset.pattern.permute.xlu0 0
        %5164 = vperm.xlu0 %5163, %v3862
        %v5165 = vpop.permute.xlu0 %5164
        %5168 = vset.pattern.permute.xlu0 0
        %5169 = vperm.xlu0 %5168, %v3863
        %v5170 = vpop.permute.xlu0 %5169
        %5173 = vset.pattern.permute.xlu0 0
        %5174 = vperm.xlu0 %5173, %v3864
        %v5175 = vpop.permute.xlu0 %5174
        %5178 = vset.pattern.permute.xlu0 0
        %5179 = vperm.xlu0 %5178, %v3865
        %v5180 = vpop.permute.xlu0 %5179
        %5183 = vset.pattern.permute.xlu0 0
        %5184 = vperm.xlu0 %5183, %v3866
        %v5185 = vpop.permute.xlu0 %5184
        %5188 = vset.pattern.permute.xlu0 0
        %5189 = vperm.xlu0 %5188, %v3867
        %v5190 = vpop.permute.xlu0 %5189
        %5193 = vset.pattern.permute.xlu0 0
        %5194 = vperm.xlu0 %5193, %v3868
        %v5195 = vpop.permute.xlu0 %5194
        %5198 = vset.pattern.permute.xlu0 0
        %5199 = vperm.xlu0 %5198, %v3869
        %v5200 = vpop.permute.xlu0 %5199
        %5203 = vset.pattern.permute.xlu0 0
        %5204 = vperm.xlu0 %5203, %v3870
        %v5205 = vpop.permute.xlu0 %5204
        %5208 = vset.pattern.permute.xlu0 0
        %5209 = vperm.xlu0 %5208, %v3871
        %v5210 = vpop.permute.xlu0 %5209
        %5213 = vset.pattern.permute.xlu0 0
        %5214 = vperm.xlu0 %5213, %v3872
        %v5215 = vpop.permute.xlu0 %5214
        %5218 = vset.pattern.permute.xlu0 0
        %5219 = vperm.xlu0 %5218, %v3873
        %v5220 = vpop.permute.xlu0 %5219
        %5223 = vset.pattern.permute.xlu0 0
        %5224 = vperm.xlu0 %5223, %v3874
        %v5225 = vpop.permute.xlu0 %5224
        %5228 = vset.pattern.permute.xlu0 0
        %5229 = vperm.xlu0 %5228, %v3875
        %v5230 = vpop.permute.xlu0 %5229
        %5233 = vset.pattern.permute.xlu0 0
        %5234 = vperm.xlu0 %5233, %v3876
        %v5235 = vpop.permute.xlu0 %5234
        %v5237 = vmul.f32 %v3061, %v3880
        %v5238 = vmul.f32 %v3062, %v3880
        %v5239 = vmul.f32 %v3063, %v3885
        %v5240 = vmul.f32 %v3064, %v3885
        %v5241 = vmul.f32 %v3065, %v3890
        %v5242 = vmul.f32 %v3066, %v3890
        %v5243 = vmul.f32 %v3067, %v3895
        %v5244 = vmul.f32 %v3068, %v3895
        %v5245 = vmul.f32 %v3069, %v3900
        %v5246 = vmul.f32 %v3070, %v3900
        %v5247 = vmul.f32 %v3071, %v3905
        %v5248 = vmul.f32 %v3072, %v3905
        %v5249 = vmul.f32 %v3073, %v3910
        %v5250 = vmul.f32 %v3074, %v3910
        %v5251 = vmul.f32 %v3075, %v3915
        %v5252 = vmul.f32 %v3076, %v3915
        %v5253 = vmul.f32 %v3077, %v3920
        %v5254 = vmul.f32 %v3078, %v3920
        %v5255 = vmul.f32 %v3079, %v3925
        %v5256 = vmul.f32 %v3080, %v3925
        %v5257 = vmul.f32 %v3081, %v3930
        %v5258 = vmul.f32 %v3082, %v3930
        %v5259 = vmul.f32 %v3083, %v3935
        %v5260 = vmul.f32 %v3084, %v3935
        %v5261 = vmul.f32 %v3085, %v3940
        %v5262 = vmul.f32 %v3086, %v3940
        %v5263 = vmul.f32 %v3087, %v3945
        %v5264 = vmul.f32 %v3088, %v3945
        %v5265 = vmul.f32 %v3089, %v3950
        %v5266 = vmul.f32 %v3090, %v3950
        %v5267 = vmul.f32 %v3091, %v3955
        %v5268 = vmul.f32 %v3092, %v3955
        %v5269 = vmul.f32 %v3093, %v3960
        %v5270 = vmul.f32 %v3094, %v3960
        %v5271 = vmul.f32 %v3095, %v3965
        %v5272 = vmul.f32 %v3096, %v3965
        %v5273 = vmul.f32 %v3097, %v3970
        %v5274 = vmul.f32 %v3098, %v3970
        %v5275 = vmul.f32 %v3099, %v3975
        %v5276 = vmul.f32 %v3100, %v3975
        %v5277 = vmul.f32 %v3101, %v3980
        %v5278 = vmul.f32 %v3102, %v3980
        %v5279 = vmul.f32 %v3103, %v3985
        %v5280 = vmul.f32 %v3104, %v3985
        %v5281 = vmul.f32 %v3105, %v3990
        %v5282 = vmul.f32 %v3106, %v3990
        %v5283 = vmul.f32 %v3107, %v3995
        %v5284 = vmul.f32 %v3108, %v3995
        %v5285 = vmul.f32 %v3109, %v4000
        %v5286 = vmul.f32 %v3110, %v4000
        %v5287 = vmul.f32 %v3111, %v4005
        %v5288 = vmul.f32 %v3112, %v4005
        %v5289 = vmul.f32 %v3113, %v4010
        %v5290 = vmul.f32 %v3114, %v4010
        %v5291 = vmul.f32 %v3115, %v4015
        %v5292 = vmul.f32 %v3116, %v4015
        %v5293 = vmul.f32 %v3117, %v4020
        %v5294 = vmul.f32 %v3118, %v4020
        %v5295 = vmul.f32 %v3119, %v4025
        %v5296 = vmul.f32 %v3120, %v4025
        %v5297 = vmul.f32 %v3121, %v4030
        %v5298 = vmul.f32 %v3122, %v4030
        %v5299 = vmul.f32 %v3123, %v4035
        %v5300 = vmul.f32 %v3124, %v4035
        %v5301 = vmul.f32 %v3125, %v4040
        %v5302 = vmul.f32 %v3126, %v4040
        %v5303 = vmul.f32 %v3127, %v4045
        %v5304 = vmul.f32 %v3128, %v4045
        %v5305 = vmul.f32 %v3129, %v4050
        %v5306 = vmul.f32 %v3130, %v4050
        %v5307 = vmul.f32 %v3131, %v4055
        %v5308 = vmul.f32 %v3132, %v4055
        %v5309 = vmul.f32 %v3133, %v4060
        %v5310 = vmul.f32 %v3134, %v4060
        %v5311 = vmul.f32 %v3135, %v4065
        %v5312 = vmul.f32 %v3136, %v4065
        %v5313 = vmul.f32 %v3137, %v4070
        %v5314 = vmul.f32 %v3138, %v4070
        %v5315 = vmul.f32 %v3139, %v4075
        %v5316 = vmul.f32 %v3140, %v4075
        %v5317 = vmul.f32 %v3141, %v4080
        %v5318 = vmul.f32 %v3142, %v4080
        %v5319 = vmul.f32 %v3143, %v4085
        %v5320 = vmul.f32 %v3144, %v4085
        %v5321 = vmul.f32 %v3145, %v4090
        %v5322 = vmul.f32 %v3146, %v4090
        %v5323 = vmul.f32 %v3147, %v4095
        %v5324 = vmul.f32 %v3148, %v4095
        %v5325 = vmul.f32 %v3149, %v4100
        %v5326 = vmul.f32 %v3150, %v4100
        %v5327 = vmul.f32 %v3151, %v4105
        %v5328 = vmul.f32 %v3152, %v4105
        %v5329 = vmul.f32 %v3153, %v4110
        %v5330 = vmul.f32 %v3154, %v4110
        %v5331 = vmul.f32 %v3155, %v4115
        %v5332 = vmul.f32 %v3156, %v4115
        %v5333 = vmul.f32 %v3157, %v4120
        %v5334 = vmul.f32 %v3158, %v4120
        %v5335 = vmul.f32 %v3159, %v4125
        %v5336 = vmul.f32 %v3160, %v4125
        %v5337 = vmul.f32 %v3161, %v4130
        %v5338 = vmul.f32 %v3162, %v4130
        %v5339 = vmul.f32 %v3163, %v4135
        %v5340 = vmul.f32 %v3164, %v4135
        %v5341 = vmul.f32 %v3165, %v4140
        %v5342 = vmul.f32 %v3166, %v4140
        %v5343 = vmul.f32 %v3167, %v4145
        %v5344 = vmul.f32 %v3168, %v4145
        %v5345 = vmul.f32 %v3169, %v4150
        %v5346 = vmul.f32 %v3170, %v4150
        %v5347 = vmul.f32 %v3171, %v4155
        %v5348 = vmul.f32 %v3172, %v4155
        %v5349 = vmul.f32 %v3173, %v4160
        %v5350 = vmul.f32 %v3174, %v4160
        %v5351 = vmul.f32 %v3175, %v4165
        %v5352 = vmul.f32 %v3176, %v4165
        %v5353 = vmul.f32 %v3177, %v4170
        %v5354 = vmul.f32 %v3178, %v4170
        %v5355 = vmul.f32 %v3179, %v4175
        %v5356 = vmul.f32 %v3180, %v4175
        %v5357 = vmul.f32 %v3181, %v4180
        %v5358 = vmul.f32 %v3182, %v4180
        %v5359 = vmul.f32 %v3183, %v4185
        %v5360 = vmul.f32 %v3184, %v4185
        %v5361 = vmul.f32 %v3185, %v4190
        %v5362 = vmul.f32 %v3186, %v4190
        %v5363 = vmul.f32 %v3187, %v4195
        %v5364 = vmul.f32 %v3188, %v4195
        %v5365 = vmul.f32 %v3189, %v4200
        %v5366 = vmul.f32 %v3190, %v4200
        %v5367 = vmul.f32 %v3191, %v4205
        %v5368 = vmul.f32 %v3192, %v4205
        %v5369 = vmul.f32 %v3193, %v4210
        %v5370 = vmul.f32 %v3194, %v4210
        %v5371 = vmul.f32 %v3195, %v4215
        %v5372 = vmul.f32 %v3196, %v4215
        %v5373 = vmul.f32 %v3197, %v4220
        %v5374 = vmul.f32 %v3198, %v4220
        %v5375 = vmul.f32 %v3199, %v4225
        %v5376 = vmul.f32 %v3200, %v4225
        %v5377 = vmul.f32 %v3201, %v4230
        %v5378 = vmul.f32 %v3202, %v4230
        %v5379 = vmul.f32 %v3203, %v4235
        %v5380 = vmul.f32 %v3204, %v4235
        %v5381 = vmul.f32 %v3205, %v4240
        %v5382 = vmul.f32 %v3206, %v4240
        %v5383 = vmul.f32 %v3207, %v4245
        %v5384 = vmul.f32 %v3208, %v4245
        %v5385 = vmul.f32 %v3209, %v4250
        %v5386 = vmul.f32 %v3210, %v4250
        %v5387 = vmul.f32 %v3211, %v4255
        %v5388 = vmul.f32 %v3212, %v4255
        %v5389 = vmul.f32 %v3213, %v4260
        %v5390 = vmul.f32 %v3214, %v4260
        %v5391 = vmul.f32 %v3215, %v4265
        %v5392 = vmul.f32 %v3216, %v4265
        %v5393 = vmul.f32 %v3217, %v4270
        %v5394 = vmul.f32 %v3218, %v4270
        %v5395 = vmul.f32 %v3219, %v4275
        %v5396 = vmul.f32 %v3220, %v4275
        %v5397 = vmul.f32 %v3221, %v4280
        %v5398 = vmul.f32 %v3222, %v4280
        %v5399 = vmul.f32 %v3223, %v4285
        %v5400 = vmul.f32 %v3224, %v4285
        %v5401 = vmul.f32 %v3225, %v4290
        %v5402 = vmul.f32 %v3226, %v4290
        %v5403 = vmul.f32 %v3227, %v4295
        %v5404 = vmul.f32 %v3228, %v4295
        %v5405 = vmul.f32 %v3229, %v4300
        %v5406 = vmul.f32 %v3230, %v4300
        %v5407 = vmul.f32 %v3231, %v4305
        %v5408 = vmul.f32 %v3232, %v4305
        %v5409 = vmul.f32 %v3233, %v4310
        %v5410 = vmul.f32 %v3234, %v4310
        %v5411 = vmul.f32 %v3235, %v4315
        %v5412 = vmul.f32 %v3236, %v4315
        %v5413 = vmul.f32 %v3237, %v4320
        %v5414 = vmul.f32 %v3238, %v4320
        %v5415 = vmul.f32 %v3239, %v4325
        %v5416 = vmul.f32 %v3240, %v4325
        %v5417 = vmul.f32 %v3241, %v4330
        %v5418 = vmul.f32 %v3242, %v4330
        %v5419 = vmul.f32 %v3243, %v4335
        %v5420 = vmul.f32 %v3244, %v4335
        %v5421 = vmul.f32 %v3245, %v4340
        %v5422 = vmul.f32 %v3246, %v4340
        %v5423 = vmul.f32 %v3247, %v4345
        %v5424 = vmul.f32 %v3248, %v4345
        %v5425 = vmul.f32 %v3249, %v4350
        %v5426 = vmul.f32 %v3250, %v4350
        %v5427 = vmul.f32 %v3251, %v4355
        %v5428 = vmul.f32 %v3252, %v4355
        %v5429 = vmul.f32 %v3253, %v4360
        %v5430 = vmul.f32 %v3254, %v4360
        %v5431 = vmul.f32 %v3255, %v4365
        %v5432 = vmul.f32 %v3256, %v4365
        %v5433 = vmul.f32 %v3257, %v4370
        %v5434 = vmul.f32 %v3258, %v4370
        %v5435 = vmul.f32 %v3259, %v4375
        %v5436 = vmul.f32 %v3260, %v4375
        %v5437 = vmul.f32 %v3261, %v4380
        %v5438 = vmul.f32 %v3262, %v4380
        %v5439 = vmul.f32 %v3263, %v4385
        %v5440 = vmul.f32 %v3264, %v4385
        %v5441 = vmul.f32 %v3265, %v4390
        %v5442 = vmul.f32 %v3266, %v4390
        %v5443 = vmul.f32 %v3267, %v4395
        %v5444 = vmul.f32 %v3268, %v4395
        %v5445 = vmul.f32 %v3269, %v4400
        %v5446 = vmul.f32 %v3270, %v4400
        %v5447 = vmul.f32 %v3271, %v4405
        %v5448 = vmul.f32 %v3272, %v4405
        %v5449 = vmul.f32 %v3273, %v4410
        %v5450 = vmul.f32 %v3274, %v4410
        %v5451 = vmul.f32 %v3275, %v4415
        %v5452 = vmul.f32 %v3276, %v4415
        %v5453 = vmul.f32 %v3277, %v4420
        %v5454 = vmul.f32 %v3278, %v4420
        %v5455 = vmul.f32 %v3279, %v4425
        %v5456 = vmul.f32 %v3280, %v4425
        %v5457 = vmul.f32 %v3281, %v4430
        %v5458 = vmul.f32 %v3282, %v4430
        %v5459 = vmul.f32 %v3283, %v4435
        %v5460 = vmul.f32 %v3284, %v4435
        %v5461 = vmul.f32 %v3285, %v4440
        %v5462 = vmul.f32 %v3286, %v4440
        %v5463 = vmul.f32 %v3287, %v4445
        %v5464 = vmul.f32 %v3288, %v4445
        %v5465 = vmul.f32 %v3289, %v4450
        %v5466 = vmul.f32 %v3290, %v4450
        %v5467 = vmul.f32 %v3291, %v4455
        %v5468 = vmul.f32 %v3292, %v4455
        %v5469 = vmul.f32 %v3293, %v4460
        %v5470 = vmul.f32 %v3294, %v4460
        %v5471 = vmul.f32 %v3295, %v4465
        %v5472 = vmul.f32 %v3296, %v4465
        %v5473 = vmul.f32 %v3297, %v4470
        %v5474 = vmul.f32 %v3298, %v4470
        %v5475 = vmul.f32 %v3299, %v4475
        %v5476 = vmul.f32 %v3300, %v4475
        %v5477 = vmul.f32 %v3301, %v4480
        %v5478 = vmul.f32 %v3302, %v4480
        %v5479 = vmul.f32 %v3303, %v4485
        %v5480 = vmul.f32 %v3304, %v4485
        %v5481 = vmul.f32 %v3305, %v4490
        %v5482 = vmul.f32 %v3306, %v4490
        %v5483 = vmul.f32 %v3307, %v4495
        %v5484 = vmul.f32 %v3308, %v4495
        %v5485 = vmul.f32 %v3309, %v4500
        %v5486 = vmul.f32 %v3310, %v4500
        %v5487 = vmul.f32 %v3311, %v4505
        %v5488 = vmul.f32 %v3312, %v4505
        %v5489 = vmul.f32 %v3313, %v4510
        %v5490 = vmul.f32 %v3314, %v4510
        %v5491 = vmul.f32 %v3315, %v4515
        %v5492 = vmul.f32 %v3316, %v4515
        %v5493 = vmul.f32 %v3317, %v4520
        %v5494 = vmul.f32 %v3318, %v4520
        %v5495 = vmul.f32 %v3319, %v4525
        %v5496 = vmul.f32 %v3320, %v4525
        %v5497 = vmul.f32 %v3321, %v4530
        %v5498 = vmul.f32 %v3322, %v4530
        %v5499 = vmul.f32 %v3323, %v4535
        %v5500 = vmul.f32 %v3324, %v4535
        %v5501 = vmul.f32 %v3325, %v4540
        %v5502 = vmul.f32 %v3326, %v4540
        %v5503 = vmul.f32 %v3327, %v4545
        %v5504 = vmul.f32 %v3328, %v4545
        %v5505 = vmul.f32 %v3329, %v4550
        %v5506 = vmul.f32 %v3330, %v4550
        %v5507 = vmul.f32 %v3331, %v4555
        %v5508 = vmul.f32 %v3332, %v4555
        %v5509 = vmul.f32 %v3333, %v4560
        %v5510 = vmul.f32 %v3334, %v4560
        %v5511 = vmul.f32 %v3335, %v4565
        %v5512 = vmul.f32 %v3336, %v4565
        %v5513 = vmul.f32 %v3337, %v4570
        %v5514 = vmul.f32 %v3338, %v4570
        %v5515 = vmul.f32 %v3339, %v4575
        %v5516 = vmul.f32 %v3340, %v4575
        %v5517 = vmul.f32 %v3341, %v4580
        %v5518 = vmul.f32 %v3342, %v4580
        %v5519 = vmul.f32 %v3343, %v4585
        %v5520 = vmul.f32 %v3344, %v4585
        %v5521 = vmul.f32 %v3345, %v4590
        %v5522 = vmul.f32 %v3346, %v4590
        %v5523 = vmul.f32 %v3347, %v4595
        %v5524 = vmul.f32 %v3348, %v4595
        %v5525 = vmul.f32 %v3349, %v4600
        %v5526 = vmul.f32 %v3350, %v4600
        %v5527 = vmul.f32 %v3351, %v4605
        %v5528 = vmul.f32 %v3352, %v4605
        %v5529 = vmul.f32 %v3353, %v4610
        %v5530 = vmul.f32 %v3354, %v4610
        %v5531 = vmul.f32 %v3355, %v4615
        %v5532 = vmul.f32 %v3356, %v4615
        %v5533 = vmul.f32 %v3357, %v4620
        %v5534 = vmul.f32 %v3358, %v4620
        %v5535 = vmul.f32 %v3359, %v4625
        %v5536 = vmul.f32 %v3360, %v4625
        %v5537 = vmul.f32 %v3361, %v4630
        %v5538 = vmul.f32 %v3362, %v4630
        %v5539 = vmul.f32 %v3363, %v4635
        %v5540 = vmul.f32 %v3364, %v4635
        %v5541 = vmul.f32 %v3365, %v4640
        %v5542 = vmul.f32 %v3366, %v4640
        %v5543 = vmul.f32 %v3367, %v4645
        %v5544 = vmul.f32 %v3368, %v4645
        %v5545 = vmul.f32 %v3369, %v4650
        %v5546 = vmul.f32 %v3370, %v4650
        %v5547 = vmul.f32 %v3371, %v4655
        %v5548 = vmul.f32 %v3372, %v4655
        %v5549 = vmul.f32 %v3373, %v4660
        %v5550 = vmul.f32 %v3374, %v4660
        %v5551 = vmul.f32 %v3375, %v4665
        %v5552 = vmul.f32 %v3376, %v4665
        %v5553 = vmul.f32 %v3377, %v4670
        %v5554 = vmul.f32 %v3378, %v4670
        %v5555 = vmul.f32 %v3379, %v4675
        %v5556 = vmul.f32 %v3380, %v4675
        %v5557 = vmul.f32 %v3381, %v4680
        %v5558 = vmul.f32 %v3382, %v4680
        %v5559 = vmul.f32 %v3383, %v4685
        %v5560 = vmul.f32 %v3384, %v4685
        %v5561 = vmul.f32 %v3385, %v4690
        %v5562 = vmul.f32 %v3386, %v4690
        %v5563 = vmul.f32 %v3387, %v4695
        %v5564 = vmul.f32 %v3388, %v4695
        %v5565 = vmul.f32 %v3389, %v4700
        %v5566 = vmul.f32 %v3390, %v4700
        %v5567 = vmul.f32 %v3391, %v4705
        %v5568 = vmul.f32 %v3392, %v4705
        %v5569 = vmul.f32 %v3393, %v4710
        %v5570 = vmul.f32 %v3394, %v4710
        %v5571 = vmul.f32 %v3395, %v4715
        %v5572 = vmul.f32 %v3396, %v4715
        %v5573 = vmul.f32 %v3397, %v4720
        %v5574 = vmul.f32 %v3398, %v4720
        %v5575 = vmul.f32 %v3399, %v4725
        %v5576 = vmul.f32 %v3400, %v4725
        %v5577 = vmul.f32 %v3401, %v4730
        %v5578 = vmul.f32 %v3402, %v4730
        %v5579 = vmul.f32 %v3403, %v4735
        %v5580 = vmul.f32 %v3404, %v4735
        %v5581 = vmul.f32 %v3405, %v4740
        %v5582 = vmul.f32 %v3406, %v4740
        %v5583 = vmul.f32 %v3407, %v4745
        %v5584 = vmul.f32 %v3408, %v4745
        %v5585 = vmul.f32 %v3409, %v4750
        %v5586 = vmul.f32 %v3410, %v4750
        %v5587 = vmul.f32 %v3411, %v4755
        %v5588 = vmul.f32 %v3412, %v4755
        %v5589 = vmul.f32 %v3413, %v4760
        %v5590 = vmul.f32 %v3414, %v4760
        %v5591 = vmul.f32 %v3415, %v4765
        %v5592 = vmul.f32 %v3416, %v4765
        %v5593 = vmul.f32 %v3417, %v4770
        %v5594 = vmul.f32 %v3418, %v4770
        %v5595 = vmul.f32 %v3419, %v4775
        %v5596 = vmul.f32 %v3420, %v4775
        %v5597 = vmul.f32 %v3421, %v4780
        %v5598 = vmul.f32 %v3422, %v4780
        %v5599 = vmul.f32 %v3423, %v4785
        %v5600 = vmul.f32 %v3424, %v4785
        %v5601 = vmul.f32 %v3425, %v4790
        %v5602 = vmul.f32 %v3426, %v4790
        %v5603 = vmul.f32 %v3427, %v4795
        %v5604 = vmul.f32 %v3428, %v4795
        %v5605 = vmul.f32 %v3429, %v4800
        %v5606 = vmul.f32 %v3430, %v4800
        %v5607 = vmul.f32 %v3431, %v4805
        %v5608 = vmul.f32 %v3432, %v4805
        %v5609 = vmul.f32 %v3433, %v4810
        %v5610 = vmul.f32 %v3434, %v4810
        %v5611 = vmul.f32 %v3435, %v4815
        %v5612 = vmul.f32 %v3436, %v4815
        %v5613 = vmul.f32 %v3437, %v4820
        %v5614 = vmul.f32 %v3438, %v4820
        %v5615 = vmul.f32 %v3439, %v4825
        %v5616 = vmul.f32 %v3440, %v4825
        %v5617 = vmul.f32 %v3441, %v4830
        %v5618 = vmul.f32 %v3442, %v4830
        %v5619 = vmul.f32 %v3443, %v4835
        %v5620 = vmul.f32 %v3444, %v4835
        %v5621 = vmul.f32 %v3445, %v4840
        %v5622 = vmul.f32 %v3446, %v4840
        %v5623 = vmul.f32 %v3447, %v4845
        %v5624 = vmul.f32 %v3448, %v4845
        %v5625 = vmul.f32 %v3449, %v4850
        %v5626 = vmul.f32 %v3450, %v4850
        %v5627 = vmul.f32 %v3451, %v4855
        %v5628 = vmul.f32 %v3452, %v4855
        %v5629 = vmul.f32 %v3453, %v4860
        %v5630 = vmul.f32 %v3454, %v4860
        %v5631 = vmul.f32 %v3455, %v4865
        %v5632 = vmul.f32 %v3456, %v4865
        %v5633 = vmul.f32 %v3457, %v4870
        %v5634 = vmul.f32 %v3458, %v4870
        %v5635 = vmul.f32 %v3459, %v4875
        %v5636 = vmul.f32 %v3460, %v4875
        %v5637 = vmul.f32 %v3461, %v4880
        %v5638 = vmul.f32 %v3462, %v4880
        %v5639 = vmul.f32 %v3463, %v4885
        %v5640 = vmul.f32 %v3464, %v4885
        %v5641 = vmul.f32 %v3465, %v4890
        %v5642 = vmul.f32 %v3466, %v4890
        %v5643 = vmul.f32 %v3467, %v4895
        %v5644 = vmul.f32 %v3468, %v4895
        %v5645 = vmul.f32 %v3469, %v4900
        %v5646 = vmul.f32 %v3470, %v4900
        %v5647 = vmul.f32 %v3471, %v4905
        %v5648 = vmul.f32 %v3472, %v4905
        %v5649 = vmul.f32 %v3473, %v4910
        %v5650 = vmul.f32 %v3474, %v4910
        %v5651 = vmul.f32 %v3475, %v4915
        %v5652 = vmul.f32 %v3476, %v4915
        %v5653 = vmul.f32 %v3477, %v4920
        %v5654 = vmul.f32 %v3478, %v4920
        %v5655 = vmul.f32 %v3479, %v4925
        %v5656 = vmul.f32 %v3480, %v4925
        %v5657 = vmul.f32 %v3481, %v4930
        %v5658 = vmul.f32 %v3482, %v4930
        %v5659 = vmul.f32 %v3483, %v4935
        %v5660 = vmul.f32 %v3484, %v4935
        %v5661 = vmul.f32 %v3485, %v4940
        %v5662 = vmul.f32 %v3486, %v4940
        %v5663 = vmul.f32 %v3487, %v4945
        %v5664 = vmul.f32 %v3488, %v4945
        %v5665 = vmul.f32 %v3489, %v4950
        %v5666 = vmul.f32 %v3490, %v4950
        %v5667 = vmul.f32 %v3491, %v4955
        %v5668 = vmul.f32 %v3492, %v4955
        %v5669 = vmul.f32 %v3493, %v4960
        %v5670 = vmul.f32 %v3494, %v4960
        %v5671 = vmul.f32 %v3495, %v4965
        %v5672 = vmul.f32 %v3496, %v4965
        %v5673 = vmul.f32 %v3497, %v4970
        %v5674 = vmul.f32 %v3498, %v4970
        %v5675 = vmul.f32 %v3499, %v4975
        %v5676 = vmul.f32 %v3500, %v4975
        %v5677 = vmul.f32 %v3501, %v4980
        %v5678 = vmul.f32 %v3502, %v4980
        %v5679 = vmul.f32 %v3503, %v4985
        %v5680 = vmul.f32 %v3504, %v4985
        %v5681 = vmul.f32 %v3505, %v4990
        %v5682 = vmul.f32 %v3506, %v4990
        %v5683 = vmul.f32 %v3507, %v4995
        %v5684 = vmul.f32 %v3508, %v4995
        %v5685 = vmul.f32 %v3509, %v5000
        %v5686 = vmul.f32 %v3510, %v5000
        %v5687 = vmul.f32 %v3511, %v5005
        %v5688 = vmul.f32 %v3512, %v5005
        %v5689 = vmul.f32 %v3513, %v5010
        %v5690 = vmul.f32 %v3514, %v5010
        %v5691 = vmul.f32 %v3515, %v5015
        %v5692 = vmul.f32 %v3516, %v5015
        %v5693 = vmul.f32 %v3517, %v5020
        %v5694 = vmul.f32 %v3518, %v5020
        %v5695 = vmul.f32 %v3519, %v5025
        %v5696 = vmul.f32 %v3520, %v5025
        %v5697 = vmul.f32 %v3521, %v5030
        %v5698 = vmul.f32 %v3522, %v5030
        %v5699 = vmul.f32 %v3523, %v5035
        %v5700 = vmul.f32 %v3524, %v5035
        %v5701 = vmul.f32 %v3525, %v5040
        %v5702 = vmul.f32 %v3526, %v5040
        %v5703 = vmul.f32 %v3527, %v5045
        %v5704 = vmul.f32 %v3528, %v5045
        %v5705 = vmul.f32 %v3529, %v5050
        %v5706 = vmul.f32 %v3530, %v5050
        %v5707 = vmul.f32 %v3531, %v5055
        %v5708 = vmul.f32 %v3532, %v5055
        %v5709 = vmul.f32 %v3533, %v5060
        %v5710 = vmul.f32 %v3534, %v5060
        %v5711 = vmul.f32 %v3535, %v5065
        %v5712 = vmul.f32 %v3536, %v5065
        %v5713 = vmul.f32 %v3537, %v5070
        %v5714 = vmul.f32 %v3538, %v5070
        %v5715 = vmul.f32 %v3539, %v5075
        %v5716 = vmul.f32 %v3540, %v5075
        %v5717 = vmul.f32 %v3541, %v5080
        %v5718 = vmul.f32 %v3542, %v5080
        %v5719 = vmul.f32 %v3543, %v5085
        %v5720 = vmul.f32 %v3544, %v5085
        %v5721 = vmul.f32 %v3545, %v5090
        %v5722 = vmul.f32 %v3546, %v5090
        %v5723 = vmul.f32 %v3547, %v5095
        %v5724 = vmul.f32 %v3548, %v5095
        %v5725 = vmul.f32 %v3549, %v5100
        %v5726 = vmul.f32 %v3550, %v5100
        %v5727 = vmul.f32 %v3551, %v5105
        %v5728 = vmul.f32 %v3552, %v5105
        %v5729 = vmul.f32 %v3553, %v5110
        %v5730 = vmul.f32 %v3554, %v5110
        %v5731 = vmul.f32 %v3555, %v5115
        %v5732 = vmul.f32 %v3556, %v5115
        %v5733 = vmul.f32 %v3557, %v5120
        %v5734 = vmul.f32 %v3558, %v5120
        %v5735 = vmul.f32 %v3559, %v5125
        %v5736 = vmul.f32 %v3560, %v5125
        %v5737 = vmul.f32 %v3561, %v5130
        %v5738 = vmul.f32 %v3562, %v5130
        %v5739 = vmul.f32 %v3563, %v5135
        %v5740 = vmul.f32 %v3564, %v5135
        %v5741 = vmul.f32 %v3565, %v5140
        %v5742 = vmul.f32 %v3566, %v5140
        %v5743 = vmul.f32 %v3567, %v5145
        %v5744 = vmul.f32 %v3568, %v5145
        %v5745 = vmul.f32 %v3569, %v5150
        %v5746 = vmul.f32 %v3570, %v5150
        %v5747 = vmul.f32 %v3571, %v5155
        %v5748 = vmul.f32 %v3572, %v5155
        %v5749 = vmul.f32 %v3573, %v5160
        %v5750 = vmul.f32 %v3574, %v5160
        %v5751 = vmul.f32 %v3575, %v5165
        %v5752 = vmul.f32 %v3576, %v5165
        %v5753 = vmul.f32 %v3577, %v5170
        %v5754 = vmul.f32 %v3578, %v5170
        %v5755 = vmul.f32 %v3579, %v5175
        %v5756 = vmul.f32 %v3580, %v5175
        %v5757 = vmul.f32 %v3581, %v5180
        %v5758 = vmul.f32 %v3582, %v5180
        %v5759 = vmul.f32 %v3583, %v5185
        %v5760 = vmul.f32 %v3584, %v5185
        %v5761 = vmul.f32 %v3585, %v5190
        %v5762 = vmul.f32 %v3586, %v5190
        %v5763 = vmul.f32 %v3587, %v5195
        %v5764 = vmul.f32 %v3588, %v5195
        %v5765 = vmul.f32 %v3589, %v5200
        %v5766 = vmul.f32 %v3590, %v5200
        %v5767 = vmul.f32 %v3591, %v5205
        %v5768 = vmul.f32 %v3592, %v5205
        %v5769 = vmul.f32 %v3593, %v5210
        %v5770 = vmul.f32 %v3594, %v5210
        %v5771 = vmul.f32 %v3595, %v5215
        %v5772 = vmul.f32 %v3596, %v5215
        %v5773 = vmul.f32 %v3597, %v5220
        %v5774 = vmul.f32 %v3598, %v5220
        %v5775 = vmul.f32 %v3599, %v5225
        %v5776 = vmul.f32 %v3600, %v5225
        %v5777 = vmul.f32 %v3601, %v5230
        %v5778 = vmul.f32 %v3602, %v5230
        %v5779 = vmul.f32 %v3603, %v5235
        %v5780 = vmul.f32 %v3604, %v5235
        %v5781 = vadd.f32 %v5237, %v5238
        %v5782 = vadd.f32 %v5781, %v5239
        %v5783 = vadd.f32 %v5782, %v5240
        %v5784 = vadd.f32 %v5783, %v5241
        %v5785 = vadd.f32 %v5784, %v5242
        %v5786 = vadd.f32 %v5785, %v5243
        %v5787 = vadd.f32 %v5786, %v5244
        %v5788 = vadd.f32 %v5787, %v5245
        %v5789 = vadd.f32 %v5788, %v5246
        %v5790 = vadd.f32 %v5789, %v5247
        %v5791 = vadd.f32 %v5790, %v5248
        %v5792 = vadd.f32 %v5791, %v5249
        %v5793 = vadd.f32 %v5792, %v5250
        %v5794 = vadd.f32 %v5793, %v5251
        %v5795 = vadd.f32 %v5794, %v5252
        %v5796 = vadd.f32 %v5795, %v5253
        %v5797 = vadd.f32 %v5796, %v5254
        %v5798 = vadd.f32 %v5797, %v5255
        %v5799 = vadd.f32 %v5798, %v5256
        %v5800 = vadd.f32 %v5799, %v5257
        %v5801 = vadd.f32 %v5800, %v5258
        %v5802 = vadd.f32 %v5801, %v5259
        %v5803 = vadd.f32 %v5802, %v5260
        %v5804 = vadd.f32 %v5803, %v5261
        %v5805 = vadd.f32 %v5804, %v5262
        %v5806 = vadd.f32 %v5805, %v5263
        %v5807 = vadd.f32 %v5806, %v5264
        %v5808 = vadd.f32 %v5807, %v5265
        %v5809 = vadd.f32 %v5808, %v5266
        %v5810 = vadd.f32 %v5809, %v5267
        %v5811 = vadd.f32 %v5810, %v5268
        %v5812 = vadd.f32 %v5811, %v5269
        %v5813 = vadd.f32 %v5812, %v5270
        %v5814 = vadd.f32 %v5813, %v5271
        %v5815 = vadd.f32 %v5814, %v5272
        %v5816 = vadd.f32 %v5815, %v5273
        %v5817 = vadd.f32 %v5816, %v5274
        %v5818 = vadd.f32 %v5817, %v5275
        %v5819 = vadd.f32 %v5818, %v5276
        %v5820 = vadd.f32 %v5819, %v5277
        %v5821 = vadd.f32 %v5820, %v5278
        %v5822 = vadd.f32 %v5821, %v5279
        %v5823 = vadd.f32 %v5822, %v5280
        %v5824 = vadd.f32 %v5823, %v5281
        %v5825 = vadd.f32 %v5824, %v5282
        %v5826 = vadd.f32 %v5825, %v5283
        %v5827 = vadd.f32 %v5826, %v5284
        %v5828 = vadd.f32 %v5827, %v5285
        %v5829 = vadd.f32 %v5828, %v5286
        %v5830 = vadd.f32 %v5829, %v5287
        %v5831 = vadd.f32 %v5830, %v5288
        %v5832 = vadd.f32 %v5831, %v5289
        %v5833 = vadd.f32 %v5832, %v5290
        %v5834 = vadd.f32 %v5833, %v5291
        %v5835 = vadd.f32 %v5834, %v5292
        %v5836 = vadd.f32 %v5835, %v5293
        %v5837 = vadd.f32 %v5836, %v5294
        %v5838 = vadd.f32 %v5837, %v5295
        %v5839 = vadd.f32 %v5838, %v5296
        %v5840 = vadd.f32 %v5839, %v5297
        %v5841 = vadd.f32 %v5840, %v5298
        %v5842 = vadd.f32 %v5841, %v5299
        %v5843 = vadd.f32 %v5842, %v5300
        %v5844 = vadd.f32 %v5843, %v5301
        %v5845 = vadd.f32 %v5844, %v5302
        %v5846 = vadd.f32 %v5845, %v5303
        %v5847 = vadd.f32 %v5846, %v5304
        %v5848 = vadd.f32 %v5847, %v5305
        %v5849 = vadd.f32 %v5848, %v5306
        %v5850 = vadd.f32 %v5849, %v5307
        %v5851 = vadd.f32 %v5850, %v5308
        %v5852 = vadd.f32 %v5851, %v5309
        %v5853 = vadd.f32 %v5852, %v5310
        %v5854 = vadd.f32 %v5853, %v5311
        %v5855 = vadd.f32 %v5854, %v5312
        %v5856 = vadd.f32 %v5855, %v5313
        %v5857 = vadd.f32 %v5856, %v5314
        %v5858 = vadd.f32 %v5857, %v5315
        %v5859 = vadd.f32 %v5858, %v5316
        %v5860 = vadd.f32 %v5859, %v5317
        %v5861 = vadd.f32 %v5860, %v5318
        %v5862 = vadd.f32 %v5861, %v5319
        %v5863 = vadd.f32 %v5862, %v5320
        %v5864 = vadd.f32 %v5863, %v5321
        %v5865 = vadd.f32 %v5864, %v5322
        %v5866 = vadd.f32 %v5865, %v5323
        %v5867 = vadd.f32 %v5866, %v5324
        %v5868 = vadd.f32 %v5867, %v5325
        %v5869 = vadd.f32 %v5868, %v5326
        %v5870 = vadd.f32 %v5869, %v5327
        %v5871 = vadd.f32 %v5870, %v5328
        %v5872 = vadd.f32 %v5871, %v5329
        %v5873 = vadd.f32 %v5872, %v5330
        %v5874 = vadd.f32 %v5873, %v5331
        %v5875 = vadd.f32 %v5874, %v5332
        %v5876 = vadd.f32 %v5875, %v5333
        %v5877 = vadd.f32 %v5876, %v5334
        %v5878 = vadd.f32 %v5877, %v5335
        %v5879 = vadd.f32 %v5878, %v5336
        %v5880 = vadd.f32 %v5879, %v5337
        %v5881 = vadd.f32 %v5880, %v5338
        %v5882 = vadd.f32 %v5881, %v5339
        %v5883 = vadd.f32 %v5882, %v5340
        %v5884 = vadd.f32 %v5883, %v5341
        %v5885 = vadd.f32 %v5884, %v5342
        %v5886 = vadd.f32 %v5885, %v5343
        %v5887 = vadd.f32 %v5886, %v5344
        %v5888 = vadd.f32 %v5887, %v5345
        %v5889 = vadd.f32 %v5888, %v5346
        %v5890 = vadd.f32 %v5889, %v5347
        %v5891 = vadd.f32 %v5890, %v5348
        %v5892 = vadd.f32 %v5891, %v5349
        %v5893 = vadd.f32 %v5892, %v5350
        %v5894 = vadd.f32 %v5893, %v5351
        %v5895 = vadd.f32 %v5894, %v5352
        %v5896 = vadd.f32 %v5895, %v5353
        %v5897 = vadd.f32 %v5896, %v5354
        %v5898 = vadd.f32 %v5897, %v5355
        %v5899 = vadd.f32 %v5898, %v5356
        %v5900 = vadd.f32 %v5899, %v5357
        %v5901 = vadd.f32 %v5900, %v5358
        %v5902 = vadd.f32 %v5901, %v5359
        %v5903 = vadd.f32 %v5902, %v5360
        %v5904 = vadd.f32 %v5903, %v5361
        %v5905 = vadd.f32 %v5904, %v5362
        %v5906 = vadd.f32 %v5905, %v5363
        %v5907 = vadd.f32 %v5906, %v5364
        %v5908 = vadd.f32 %v5907, %v5365
        %v5909 = vadd.f32 %v5908, %v5366
        %v5910 = vadd.f32 %v5909, %v5367
        %v5911 = vadd.f32 %v5910, %v5368
        %v5912 = vadd.f32 %v5911, %v5369
        %v5913 = vadd.f32 %v5912, %v5370
        %v5914 = vadd.f32 %v5913, %v5371
        %v5915 = vadd.f32 %v5914, %v5372
        %v5916 = vadd.f32 %v5915, %v5373
        %v5917 = vadd.f32 %v5916, %v5374
        %v5918 = vadd.f32 %v5917, %v5375
        %v5919 = vadd.f32 %v5918, %v5376
        %v5920 = vadd.f32 %v5919, %v5377
        %v5921 = vadd.f32 %v5920, %v5378
        %v5922 = vadd.f32 %v5921, %v5379
        %v5923 = vadd.f32 %v5922, %v5380
        %v5924 = vadd.f32 %v5923, %v5381
        %v5925 = vadd.f32 %v5924, %v5382
        %v5926 = vadd.f32 %v5925, %v5383
        %v5927 = vadd.f32 %v5926, %v5384
        %v5928 = vadd.f32 %v5927, %v5385
        %v5929 = vadd.f32 %v5928, %v5386
        %v5930 = vadd.f32 %v5929, %v5387
        %v5931 = vadd.f32 %v5930, %v5388
        %v5932 = vadd.f32 %v5931, %v5389
        %v5933 = vadd.f32 %v5932, %v5390
        %v5934 = vadd.f32 %v5933, %v5391
        %v5935 = vadd.f32 %v5934, %v5392
        %v5936 = vadd.f32 %v5935, %v5393
        %v5937 = vadd.f32 %v5936, %v5394
        %v5938 = vadd.f32 %v5937, %v5395
        %v5939 = vadd.f32 %v5938, %v5396
        %v5940 = vadd.f32 %v5939, %v5397
        %v5941 = vadd.f32 %v5940, %v5398
        %v5942 = vadd.f32 %v5941, %v5399
        %v5943 = vadd.f32 %v5942, %v5400
        %v5944 = vadd.f32 %v5943, %v5401
        %v5945 = vadd.f32 %v5944, %v5402
        %v5946 = vadd.f32 %v5945, %v5403
        %v5947 = vadd.f32 %v5946, %v5404
        %v5948 = vadd.f32 %v5947, %v5405
        %v5949 = vadd.f32 %v5948, %v5406
        %v5950 = vadd.f32 %v5949, %v5407
        %v5951 = vadd.f32 %v5950, %v5408
        %v5952 = vadd.f32 %v5951, %v5409
        %v5953 = vadd.f32 %v5952, %v5410
        %v5954 = vadd.f32 %v5953, %v5411
        %v5955 = vadd.f32 %v5954, %v5412
        %v5956 = vadd.f32 %v5955, %v5413
        %v5957 = vadd.f32 %v5956, %v5414
        %v5958 = vadd.f32 %v5957, %v5415
        %v5959 = vadd.f32 %v5958, %v5416
        %v5960 = vadd.f32 %v5959, %v5417
        %v5961 = vadd.f32 %v5960, %v5418
        %v5962 = vadd.f32 %v5961, %v5419
        %v5963 = vadd.f32 %v5962, %v5420
        %v5964 = vadd.f32 %v5963, %v5421
        %v5965 = vadd.f32 %v5964, %v5422
        %v5966 = vadd.f32 %v5965, %v5423
        %v5967 = vadd.f32 %v5966, %v5424
        %v5968 = vadd.f32 %v5967, %v5425
        %v5969 = vadd.f32 %v5968, %v5426
        %v5970 = vadd.f32 %v5969, %v5427
        %v5971 = vadd.f32 %v5970, %v5428
        %v5972 = vadd.f32 %v5971, %v5429
        %v5973 = vadd.f32 %v5972, %v5430
        %v5974 = vadd.f32 %v5973, %v5431
        %v5975 = vadd.f32 %v5974, %v5432
        %v5976 = vadd.f32 %v5975, %v5433
        %v5977 = vadd.f32 %v5976, %v5434
        %v5978 = vadd.f32 %v5977, %v5435
        %v5979 = vadd.f32 %v5978, %v5436
        %v5980 = vadd.f32 %v5979, %v5437
        %v5981 = vadd.f32 %v5980, %v5438
        %v5982 = vadd.f32 %v5981, %v5439
        %v5983 = vadd.f32 %v5982, %v5440
        %v5984 = vadd.f32 %v5983, %v5441
        %v5985 = vadd.f32 %v5984, %v5442
        %v5986 = vadd.f32 %v5985, %v5443
        %v5987 = vadd.f32 %v5986, %v5444
        %v5988 = vadd.f32 %v5987, %v5445
        %v5989 = vadd.f32 %v5988, %v5446
        %v5990 = vadd.f32 %v5989, %v5447
        %v5991 = vadd.f32 %v5990, %v5448
        %v5992 = vadd.f32 %v5991, %v5449
        %v5993 = vadd.f32 %v5992, %v5450
        %v5994 = vadd.f32 %v5993, %v5451
        %v5995 = vadd.f32 %v5994, %v5452
        %v5996 = vadd.f32 %v5995, %v5453
        %v5997 = vadd.f32 %v5996, %v5454
        %v5998 = vadd.f32 %v5997, %v5455
        %v5999 = vadd.f32 %v5998, %v5456
        %v6000 = vadd.f32 %v5999, %v5457
        %v6001 = vadd.f32 %v6000, %v5458
        %v6002 = vadd.f32 %v6001, %v5459
        %v6003 = vadd.f32 %v6002, %v5460
        %v6004 = vadd.f32 %v6003, %v5461
        %v6005 = vadd.f32 %v6004, %v5462
        %v6006 = vadd.f32 %v6005, %v5463
        %v6007 = vadd.f32 %v6006, %v5464
        %v6008 = vadd.f32 %v6007, %v5465
        %v6009 = vadd.f32 %v6008, %v5466
        %v6010 = vadd.f32 %v6009, %v5467
        %v6011 = vadd.f32 %v6010, %v5468
        %v6012 = vadd.f32 %v6011, %v5469
        %v6013 = vadd.f32 %v6012, %v5470
        %v6014 = vadd.f32 %v6013, %v5471
        %v6015 = vadd.f32 %v6014, %v5472
        %v6016 = vadd.f32 %v6015, %v5473
        %v6017 = vadd.f32 %v6016, %v5474
        %v6018 = vadd.f32 %v6017, %v5475
        %v6019 = vadd.f32 %v6018, %v5476
        %v6020 = vadd.f32 %v6019, %v5477
        %v6021 = vadd.f32 %v6020, %v5478
        %v6022 = vadd.f32 %v6021, %v5479
        %v6023 = vadd.f32 %v6022, %v5480
        %v6024 = vadd.f32 %v6023, %v5481
        %v6025 = vadd.f32 %v6024, %v5482
        %v6026 = vadd.f32 %v6025, %v5483
        %v6027 = vadd.f32 %v6026, %v5484
        %v6028 = vadd.f32 %v6027, %v5485
        %v6029 = vadd.f32 %v6028, %v5486
        %v6030 = vadd.f32 %v6029, %v5487
        %v6031 = vadd.f32 %v6030, %v5488
        %v6032 = vadd.f32 %v6031, %v5489
        %v6033 = vadd.f32 %v6032, %v5490
        %v6034 = vadd.f32 %v6033, %v5491
        %v6035 = vadd.f32 %v6034, %v5492
        %v6036 = vadd.f32 %v6035, %v5493
        %v6037 = vadd.f32 %v6036, %v5494
        %v6038 = vadd.f32 %v6037, %v5495
        %v6039 = vadd.f32 %v6038, %v5496
        %v6040 = vadd.f32 %v6039, %v5497
        %v6041 = vadd.f32 %v6040, %v5498
        %v6042 = vadd.f32 %v6041, %v5499
        %v6043 = vadd.f32 %v6042, %v5500
        %v6044 = vadd.f32 %v6043, %v5501
        %v6045 = vadd.f32 %v6044, %v5502
        %v6046 = vadd.f32 %v6045, %v5503
        %v6047 = vadd.f32 %v6046, %v5504
        %v6048 = vadd.f32 %v6047, %v5505
        %v6049 = vadd.f32 %v6048, %v5506
        %v6050 = vadd.f32 %v6049, %v5507
        %v6051 = vadd.f32 %v6050, %v5508
        %v6052 = vadd.f32 %v6051, %v5509
        %v6053 = vadd.f32 %v6052, %v5510
        %v6054 = vadd.f32 %v6053, %v5511
        %v6055 = vadd.f32 %v6054, %v5512
        %v6056 = vadd.f32 %v6055, %v5513
        %v6057 = vadd.f32 %v6056, %v5514
        %v6058 = vadd.f32 %v6057, %v5515
        %v6059 = vadd.f32 %v6058, %v5516
        %v6060 = vadd.f32 %v6059, %v5517
        %v6061 = vadd.f32 %v6060, %v5518
        %v6062 = vadd.f32 %v6061, %v5519
        %v6063 = vadd.f32 %v6062, %v5520
        %v6064 = vadd.f32 %v6063, %v5521
        %v6065 = vadd.f32 %v6064, %v5522
        %v6066 = vadd.f32 %v6065, %v5523
        %v6067 = vadd.f32 %v6066, %v5524
        %v6068 = vadd.f32 %v6067, %v5525
        %v6069 = vadd.f32 %v6068, %v5526
        %v6070 = vadd.f32 %v6069, %v5527
        %v6071 = vadd.f32 %v6070, %v5528
        %v6072 = vadd.f32 %v6071, %v5529
        %v6073 = vadd.f32 %v6072, %v5530
        %v6074 = vadd.f32 %v6073, %v5531
        %v6075 = vadd.f32 %v6074, %v5532
        %v6076 = vadd.f32 %v6075, %v5533
        %v6077 = vadd.f32 %v6076, %v5534
        %v6078 = vadd.f32 %v6077, %v5535
        %v6079 = vadd.f32 %v6078, %v5536
        %v6080 = vadd.f32 %v6079, %v5537
        %v6081 = vadd.f32 %v6080, %v5538
        %v6082 = vadd.f32 %v6081, %v5539
        %v6083 = vadd.f32 %v6082, %v5540
        %v6084 = vadd.f32 %v6083, %v5541
        %v6085 = vadd.f32 %v6084, %v5542
        %v6086 = vadd.f32 %v6085, %v5543
        %v6087 = vadd.f32 %v6086, %v5544
        %v6088 = vadd.f32 %v6087, %v5545
        %v6089 = vadd.f32 %v6088, %v5546
        %v6090 = vadd.f32 %v6089, %v5547
        %v6091 = vadd.f32 %v6090, %v5548
        %v6092 = vadd.f32 %v6091, %v5549
        %v6093 = vadd.f32 %v6092, %v5550
        %v6094 = vadd.f32 %v6093, %v5551
        %v6095 = vadd.f32 %v6094, %v5552
        %v6096 = vadd.f32 %v6095, %v5553
        %v6097 = vadd.f32 %v6096, %v5554
        %v6098 = vadd.f32 %v6097, %v5555
        %v6099 = vadd.f32 %v6098, %v5556
        %v6100 = vadd.f32 %v6099, %v5557
        %v6101 = vadd.f32 %v6100, %v5558
        %v6102 = vadd.f32 %v6101, %v5559
        %v6103 = vadd.f32 %v6102, %v5560
        %v6104 = vadd.f32 %v6103, %v5561
        %v6105 = vadd.f32 %v6104, %v5562
        %v6106 = vadd.f32 %v6105, %v5563
        %v6107 = vadd.f32 %v6106, %v5564
        %v6108 = vadd.f32 %v6107, %v5565
        %v6109 = vadd.f32 %v6108, %v5566
        %v6110 = vadd.f32 %v6109, %v5567
        %v6111 = vadd.f32 %v6110, %v5568
        %v6112 = vadd.f32 %v6111, %v5569
        %v6113 = vadd.f32 %v6112, %v5570
        %v6114 = vadd.f32 %v6113, %v5571
        %v6115 = vadd.f32 %v6114, %v5572
        %v6116 = vadd.f32 %v6115, %v5573
        %v6117 = vadd.f32 %v6116, %v5574
        %v6118 = vadd.f32 %v6117, %v5575
        %v6119 = vadd.f32 %v6118, %v5576
        %v6120 = vadd.f32 %v6119, %v5577
        %v6121 = vadd.f32 %v6120, %v5578
        %v6122 = vadd.f32 %v6121, %v5579
        %v6123 = vadd.f32 %v6122, %v5580
        %v6124 = vadd.f32 %v6123, %v5581
        %v6125 = vadd.f32 %v6124, %v5582
        %v6126 = vadd.f32 %v6125, %v5583
        %v6127 = vadd.f32 %v6126, %v5584
        %v6128 = vadd.f32 %v6127, %v5585
        %v6129 = vadd.f32 %v6128, %v5586
        %v6130 = vadd.f32 %v6129, %v5587
        %v6131 = vadd.f32 %v6130, %v5588
        %v6132 = vadd.f32 %v6131, %v5589
        %v6133 = vadd.f32 %v6132, %v5590
        %v6134 = vadd.f32 %v6133, %v5591
        %v6135 = vadd.f32 %v6134, %v5592
        %v6136 = vadd.f32 %v6135, %v5593
        %v6137 = vadd.f32 %v6136, %v5594
        %v6138 = vadd.f32 %v6137, %v5595
        %v6139 = vadd.f32 %v6138, %v5596
        %v6140 = vadd.f32 %v6139, %v5597
        %v6141 = vadd.f32 %v6140, %v5598
        %v6142 = vadd.f32 %v6141, %v5599
        %v6143 = vadd.f32 %v6142, %v5600
        %v6144 = vadd.f32 %v6143, %v5601
        %v6145 = vadd.f32 %v6144, %v5602
        %v6146 = vadd.f32 %v6145, %v5603
        %v6147 = vadd.f32 %v6146, %v5604
        %v6148 = vadd.f32 %v6147, %v5605
        %v6149 = vadd.f32 %v6148, %v5606
        %v6150 = vadd.f32 %v6149, %v5607
        %v6151 = vadd.f32 %v6150, %v5608
        %v6152 = vadd.f32 %v6151, %v5609
        %v6153 = vadd.f32 %v6152, %v5610
        %v6154 = vadd.f32 %v6153, %v5611
        %v6155 = vadd.f32 %v6154, %v5612
        %v6156 = vadd.f32 %v6155, %v5613
        %v6157 = vadd.f32 %v6156, %v5614
        %v6158 = vadd.f32 %v6157, %v5615
        %v6159 = vadd.f32 %v6158, %v5616
        %v6160 = vadd.f32 %v6159, %v5617
        %v6161 = vadd.f32 %v6160, %v5618
        %v6162 = vadd.f32 %v6161, %v5619
        %v6163 = vadd.f32 %v6162, %v5620
        %v6164 = vadd.f32 %v6163, %v5621
        %v6165 = vadd.f32 %v6164, %v5622
        %v6166 = vadd.f32 %v6165, %v5623
        %v6167 = vadd.f32 %v6166, %v5624
        %v6168 = vadd.f32 %v6167, %v5625
        %v6169 = vadd.f32 %v6168, %v5626
        %v6170 = vadd.f32 %v6169, %v5627
        %v6171 = vadd.f32 %v6170, %v5628
        %v6172 = vadd.f32 %v6171, %v5629
        %v6173 = vadd.f32 %v6172, %v5630
        %v6174 = vadd.f32 %v6173, %v5631
        %v6175 = vadd.f32 %v6174, %v5632
        %v6176 = vadd.f32 %v6175, %v5633
        %v6177 = vadd.f32 %v6176, %v5634
        %v6178 = vadd.f32 %v6177, %v5635
        %v6179 = vadd.f32 %v6178, %v5636
        %v6180 = vadd.f32 %v6179, %v5637
        %v6181 = vadd.f32 %v6180, %v5638
        %v6182 = vadd.f32 %v6181, %v5639
        %v6183 = vadd.f32 %v6182, %v5640
        %v6184 = vadd.f32 %v6183, %v5641
        %v6185 = vadd.f32 %v6184, %v5642
        %v6186 = vadd.f32 %v6185, %v5643
        %v6187 = vadd.f32 %v6186, %v5644
        %v6188 = vadd.f32 %v6187, %v5645
        %v6189 = vadd.f32 %v6188, %v5646
        %v6190 = vadd.f32 %v6189, %v5647
        %v6191 = vadd.f32 %v6190, %v5648
        %v6192 = vadd.f32 %v6191, %v5649
        %v6193 = vadd.f32 %v6192, %v5650
        %v6194 = vadd.f32 %v6193, %v5651
        %v6195 = vadd.f32 %v6194, %v5652
        %v6196 = vadd.f32 %v6195, %v5653
        %v6197 = vadd.f32 %v6196, %v5654
        %v6198 = vadd.f32 %v6197, %v5655
        %v6199 = vadd.f32 %v6198, %v5656
        %v6200 = vadd.f32 %v6199, %v5657
        %v6201 = vadd.f32 %v6200, %v5658
        %v6202 = vadd.f32 %v6201, %v5659
        %v6203 = vadd.f32 %v6202, %v5660
        %v6204 = vadd.f32 %v6203, %v5661
        %v6205 = vadd.f32 %v6204, %v5662
        %v6206 = vadd.f32 %v6205, %v5663
        %v6207 = vadd.f32 %v6206, %v5664
        %v6208 = vadd.f32 %v6207, %v5665
        %v6209 = vadd.f32 %v6208, %v5666
        %v6210 = vadd.f32 %v6209, %v5667
        %v6211 = vadd.f32 %v6210, %v5668
        %v6212 = vadd.f32 %v6211, %v5669
        %v6213 = vadd.f32 %v6212, %v5670
        %v6214 = vadd.f32 %v6213, %v5671
        %v6215 = vadd.f32 %v6214, %v5672
        %v6216 = vadd.f32 %v6215, %v5673
        %v6217 = vadd.f32 %v6216, %v5674
        %v6218 = vadd.f32 %v6217, %v5675
        %v6219 = vadd.f32 %v6218, %v5676
        %v6220 = vadd.f32 %v6219, %v5677
        %v6221 = vadd.f32 %v6220, %v5678
        %v6222 = vadd.f32 %v6221, %v5679
        %v6223 = vadd.f32 %v6222, %v5680
        %v6224 = vadd.f32 %v6223, %v5681
        %v6225 = vadd.f32 %v6224, %v5682
        %v6226 = vadd.f32 %v6225, %v5683
        %v6227 = vadd.f32 %v6226, %v5684
        %v6228 = vadd.f32 %v6227, %v5685
        %v6229 = vadd.f32 %v6228, %v5686
        %v6230 = vadd.f32 %v6229, %v5687
        %v6231 = vadd.f32 %v6230, %v5688
        %v6232 = vadd.f32 %v6231, %v5689
        %v6233 = vadd.f32 %v6232, %v5690
        %v6234 = vadd.f32 %v6233, %v5691
        %v6235 = vadd.f32 %v6234, %v5692
        %v6236 = vadd.f32 %v6235, %v5693
        %v6237 = vadd.f32 %v6236, %v5694
        %v6238 = vadd.f32 %v6237, %v5695
        %v6239 = vadd.f32 %v6238, %v5696
        %v6240 = vadd.f32 %v6239, %v5697
        %v6241 = vadd.f32 %v6240, %v5698
        %v6242 = vadd.f32 %v6241, %v5699
        %v6243 = vadd.f32 %v6242, %v5700
        %v6244 = vadd.f32 %v6243, %v5701
        %v6245 = vadd.f32 %v6244, %v5702
        %v6246 = vadd.f32 %v6245, %v5703
        %v6247 = vadd.f32 %v6246, %v5704
        %v6248 = vadd.f32 %v6247, %v5705
        %v6249 = vadd.f32 %v6248, %v5706
        %v6250 = vadd.f32 %v6249, %v5707
        %v6251 = vadd.f32 %v6250, %v5708
        %v6252 = vadd.f32 %v6251, %v5709
        %v6253 = vadd.f32 %v6252, %v5710
        %v6254 = vadd.f32 %v6253, %v5711
        %v6255 = vadd.f32 %v6254, %v5712
        %v6256 = vadd.f32 %v6255, %v5713
        %v6257 = vadd.f32 %v6256, %v5714
        %v6258 = vadd.f32 %v6257, %v5715
        %v6259 = vadd.f32 %v6258, %v5716
        %v6260 = vadd.f32 %v6259, %v5717
        %v6261 = vadd.f32 %v6260, %v5718
        %v6262 = vadd.f32 %v6261, %v5719
        %v6263 = vadd.f32 %v6262, %v5720
        %v6264 = vadd.f32 %v6263, %v5721
        %v6265 = vadd.f32 %v6264, %v5722
        %v6266 = vadd.f32 %v6265, %v5723
        %v6267 = vadd.f32 %v6266, %v5724
        %v6268 = vadd.f32 %v6267, %v5725
        %v6269 = vadd.f32 %v6268, %v5726
        %v6270 = vadd.f32 %v6269, %v5727
        %v6271 = vadd.f32 %v6270, %v5728
        %v6272 = vadd.f32 %v6271, %v5729
        %v6273 = vadd.f32 %v6272, %v5730
        %v6274 = vadd.f32 %v6273, %v5731
        %v6275 = vadd.f32 %v6274, %v5732
        %v6276 = vadd.f32 %v6275, %v5733
        %v6277 = vadd.f32 %v6276, %v5734
        %v6278 = vadd.f32 %v6277, %v5735
        %v6279 = vadd.f32 %v6278, %v5736
        %v6280 = vadd.f32 %v6279, %v5737
        %v6281 = vadd.f32 %v6280, %v5738
        %v6282 = vadd.f32 %v6281, %v5739
        %v6283 = vadd.f32 %v6282, %v5740
        %v6284 = vadd.f32 %v6283, %v5741
        %v6285 = vadd.f32 %v6284, %v5742
        %v6286 = vadd.f32 %v6285, %v5743
        %v6287 = vadd.f32 %v6286, %v5744
        %v6288 = vadd.f32 %v6287, %v5745
        %v6289 = vadd.f32 %v6288, %v5746
        %v6290 = vadd.f32 %v6289, %v5747
        %v6291 = vadd.f32 %v6290, %v5748
        %v6292 = vadd.f32 %v6291, %v5749
        %v6293 = vadd.f32 %v6292, %v5750
        %v6294 = vadd.f32 %v6293, %v5751
        %v6295 = vadd.f32 %v6294, %v5752
        %v6296 = vadd.f32 %v6295, %v5753
        %v6297 = vadd.f32 %v6296, %v5754
        %v6298 = vadd.f32 %v6297, %v5755
        %v6299 = vadd.f32 %v6298, %v5756
        %v6300 = vadd.f32 %v6299, %v5757
        %v6301 = vadd.f32 %v6300, %v5758
        %v6302 = vadd.f32 %v6301, %v5759
        %v6303 = vadd.f32 %v6302, %v5760
        %v6304 = vadd.f32 %v6303, %v5761
        %v6305 = vadd.f32 %v6304, %v5762
        %v6306 = vadd.f32 %v6305, %v5763
        %v6307 = vadd.f32 %v6306, %v5764
        %v6308 = vadd.f32 %v6307, %v5765
        %v6309 = vadd.f32 %v6308, %v5766
        %v6310 = vadd.f32 %v6309, %v5767
        %v6311 = vadd.f32 %v6310, %v5768
        %v6312 = vadd.f32 %v6311, %v5769
        %v6313 = vadd.f32 %v6312, %v5770
        %v6314 = vadd.f32 %v6313, %v5771
        %v6315 = vadd.f32 %v6314, %v5772
        %v6316 = vadd.f32 %v6315, %v5773
        %v6317 = vadd.f32 %v6316, %v5774
        %v6318 = vadd.f32 %v6317, %v5775
        %v6319 = vadd.f32 %v6318, %v5776
        %v6320 = vadd.f32 %v6319, %v5777
        %v6321 = vadd.f32 %v6320, %v5778
        %v6322 = vadd.f32 %v6321, %v5779
        %v6323 = vadd.f32 %v6322, %v5780
        %6324 = vadd.xlane.f32.xlu0 %v6323
        %v6325 = vpop.xlane.xlu0 %6324
        %v6326 = vrot.slane %v6325, 4
        %v6327 = vadd.f32 %v6325, %v6326
        %v6328 = vrot.slane %v6327, 2
        %v6329 = vadd.f32 %v6327, %v6328
        %v6330 = vrot.slane %v6329, 1
        %v6331 = vadd.f32 %v6329, %v6330
        %s6332 = vtos %v6331
        %v6333 = vld [vmem:[%s252] sm:$0x1]
        %v6334 = vstv %s6332
        %v6335 = vadd.f32 %v6333, %v6334
        %6336 = vst [vmem:[%s252] sm:$0x1] %v6335
        %p6337 = scmp.eq.s32.totalorder %s25, 1
        %p6338 = pnand %p6337, %p277
        %p6339 = pneg %p6338
        // Predicated region
        $region41: #{tpu_custom_call.1} parent=35 // pred_check
          _
        $region42: #{tpu_custom_call.1} parent=35 // pred_check_branch
          %6341 = sbr.rel (%p6338) target = $region44
        $region43: #{tpu_custom_call.1} parent=35 // pred_region
          %v6342 = vld [vmem:[%s252] sm:$0x1]
          %v6343 = vmul.f32 %v6342, 0.00390625
          %s6344 = sld [smem:[#allocation2]]
          %v6345 = vstv %s6344
          %v6346 = vadd.f32 %v6343, %v6345
          %v6347 = vrcp.pop 3.0
          %v6348 = vmul.f32 %v6346, %v6347
          %6349 = vst [vmem:[%s252] sm:$0x1] %v6348
        $region44: #{tpu_custom_call.1} parent=35 // pred_fallthru
          _
        %s6350 = sand.u32 %s147, 1
        %s6351 = scalar_lea.sflag [#allocation4], %s6350
        %s6352 = sand.u32 %s147, 1
        %s6353 = scalar_lea.vmem [#allocation3], %s6352
        // Predicated region
        $region45: #{tpu_custom_call.1} parent=35 // pred_check
          %p6354 = pneg %p157
        $region46: #{tpu_custom_call.1} parent=35 // pred_check_branch
          %6356 = sbr.rel (%p6354) target = $region48
        $region47: #{tpu_custom_call.1} parent=35 // pred_region
          %s6358 = ssub.s32 16, 16
          %6359 = vsyncadd %s6351, %s6358
          %s6360 = smul.addr %s24, 16
          %s6361 = scalar_lea.hbm %s4, %s6360
          %s6363 = sshll.u32 %s6353, 4
          %s6364 = int_to_ptr.vmem [resolvable:$true] %s6363
          %6366 = dma.vmem_to_hbm [thread:$0]  %s6364, 16, %s6361, %s6351
        $region48: #{tpu_custom_call.1} parent=35 // pred_fallthru
          _
      $region36: #{tpu_custom_call.1} parent=5 // pred_fallthru
        _
      %p6367 = scmp.le.s32.totalorder 2, %s14
      // Predicated region
      $region49: #{tpu_custom_call.1} parent=5 // pred_check
        %p6368 = pneg %p6367
      $region50: #{tpu_custom_call.1} parent=5 // pred_check_branch
        %6370 = sbr.rel (%p6368) target = $region52
      $region51: #{tpu_custom_call.1} parent=5 // pred_region
        %s6371 = ssub.s32 %s14, 2
        // Predicated region
        $region53: #{tpu_custom_call.1} parent=51 // pred_check
          %p6372 = pneg %p163
        $region54: #{tpu_custom_call.1} parent=51 // pred_check_branch
          %6374 = sbr.rel (%p6372) target = $region56
        $region55: #{tpu_custom_call.1} parent=51 // pred_region
          %s6375 = sand.u32 %s148, 1
          %s6376 = scalar_lea.sflag [#allocation4], %s6375
          %s6377 = sand.u32 %s148, 1
          %s6378 = scalar_lea.vmem [#allocation3], %s6377
          %6379 = dma.done %s6376, 16
        $region56: #{tpu_custom_call.1} parent=51 // pred_fallthru
          _
      $region52: #{tpu_custom_call.1} parent=5 // pred_fallthru
        _
    $region6: #{tpu_custom_call.1} parent=1 // loop_footer
      %s18 = sadd.s32 1, %s14
    $region7: #{tpu_custom_call.1} parent=1 // loop_footer_branch
      %13 = sbr.rel target = $region3
    $region8: #{tpu_custom_call.1} parent=1 // loop_exit
      _
    %6380 = vsyncpa [#allocation4], 1
    %s6381 = scalar_lea.sflag [#allocation4], 1
    %6382 = vsyncpa %s6381, 1

</llo_original>
